<compile_context>
chip_gen: v6e
topology: v6e:2x2x1
jax: 0.10.0
libtpu: 0.0.40
codegen_flags: <defaults>
</compile_context>

<pallas_src>
import functools
import math

import jax
import jax.numpy as jnp
from jax.experimental import pallas as pl
from jax.experimental.pallas import tpu as pltpu

LN_EPS = 1e-5  # PyTorch nn.LayerNorm default


# ----------------------------- in-kernel helpers -----------------------------

def _normalize(x):
    # Plain LayerNorm normalization (gain/bias folded into downstream weights).
    mean = jnp.mean(x, axis=-1, keepdims=True)
    var = jnp.mean(jnp.square(x - mean), axis=-1, keepdims=True)
    return (x - mean) * jax.lax.rsqrt(var + LN_EPS)


def _matmul_bias(x_f32, w_bf16, b_f32):
    # bf16 MXU operands, f32 accumulation, bias added once in f32.
    return jnp.dot(x_f32.astype(jnp.bfloat16), w_bf16,
                   preferred_element_type=jnp.float32) + b_f32


def _split_heads(x, n_heads, head_dim):
    # (N, E) -> (H, N, Dh): static lane slices + stack into a head-batched layout.
    # TODO(synk): replace with pltpu.einshape at production (128-multiple) E.
    return jnp.stack(
        [x[:, h * head_dim:(h + 1) * head_dim] for h in range(n_heads)], axis=0)


def _attention(q, k, v, n_heads, causal):
    # q: (Sq, E), k/v: (Sk, E), f32.  q already pre-scaled by 1/sqrt(Dh)
    # (folded into the projection weights).
    Sq, E = q.shape
    Sk = k.shape[0]
    Dh = E // n_heads
    qh = _split_heads(q, n_heads, Dh).astype(jnp.bfloat16)   # (H, Sq, Dh)
    kh = _split_heads(k, n_heads, Dh).astype(jnp.bfloat16)   # (H, Sk, Dh)
    vh = _split_heads(v, n_heads, Dh).astype(jnp.bfloat16)   # (H, Sk, Dh)

    # One head-batched matmul for all heads: (H, Sq, Dh) x (H, Sk, Dh) -> (H, Sq, Sk)
    scores = jnp.einsum('hqd,hkd->hqk', qh, kh,
                        preferred_element_type=jnp.float32)
    if causal:
        row = jax.lax.broadcasted_iota(jnp.int32, (Sq, Sk), 0)
        col = jax.lax.broadcasted_iota(jnp.int32, (Sq, Sk), 1)
        scores = jnp.where((col <= row)[None, :, :], scores, -1e30)

    # Softmax in f32; divide goes to the EUP (approx reciprocal).
    # TODO(synk): use approx=False if bit-level parity with PyTorch is required.
    m = jnp.max(scores, axis=-1, keepdims=True)
    e = jnp.exp(scores - m)
    p = e * pl.reciprocal(jnp.sum(e, axis=-1, keepdims=True), approx=True)

    ctx = jnp.einsum('hqk,hkd->hqd', p.astype(jnp.bfloat16), vh,
                     preferred_element_type=jnp.float32)      # (H, Sq, Dh)
    # Back to (Sq, E) head-concatenated layout.
    return jnp.concatenate([ctx[h] for h in range(n_heads)], axis=-1)


def _batched_attention(q, k, v, n_batch, sq, sk, n_heads, causal):
    # q: (n_batch*sq, E), k/v: (n_batch*sk, E).  Attention is per batch element
    # (no cross-element leakage); heads are batched inside each call.
    outs = []
    for b in range(n_batch):
        outs.append(_attention(q[b * sq:(b + 1) * sq],
                               k[b * sk:(b + 1) * sk],
                               v[b * sk:(b + 1) * sk],
                               n_heads, causal))
    return outs[0] if n_batch == 1 else jnp.concatenate(outs, axis=0)


def _flatten_batch(ref):
    # (Bblk, N, E) ref -> (Bblk*N, E) value using sublane-aligned concatenation.
    n = ref.shape[0]
    if n == 1:
        return ref[0]
    return jnp.concatenate([ref[b] for b in range(n)], axis=0)


# --------------------------------- the kernel ---------------------------------

def _decoder_layer_kernel(
    x_ref, img_ref,
    lnf_w, lnf_b,
    sa_qkv_w, sa_qkv_b, sa_out_w, sa_out_b,
    ca_q_w, ca_q_b, ca_kv_w, ca_kv_b, ca_out_w, ca_out_b,
    fc1_w, fc1_b, fc2_w, fc2_b,
    out_ref, *, n_heads):
    Bblk, S, E = x_ref.shape
    T = img_ref.shape[1]

    x = _flatten_batch(x_ref)       # (Bblk*S, E) f32
    img = _flatten_batch(img_ref)   # (Bblk*T, E) f32

    # ---- self-attention block (causal, mask_future_timesteps=True) ----
    residual = x
    h = _normalize(x)                                              # ln0 folded into sa_qkv
    qkv = _matmul_bias(h, sa_qkv_w[...], sa_qkv_b[...])            # (Bblk*S, 3E), q pre-scaled
    attn = _batched_attention(qkv[:, 0:E], qkv[:, E:2 * E], qkv[:, 2 * E:3 * E],
                              Bblk, S, S, n_heads, causal=True)
    x = residual + _matmul_bias(attn, sa_out_w[...], sa_out_b[...])

    # ---- conditional (cross) attention over img_features, static kv ----
    residual = x
    h = _normalize(x)                                              # ln1 folded into ca_q
    q = _matmul_bias(h, ca_q_w[...], ca_q_b[...])                  # (Bblk*S, E), pre-scaled
    kv = _matmul_bias(img, ca_kv_w[...], ca_kv_b[...])             # (Bblk*T, 2E) fused K/V
    attn = _batched_attention(q, kv[:, 0:E], kv[:, E:2 * E],
                              Bblk, S, T, n_heads, causal=False)
    x = residual + _matmul_bias(attn, ca_out_w[...], ca_out_b[...])

    # ---- feed-forward block ----
    residual = x
    h = _normalize(x)                                              # ln2 folded into fc1
    h = jnp.maximum(_matmul_bias(h, fc1_w[...], fc1_b[...]), 0.0)
    x = residual + _matmul_bias(h, fc2_w[...], fc2_b[...])

    # ---- last LayerNorm (explicit gain/bias) ----
    y = (_normalize(x) * lnf_w[...] + lnf_b[...]).astype(out_ref.dtype)
    for b in range(Bblk):
        out_ref[b] = y[b * S:(b + 1) * S]


# --------------------------------- the wrapper ---------------------------------

def decoder_layer(x_bse, img_bte, params, n_heads, *,
                  batch_block=None, out_dtype=jnp.float32):
    """Batch-major DecoderLayer forward.

    x_bse: (B, S, E), img_bte: (B, T, E).  Fairseq-time-first callers should keep
    activations batch-major end-to-end rather than transposing per layer (each
    transpose is a full HBM round-trip of the activations).
    out_dtype: set to jnp.bfloat16 to halve output HBM traffic (v5e) if the
    downstream tolerance allows; the in-kernel residual/LN/softmax stay f32.
    """
    B, S, E = x_bse.shape
    T = img_bte.shape[1]

    if batch_block is None:
        # Batch as many sequences per grid step as possible while keeping >= 2
        # grid steps ("parallel") so both v7x TensorCores get work; on v5e/v6e the
        # extra step costs ~0.35 us, negligible.  Only batch >1 per step when the
        # seq dims are sublane (8) aligned.
        if S % 8 == 0 and T % 8 == 0:
            batch_block = max((d for d in range(1, B + 1)
                               if B % d == 0 and B // d >= 2), default=B)
        else:
            batch_block = 1
    assert B % batch_block == 0, "batch_block must divide batch"
    grid = (B // batch_block,)

    in_specs = [
        pl.BlockSpec((batch_block, S, E), lambda b: (b, 0, 0)),
        pl.BlockSpec((batch_block, T, E), lambda b: (b, 0, 0)),
    ] + [pl.BlockSpec(p.shape, lambda b: (0, 0)) for p in params]  # weights resident
    # TODO(synk): at production E, add pipeline_mode=pl.Buffered(1) to the constant
    # weight specs to avoid the default 2x double-buffer VMEM tax (decisive on v7x).

    # Explicit VMEM budget sized from the real weight + activation footprint
    # (double-buffered) plus headroom for in-kernel intermediates.
    act_bytes = (batch_block * S * E) * (4 + jnp.dtype(out_dtype).itemsize) \
        + (batch_block * T * E) * 4
    w_bytes = sum(int(p.size) * jnp.dtype(p.dtype).itemsize for p in params)
    vmem_limit_bytes = 2 * (act_bytes + w_bytes) + (8 << 20)

    out = pl.pallas_call(
        functools.partial(_decoder_layer_kernel, n_heads=n_heads),
        grid=grid,
        out_shape=jax.ShapeDtypeStruct((B, S, E), out_dtype),
        in_specs=in_specs,
        out_specs=pl.BlockSpec((batch_block, S, E), lambda b: (b, 0, 0)),
        compiler_params=pltpu.CompilerParams(
            dimension_semantics=("parallel",),
            vmem_limit_bytes=int(vmem_limit_bytes)),
    )(x_bse, img_bte, *params)
    return out


# ---------------------------- parameter construction ----------------------------

def _xavier_uniform(key, out_d, in_d):
    bound = math.sqrt(6.0 / (in_d + out_d))
    return jax.random.uniform(key, (out_d, in_d), jnp.float32, -bound, bound)


def _fold_ln(ln_g, ln_b, w_in_out, bias):
    """LN(x) @ W + b  ==  normalize(x) @ (g[:,None]*W) + (beta @ W + b)."""
    return ln_g[:, None] * w_in_out, ln_b @ w_in_out + bias


def fuse_params(p, embed_d, n_heads):
    """Raw PyTorch-layout params -> fused/folded kernel params (bf16 weights, f32 biases)."""
    E = embed_d
    scale = (E // n_heads) ** -0.5

    # Self-attention: fairseq (3E, E) in_proj -> fused (E, 3E); q scaled; ln0 folded.
    qw, kw, vw = p['sa_in_w'][:E], p['sa_in_w'][E:2 * E], p['sa_in_w'][2 * E:]
    qb, kb, vb = p['sa_in_b'][:E], p['sa_in_b'][E:2 * E], p['sa_in_b'][2 * E:]
    sa_qkv_w = jnp.concatenate([qw.T * scale, kw.T, vw.T], axis=1)      # (E, 3E)
    sa_qkv_b = jnp.concatenate([qb * scale, kb, vb])                    # (3E,)
    sa_qkv_w, sa_qkv_b = _fold_ln(p['ln0_g'], p['ln0_b'], sa_qkv_w, sa_qkv_b)

    # Cross-attention: q separate (LN1 folded, applied to x); k/v fused (applied to img).
    qw, kw, vw = p['ca_in_w'][:E], p['ca_in_w'][E:2 * E], p['ca_in_w'][2 * E:]
    qb, kb, vb = p['ca_in_b'][:E], p['ca_in_b'][E:2 * E], p['ca_in_b'][2 * E:]
    ca_q_w, ca_q_b = _fold_ln(p['ln1_g'], p['ln1_b'], qw.T * scale, qb * scale)
    ca_kv_w = jnp.concatenate([kw.T, vw.T], axis=1)                      # (E, 2E)
    ca_kv_b = jnp.concatenate([kb, vb])

    # FFN: fc1 gets ln2 folded; fc2 plain.
    fc1_w, fc1_b = _fold_ln(p['ln2_g'], p['ln2_b'], p['fc1_w'].T, p['fc1_b'])
    fc2_w, fc2_b = p['fc2_w'].T, p['fc2_b']

    def w(a):
        return a.astype(jnp.bfloat16)

    def b(a):
        return a.reshape(1, -1).astype(jnp.float32)

    return [
        p['lnf_g'].reshape(1, -1).astype(jnp.float32),
        p['lnf_b'].reshape(1, -1).astype(jnp.float32),
        w(sa_qkv_w), b(sa_qkv_b), w(p['sa_out_w'].T), b(p['sa_out_b']),
        w(ca_q_w), b(ca_q_b), w(ca_kv_w), b(ca_kv_b),
        w(p['ca_out_w'].T), b(p['ca_out_b']),
        w(fc1_w), b(fc1_b), w(fc2_w), b(fc2_b),
    ]


def make_params(key, embed_d, n_heads):
    """Raw parameters with the module's init (xavier weights, zero biases, unit LN)."""
    E = embed_d
    ks = jax.random.split(key, 6)
    ones = jnp.ones((E,), jnp.float32)
    zeros = jnp.zeros((E,), jnp.float32)
    raw = dict(
        ln0_g=ones, ln0_b=zeros, ln1_g=ones, ln1_b=zeros,
        ln2_g=ones, ln2_b=zeros, lnf_g=ones, lnf_b=zeros,
        sa_in_w=_xavier_uniform(ks[0], 3 * E, E), sa_in_b=jnp.zeros((3 * E,), jnp.float32),
        sa_out_w=_xavier_uniform(ks[1], E, E), sa_out_b=zeros,
        ca_in_w=_xavier_uniform(ks[2], 3 * E, E), ca_in_b=jnp.zeros((3 * E,), jnp.float32),
        ca_out_w=_xavier_uniform(ks[3], E, E), ca_out_b=zeros,
        fc1_w=_xavier_uniform(ks[4], E, E), fc1_b=zeros,
        fc2_w=_xavier_uniform(ks[5], E, E), fc2_b=zeros,
    )
    return fuse_params(raw, E, n_heads)


if __name__ == "__main__":
    # batch=4, seq=8, img tokens=8, embed_d=32, heads=4
    # -> default batch_block=2, grid=(2,) "parallel": two sequences per grid step
    #    (fills MXU rows / amortizes step overhead) and two steps (both v7x TCs busy).
    B, S, T, E, H = 4, 8, 8, 32, 4
    key = jax.random.PRNGKey(0)
    kx, kimg, kp = jax.random.split(key, 3)

    x = jax.random.normal(kx, (B, S, E), jnp.float32)              # batch-major
    img_features = jax.random.normal(kimg, (B, T, E), jnp.float32)
    params = make_params(kp, E, H)

    out = decoder_layer(x, img_features, params, n_heads=H)
    out = jax.block_until_ready(out)
    assert out.shape == (B, S, E) and out.dtype == jnp.float32
    assert bool(jnp.all(jnp.isfinite(out)))
    print("KERNEL_OK")
</pallas_src>

<mosaic_0001>
module attributes {stable_mosaic.version = 11 : i64} {
  func.func @_decoder_layer_kernel(%arg0: i32, %arg1: memref<2x8x32xf32, #tpu.memory_space<vmem>>, %arg2: memref<2x8x32xf32, #tpu.memory_space<vmem>>, %arg3: memref<1x32xf32, #tpu.memory_space<vmem>>, %arg4: memref<1x32xf32, #tpu.memory_space<vmem>>, %arg5: memref<32x96xbf16, #tpu.memory_space<vmem>>, %arg6: memref<1x96xf32, #tpu.memory_space<vmem>>, %arg7: memref<32x32xbf16, #tpu.memory_space<vmem>>, %arg8: memref<1x32xf32, #tpu.memory_space<vmem>>, %arg9: memref<32x32xbf16, #tpu.memory_space<vmem>>, %arg10: memref<1x32xf32, #tpu.memory_space<vmem>>, %arg11: memref<32x64xbf16, #tpu.memory_space<vmem>>, %arg12: memref<1x64xf32, #tpu.memory_space<vmem>>, %arg13: memref<32x32xbf16, #tpu.memory_space<vmem>>, %arg14: memref<1x32xf32, #tpu.memory_space<vmem>>, %arg15: memref<32x32xbf16, #tpu.memory_space<vmem>>, %arg16: memref<1x32xf32, #tpu.memory_space<vmem>>, %arg17: memref<32x32xbf16, #tpu.memory_space<vmem>>, %arg18: memref<1x32xf32, #tpu.memory_space<vmem>>, %arg19: memref<2x8x32xf32, #tpu.memory_space<vmem>>) attributes {dimension_semantics = [#tpu.dimension_semantics<parallel>], iteration_bounds = array<i64: 2>, scalar_prefetch = 0 : i64, scratch_operands = 0 : i64, tpu.core_type = #tpu.core_type<tc>, window_params = [{transform_indices = @transform_0, window_bounds = array<i64: 2, 8, 32>}, {transform_indices = @transform_1, window_bounds = array<i64: 2, 8, 32>}, {pipeline_mode = #tpu.pipeline_mode<synchronous>, transform_indices = @transform_2, window_bounds = array<i64: 1, 32>}, {pipeline_mode = #tpu.pipeline_mode<synchronous>, transform_indices = @transform_3, window_bounds = array<i64: 1, 32>}, {pipeline_mode = #tpu.pipeline_mode<synchronous>, transform_indices = @transform_4, window_bounds = array<i64: 32, 96>}, {pipeline_mode = #tpu.pipeline_mode<synchronous>, transform_indices = @transform_5, window_bounds = array<i64: 1, 96>}, {pipeline_mode = #tpu.pipeline_mode<synchronous>, transform_indices = @transform_6, window_bounds = array<i64: 32, 32>}, {pipeline_mode = #tpu.pipeline_mode<synchronous>, transform_indices = @transform_7, window_bounds = array<i64: 1, 32>}, {pipeline_mode = #tpu.pipeline_mode<synchronous>, transform_indices = @transform_8, window_bounds = array<i64: 32, 32>}, {pipeline_mode = #tpu.pipeline_mode<synchronous>, transform_indices = @transform_9, window_bounds = array<i64: 1, 32>}, {pipeline_mode = #tpu.pipeline_mode<synchronous>, transform_indices = @transform_10, window_bounds = array<i64: 32, 64>}, {pipeline_mode = #tpu.pipeline_mode<synchronous>, transform_indices = @transform_11, window_bounds = array<i64: 1, 64>}, {pipeline_mode = #tpu.pipeline_mode<synchronous>, transform_indices = @transform_12, window_bounds = array<i64: 32, 32>}, {pipeline_mode = #tpu.pipeline_mode<synchronous>, transform_indices = @transform_13, window_bounds = array<i64: 1, 32>}, {pipeline_mode = #tpu.pipeline_mode<synchronous>, transform_indices = @transform_14, window_bounds = array<i64: 32, 32>}, {pipeline_mode = #tpu.pipeline_mode<synchronous>, transform_indices = @transform_15, window_bounds = array<i64: 1, 32>}, {pipeline_mode = #tpu.pipeline_mode<synchronous>, transform_indices = @transform_16, window_bounds = array<i64: 32, 32>}, {pipeline_mode = #tpu.pipeline_mode<synchronous>, transform_indices = @transform_17, window_bounds = array<i64: 1, 32>}, {transform_indices = @transform_18, window_bounds = array<i64: 2, 8, 32>}]} {
    %c0 = arith.constant 0 : index
    %c0_0 = arith.constant 0 : index
    %c0_1 = arith.constant 0 : index
    %0 = vector.load %arg1[%c0, %c0_0, %c0_1] : memref<2x8x32xf32, #tpu.memory_space<vmem>>, vector<1x8x32xf32>
    %1 = vector.shape_cast %0 : vector<1x8x32xf32> to vector<8x32xf32>
    %c1 = arith.constant 1 : index
    %c0_2 = arith.constant 0 : index
    %c0_3 = arith.constant 0 : index
    %2 = vector.load %arg1[%c1, %c0_2, %c0_3] : memref<2x8x32xf32, #tpu.memory_space<vmem>>, vector<1x8x32xf32>
    %3 = vector.shape_cast %2 : vector<1x8x32xf32> to vector<8x32xf32>
    %4 = tpu.concatenate %1, %3 in 0 : vector<8x32xf32>, vector<8x32xf32> -> vector<16x32xf32>
    %c0_4 = arith.constant 0 : index
    %c0_5 = arith.constant 0 : index
    %c0_6 = arith.constant 0 : index
    %5 = vector.load %arg2[%c0_4, %c0_5, %c0_6] : memref<2x8x32xf32, #tpu.memory_space<vmem>>, vector<1x8x32xf32>
    %6 = vector.shape_cast %5 : vector<1x8x32xf32> to vector<8x32xf32>
    %c1_7 = arith.constant 1 : index
    %c0_8 = arith.constant 0 : index
    %c0_9 = arith.constant 0 : index
    %7 = vector.load %arg2[%c1_7, %c0_8, %c0_9] : memref<2x8x32xf32, #tpu.memory_space<vmem>>, vector<1x8x32xf32>
    %8 = vector.shape_cast %7 : vector<1x8x32xf32> to vector<8x32xf32>
    %9 = tpu.concatenate %6, %8 in 0 : vector<8x32xf32>, vector<8x32xf32> -> vector<16x32xf32>
    %cst = arith.constant dense<0.000000e+00> : vector<16xf32>
    %10 = vector.multi_reduction <add>, %4, %cst [1] : vector<16x32xf32> to vector<16xf32>
    %11 = vector.shape_cast %10 : vector<16xf32> to vector<16x1xf32>
    %cst_10 = arith.constant 3.200000e+01 : f32
    %12 = vector.broadcast %cst_10 : f32 to vector<16x1xf32>
    %13 = arith.divf %11, %12 : vector<16x1xf32>
    %14 = vector.broadcast %13 : vector<16x1xf32> to vector<16x32xf32>
    %15 = arith.subf %4, %14 : vector<16x32xf32>
    %16 = arith.mulf %15, %15 : vector<16x32xf32>
    %cst_11 = arith.constant dense<0.000000e+00> : vector<16xf32>
    %17 = vector.multi_reduction <add>, %16, %cst_11 [1] : vector<16x32xf32> to vector<16xf32>
    %18 = vector.shape_cast %17 : vector<16xf32> to vector<16x1xf32>
    %cst_12 = arith.constant 3.200000e+01 : f32
    %19 = vector.broadcast %cst_12 : f32 to vector<16x1xf32>
    %20 = arith.divf %18, %19 : vector<16x1xf32>
    %21 = vector.broadcast %13 : vector<16x1xf32> to vector<16x32xf32>
    %22 = arith.subf %4, %21 : vector<16x32xf32>
    %cst_13 = arith.constant 9.99999974E-6 : f32
    %23 = vector.broadcast %cst_13 : f32 to vector<16x1xf32>
    %24 = arith.addf %20, %23 : vector<16x1xf32>
    %25 = math.rsqrt %24 : vector<16x1xf32>
    %26 = vector.broadcast %25 : vector<16x1xf32> to vector<16x32xf32>
    %27 = arith.mulf %22, %26 : vector<16x32xf32>
    %c0_14 = arith.constant 0 : index
    %c0_15 = arith.constant 0 : index
    %28 = vector.load %arg5[%c0_14, %c0_15] : memref<32x96xbf16, #tpu.memory_space<vmem>>, vector<32x96xbf16>
    %c0_16 = arith.constant 0 : index
    %c0_17 = arith.constant 0 : index
    %29 = vector.load %arg6[%c0_16, %c0_17] : memref<1x96xf32, #tpu.memory_space<vmem>>, vector<1x96xf32>
    %30 = arith.truncf %27 : vector<16x32xf32> to vector<16x32xbf16>
    %cst_18 = arith.constant dense<0.000000e+00> : vector<16x96xf32>
    %31 = tpu.matmul %30, %28, %cst_18 {dimension_numbers = #tpu.dot_dimension_numbers<[1], [0], [0], [1], [0, 0, 1, 1], [], []>} : vector<16x32xbf16>, vector<32x96xbf16>, vector<16x96xf32> -> vector<16x96xf32>
    %32 = vector.broadcast %29 : vector<1x96xf32> to vector<16x96xf32>
    %33 = arith.addf %31, %32 : vector<16x96xf32>
    %34 = vector.extract_strided_slice %33 {offsets = [0, 0], sizes = [16, 32], strides = [1, 1]} : vector<16x96xf32> to vector<16x32xf32>
    %35 = vector.extract_strided_slice %33 {offsets = [0, 32], sizes = [16, 32], strides = [1, 1]} : vector<16x96xf32> to vector<16x32xf32>
    %36 = vector.extract_strided_slice %33 {offsets = [0, 64], sizes = [16, 32], strides = [1, 1]} : vector<16x96xf32> to vector<16x32xf32>
    %37 = vector.extract_strided_slice %34 {offsets = [0, 0], sizes = [8, 32], strides = [1, 1]} : vector<16x32xf32> to vector<8x32xf32>
    %38 = vector.extract_strided_slice %35 {offsets = [0, 0], sizes = [8, 32], strides = [1, 1]} : vector<16x32xf32> to vector<8x32xf32>
    %39 = vector.extract_strided_slice %36 {offsets = [0, 0], sizes = [8, 32], strides = [1, 1]} : vector<16x32xf32> to vector<8x32xf32>
    %40 = vector.extract_strided_slice %37 {offsets = [0, 0], sizes = [8, 8], strides = [1, 1]} : vector<8x32xf32> to vector<8x8xf32>
    %41 = vector.extract_strided_slice %37 {offsets = [0, 8], sizes = [8, 8], strides = [1, 1]} : vector<8x32xf32> to vector<8x8xf32>
    %42 = vector.extract_strided_slice %37 {offsets = [0, 16], sizes = [8, 8], strides = [1, 1]} : vector<8x32xf32> to vector<8x8xf32>
    %43 = vector.extract_strided_slice %37 {offsets = [0, 24], sizes = [8, 8], strides = [1, 1]} : vector<8x32xf32> to vector<8x8xf32>
    %44 = vector.shape_cast %40 : vector<8x8xf32> to vector<1x8x8xf32>
    %45 = vector.shape_cast %41 : vector<8x8xf32> to vector<1x8x8xf32>
    %46 = vector.shape_cast %42 : vector<8x8xf32> to vector<1x8x8xf32>
    %47 = vector.shape_cast %43 : vector<8x8xf32> to vector<1x8x8xf32>
    %48 = tpu.concatenate %44, %45, %46, %47 in 0 : vector<1x8x8xf32>, vector<1x8x8xf32>, vector<1x8x8xf32>, vector<1x8x8xf32> -> vector<4x8x8xf32>
    %49 = arith.truncf %48 : vector<4x8x8xf32> to vector<4x8x8xbf16>
    %50 = vector.extract_strided_slice %38 {offsets = [0, 0], sizes = [8, 8], strides = [1, 1]} : vector<8x32xf32> to vector<8x8xf32>
    %51 = vector.extract_strided_slice %38 {offsets = [0, 8], sizes = [8, 8], strides = [1, 1]} : vector<8x32xf32> to vector<8x8xf32>
    %52 = vector.extract_strided_slice %38 {offsets = [0, 16], sizes = [8, 8], strides = [1, 1]} : vector<8x32xf32> to vector<8x8xf32>
    %53 = vector.extract_strided_slice %38 {offsets = [0, 24], sizes = [8, 8], strides = [1, 1]} : vector<8x32xf32> to vector<8x8xf32>
    %54 = vector.shape_cast %50 : vector<8x8xf32> to vector<1x8x8xf32>
    %55 = vector.shape_cast %51 : vector<8x8xf32> to vector<1x8x8xf32>
    %56 = vector.shape_cast %52 : vector<8x8xf32> to vector<1x8x8xf32>
    %57 = vector.shape_cast %53 : vector<8x8xf32> to vector<1x8x8xf32>
    %58 = tpu.concatenate %54, %55, %56, %57 in 0 : vector<1x8x8xf32>, vector<1x8x8xf32>, vector<1x8x8xf32>, vector<1x8x8xf32> -> vector<4x8x8xf32>
    %59 = arith.truncf %58 : vector<4x8x8xf32> to vector<4x8x8xbf16>
    %60 = vector.extract_strided_slice %39 {offsets = [0, 0], sizes = [8, 8], strides = [1, 1]} : vector<8x32xf32> to vector<8x8xf32>
    %61 = vector.extract_strided_slice %39 {offsets = [0, 8], sizes = [8, 8], strides = [1, 1]} : vector<8x32xf32> to vector<8x8xf32>
    %62 = vector.extract_strided_slice %39 {offsets = [0, 16], sizes = [8, 8], strides = [1, 1]} : vector<8x32xf32> to vector<8x8xf32>
    %63 = vector.extract_strided_slice %39 {offsets = [0, 24], sizes = [8, 8], strides = [1, 1]} : vector<8x32xf32> to vector<8x8xf32>
    %64 = vector.shape_cast %60 : vector<8x8xf32> to vector<1x8x8xf32>
    %65 = vector.shape_cast %61 : vector<8x8xf32> to vector<1x8x8xf32>
    %66 = vector.shape_cast %62 : vector<8x8xf32> to vector<1x8x8xf32>
    %67 = vector.shape_cast %63 : vector<8x8xf32> to vector<1x8x8xf32>
    %68 = tpu.concatenate %64, %65, %66, %67 in 0 : vector<1x8x8xf32>, vector<1x8x8xf32>, vector<1x8x8xf32>, vector<1x8x8xf32> -> vector<4x8x8xf32>
    %69 = arith.truncf %68 : vector<4x8x8xf32> to vector<4x8x8xbf16>
    "tpu.trace_start"() <{level = 10 : i32, message = "hqd,hkd->hqk"}> : () -> ()
    %cst_19 = arith.constant dense<0.000000e+00> : vector<4x8x8xf32>
    %70 = tpu.matmul %49, %59, %cst_19 {dimension_numbers = #tpu.dot_dimension_numbers<[2], [2], [1], [1], [0, 0, 0, 1, 1, 1], [0], [0]>} : vector<4x8x8xbf16>, vector<4x8x8xbf16>, vector<4x8x8xf32> -> vector<4x8x8xf32>
    "tpu.trace_stop"() : () -> ()
    %71 = tpu.iota {dimensions = array<i32: 0>} : vector<8x8xi32>
    %72 = tpu.iota {dimensions = array<i32: 1>} : vector<8x8xi32>
    %73 = arith.cmpi sle, %72, %71 : vector<8x8xi32>
    %74 = vector.shape_cast %73 : vector<8x8xi1> to vector<1x8x8xi1>
    %cst_20 = arith.constant -1.000000e+30 : f32
    %75 = vector.shape_cast %74 : vector<1x8x8xi1> to vector<1x8x8xi1>
    %76 = vector.broadcast %75 : vector<1x8x8xi1> to vector<4x8x8xi1>
    %77 = vector.broadcast %cst_20 : f32 to vector<4x8x8xf32>
    %78 = arith.select %76, %70, %77 : vector<4x8x8xi1>, vector<4x8x8xf32>
    %cst_21 = arith.constant dense<0xFF800000> : vector<4x8xf32>
    %79 = vector.multi_reduction <maximumf>, %78, %cst_21 [2] : vector<4x8x8xf32> to vector<4x8xf32>
    %80 = vector.shape_cast %79 : vector<4x8xf32> to vector<4x8x1xf32>
    %81 = vector.broadcast %80 : vector<4x8x1xf32> to vector<4x8x8xf32>
    %82 = arith.subf %78, %81 : vector<4x8x8xf32>
    %83 = math.exp %82 : vector<4x8x8xf32>
    %cst_22 = arith.constant dense<0.000000e+00> : vector<4x8xf32>
    %84 = vector.multi_reduction <add>, %83, %cst_22 [2] : vector<4x8x8xf32> to vector<4x8xf32>
    %85 = vector.shape_cast %84 : vector<4x8xf32> to vector<4x8x1xf32>
    %86 = tpu.reciprocal %85 {approx = true} : vector<4x8x1xf32> -> vector<4x8x1xf32>
    %87 = vector.broadcast %86 : vector<4x8x1xf32> to vector<4x8x8xf32>
    %88 = arith.mulf %83, %87 : vector<4x8x8xf32>
    %89 = arith.truncf %88 : vector<4x8x8xf32> to vector<4x8x8xbf16>
    "tpu.trace_start"() <{level = 10 : i32, message = "hqk,hkd->hqd"}> : () -> ()
    %cst_23 = arith.constant dense<0.000000e+00> : vector<4x8x8xf32>
    %90 = tpu.matmul %89, %69, %cst_23 {dimension_numbers = #tpu.dot_dimension_numbers<[2], [1], [1], [2], [0, 0, 0, 1, 1, 2], [0], [0]>} : vector<4x8x8xbf16>, vector<4x8x8xbf16>, vector<4x8x8xf32> -> vector<4x8x8xf32>
    "tpu.trace_stop"() : () -> ()
    %91 = vector.extract_strided_slice %90 {offsets = [0, 0, 0], sizes = [1, 8, 8], strides = [1, 1, 1]} : vector<4x8x8xf32> to vector<1x8x8xf32>
    %92 = vector.shape_cast %91 : vector<1x8x8xf32> to vector<8x8xf32>
    %93 = vector.extract_strided_slice %90 {offsets = [1, 0, 0], sizes = [1, 8, 8], strides = [1, 1, 1]} : vector<4x8x8xf32> to vector<1x8x8xf32>
    %94 = vector.shape_cast %93 : vector<1x8x8xf32> to vector<8x8xf32>
    %95 = vector.extract_strided_slice %90 {offsets = [2, 0, 0], sizes = [1, 8, 8], strides = [1, 1, 1]} : vector<4x8x8xf32> to vector<1x8x8xf32>
    %96 = vector.shape_cast %95 : vector<1x8x8xf32> to vector<8x8xf32>
    %97 = vector.extract_strided_slice %90 {offsets = [3, 0, 0], sizes = [1, 8, 8], strides = [1, 1, 1]} : vector<4x8x8xf32> to vector<1x8x8xf32>
    %98 = vector.shape_cast %97 : vector<1x8x8xf32> to vector<8x8xf32>
    %99 = tpu.concatenate %92, %94, %96, %98 in 1 : vector<8x8xf32>, vector<8x8xf32>, vector<8x8xf32>, vector<8x8xf32> -> vector<8x32xf32>
    %100 = vector.extract_strided_slice %34 {offsets = [8, 0], sizes = [8, 32], strides = [1, 1]} : vector<16x32xf32> to vector<8x32xf32>
    %101 = vector.extract_strided_slice %35 {offsets = [8, 0], sizes = [8, 32], strides = [1, 1]} : vector<16x32xf32> to vector<8x32xf32>
    %102 = vector.extract_strided_slice %36 {offsets = [8, 0], sizes = [8, 32], strides = [1, 1]} : vector<16x32xf32> to vector<8x32xf32>
    %103 = vector.extract_strided_slice %100 {offsets = [0, 0], sizes = [8, 8], strides = [1, 1]} : vector<8x32xf32> to vector<8x8xf32>
    %104 = vector.extract_strided_slice %100 {offsets = [0, 8], sizes = [8, 8], strides = [1, 1]} : vector<8x32xf32> to vector<8x8xf32>
    %105 = vector.extract_strided_slice %100 {offsets = [0, 16], sizes = [8, 8], strides = [1, 1]} : vector<8x32xf32> to vector<8x8xf32>
    %106 = vector.extract_strided_slice %100 {offsets = [0, 24], sizes = [8, 8], strides = [1, 1]} : vector<8x32xf32> to vector<8x8xf32>
    %107 = vector.shape_cast %103 : vector<8x8xf32> to vector<1x8x8xf32>
    %108 = vector.shape_cast %104 : vector<8x8xf32> to vector<1x8x8xf32>
    %109 = vector.shape_cast %105 : vector<8x8xf32> to vector<1x8x8xf32>
    %110 = vector.shape_cast %106 : vector<8x8xf32> to vector<1x8x8xf32>
    %111 = tpu.concatenate %107, %108, %109, %110 in 0 : vector<1x8x8xf32>, vector<1x8x8xf32>, vector<1x8x8xf32>, vector<1x8x8xf32> -> vector<4x8x8xf32>
    %112 = arith.truncf %111 : vector<4x8x8xf32> to vector<4x8x8xbf16>
    %113 = vector.extract_strided_slice %101 {offsets = [0, 0], sizes = [8, 8], strides = [1, 1]} : vector<8x32xf32> to vector<8x8xf32>
    %114 = vector.extract_strided_slice %101 {offsets = [0, 8], sizes = [8, 8], strides = [1, 1]} : vector<8x32xf32> to vector<8x8xf32>
    %115 = vector.extract_strided_slice %101 {offsets = [0, 16], sizes = [8, 8], strides = [1, 1]} : vector<8x32xf32> to vector<8x8xf32>
    %116 = vector.extract_strided_slice %101 {offsets = [0, 24], sizes = [8, 8], strides = [1, 1]} : vector<8x32xf32> to vector<8x8xf32>
    %117 = vector.shape_cast %113 : vector<8x8xf32> to vector<1x8x8xf32>
    %118 = vector.shape_cast %114 : vector<8x8xf32> to vector<1x8x8xf32>
    %119 = vector.shape_cast %115 : vector<8x8xf32> to vector<1x8x8xf32>
    %120 = vector.shape_cast %116 : vector<8x8xf32> to vector<1x8x8xf32>
    %121 = tpu.concatenate %117, %118, %119, %120 in 0 : vector<1x8x8xf32>, vector<1x8x8xf32>, vector<1x8x8xf32>, vector<1x8x8xf32> -> vector<4x8x8xf32>
    %122 = arith.truncf %121 : vector<4x8x8xf32> to vector<4x8x8xbf16>
    %123 = vector.extract_strided_slice %102 {offsets = [0, 0], sizes = [8, 8], strides = [1, 1]} : vector<8x32xf32> to vector<8x8xf32>
    %124 = vector.extract_strided_slice %102 {offsets = [0, 8], sizes = [8, 8], strides = [1, 1]} : vector<8x32xf32> to vector<8x8xf32>
    %125 = vector.extract_strided_slice %102 {offsets = [0, 16], sizes = [8, 8], strides = [1, 1]} : vector<8x32xf32> to vector<8x8xf32>
    %126 = vector.extract_strided_slice %102 {offsets = [0, 24], sizes = [8, 8], strides = [1, 1]} : vector<8x32xf32> to vector<8x8xf32>
    %127 = vector.shape_cast %123 : vector<8x8xf32> to vector<1x8x8xf32>
    %128 = vector.shape_cast %124 : vector<8x8xf32> to vector<1x8x8xf32>
    %129 = vector.shape_cast %125 : vector<8x8xf32> to vector<1x8x8xf32>
    %130 = vector.shape_cast %126 : vector<8x8xf32> to vector<1x8x8xf32>
    %131 = tpu.concatenate %127, %128, %129, %130 in 0 : vector<1x8x8xf32>, vector<1x8x8xf32>, vector<1x8x8xf32>, vector<1x8x8xf32> -> vector<4x8x8xf32>
    %132 = arith.truncf %131 : vector<4x8x8xf32> to vector<4x8x8xbf16>
    "tpu.trace_start"() <{level = 10 : i32, message = "hqd,hkd->hqk"}> : () -> ()
    %cst_24 = arith.constant dense<0.000000e+00> : vector<4x8x8xf32>
    %133 = tpu.matmul %112, %122, %cst_24 {dimension_numbers = #tpu.dot_dimension_numbers<[2], [2], [1], [1], [0, 0, 0, 1, 1, 1], [0], [0]>} : vector<4x8x8xbf16>, vector<4x8x8xbf16>, vector<4x8x8xf32> -> vector<4x8x8xf32>
    "tpu.trace_stop"() : () -> ()
    %134 = tpu.iota {dimensions = array<i32: 0>} : vector<8x8xi32>
    %135 = tpu.iota {dimensions = array<i32: 1>} : vector<8x8xi32>
    %136 = arith.cmpi sle, %135, %134 : vector<8x8xi32>
    %137 = vector.shape_cast %136 : vector<8x8xi1> to vector<1x8x8xi1>
    %cst_25 = arith.constant -1.000000e+30 : f32
    %138 = vector.shape_cast %137 : vector<1x8x8xi1> to vector<1x8x8xi1>
    %139 = vector.broadcast %138 : vector<1x8x8xi1> to vector<4x8x8xi1>
    %140 = vector.broadcast %cst_25 : f32 to vector<4x8x8xf32>
    %141 = arith.select %139, %133, %140 : vector<4x8x8xi1>, vector<4x8x8xf32>
    %cst_26 = arith.constant dense<0xFF800000> : vector<4x8xf32>
    %142 = vector.multi_reduction <maximumf>, %141, %cst_26 [2] : vector<4x8x8xf32> to vector<4x8xf32>
    %143 = vector.shape_cast %142 : vector<4x8xf32> to vector<4x8x1xf32>
    %144 = vector.broadcast %143 : vector<4x8x1xf32> to vector<4x8x8xf32>
    %145 = arith.subf %141, %144 : vector<4x8x8xf32>
    %146 = math.exp %145 : vector<4x8x8xf32>
    %cst_27 = arith.constant dense<0.000000e+00> : vector<4x8xf32>
    %147 = vector.multi_reduction <add>, %146, %cst_27 [2] : vector<4x8x8xf32> to vector<4x8xf32>
    %148 = vector.shape_cast %147 : vector<4x8xf32> to vector<4x8x1xf32>
    %149 = tpu.reciprocal %148 {approx = true} : vector<4x8x1xf32> -> vector<4x8x1xf32>
    %150 = vector.broadcast %149 : vector<4x8x1xf32> to vector<4x8x8xf32>
    %151 = arith.mulf %146, %150 : vector<4x8x8xf32>
    %152 = arith.truncf %151 : vector<4x8x8xf32> to vector<4x8x8xbf16>
    "tpu.trace_start"() <{level = 10 : i32, message = "hqk,hkd->hqd"}> : () -> ()
    %cst_28 = arith.constant dense<0.000000e+00> : vector<4x8x8xf32>
    %153 = tpu.matmul %152, %132, %cst_28 {dimension_numbers = #tpu.dot_dimension_numbers<[2], [1], [1], [2], [0, 0, 0, 1, 1, 2], [0], [0]>} : vector<4x8x8xbf16>, vector<4x8x8xbf16>, vector<4x8x8xf32> -> vector<4x8x8xf32>
    "tpu.trace_stop"() : () -> ()
    %154 = vector.extract_strided_slice %153 {offsets = [0, 0, 0], sizes = [1, 8, 8], strides = [1, 1, 1]} : vector<4x8x8xf32> to vector<1x8x8xf32>
    %155 = vector.shape_cast %154 : vector<1x8x8xf32> to vector<8x8xf32>
    %156 = vector.extract_strided_slice %153 {offsets = [1, 0, 0], sizes = [1, 8, 8], strides = [1, 1, 1]} : vector<4x8x8xf32> to vector<1x8x8xf32>
    %157 = vector.shape_cast %156 : vector<1x8x8xf32> to vector<8x8xf32>
    %158 = vector.extract_strided_slice %153 {offsets = [2, 0, 0], sizes = [1, 8, 8], strides = [1, 1, 1]} : vector<4x8x8xf32> to vector<1x8x8xf32>
    %159 = vector.shape_cast %158 : vector<1x8x8xf32> to vector<8x8xf32>
    %160 = vector.extract_strided_slice %153 {offsets = [3, 0, 0], sizes = [1, 8, 8], strides = [1, 1, 1]} : vector<4x8x8xf32> to vector<1x8x8xf32>
    %161 = vector.shape_cast %160 : vector<1x8x8xf32> to vector<8x8xf32>
    %162 = tpu.concatenate %155, %157, %159, %161 in 1 : vector<8x8xf32>, vector<8x8xf32>, vector<8x8xf32>, vector<8x8xf32> -> vector<8x32xf32>
    %163 = tpu.concatenate %99, %162 in 0 : vector<8x32xf32>, vector<8x32xf32> -> vector<16x32xf32>
    %c0_29 = arith.constant 0 : index
    %c0_30 = arith.constant 0 : index
    %164 = vector.load %arg7[%c0_29, %c0_30] : memref<32x32xbf16, #tpu.memory_space<vmem>>, vector<32x32xbf16>
    %c0_31 = arith.constant 0 : index
    %c0_32 = arith.constant 0 : index
    %165 = vector.load %arg8[%c0_31, %c0_32] : memref<1x32xf32, #tpu.memory_space<vmem>>, vector<1x32xf32>
    %166 = arith.truncf %163 : vector<16x32xf32> to vector<16x32xbf16>
    %cst_33 = arith.constant dense<0.000000e+00> : vector<16x32xf32>
    %167 = tpu.matmul %166, %164, %cst_33 {dimension_numbers = #tpu.dot_dimension_numbers<[1], [0], [0], [1], [0, 0, 1, 1], [], []>} : vector<16x32xbf16>, vector<32x32xbf16>, vector<16x32xf32> -> vector<16x32xf32>
    %168 = vector.broadcast %165 : vector<1x32xf32> to vector<16x32xf32>
    %169 = arith.addf %167, %168 : vector<16x32xf32>
    %170 = arith.addf %4, %169 : vector<16x32xf32>
    %cst_34 = arith.constant dense<0.000000e+00> : vector<16xf32>
    %171 = vector.multi_reduction <add>, %170, %cst_34 [1] : vector<16x32xf32> to vector<16xf32>
    %172 = vector.shape_cast %171 : vector<16xf32> to vector<16x1xf32>
    %cst_35 = arith.constant 3.200000e+01 : f32
    %173 = vector.broadcast %cst_35 : f32 to vector<16x1xf32>
    %174 = arith.divf %172, %173 : vector<16x1xf32>
    %175 = vector.broadcast %174 : vector<16x1xf32> to vector<16x32xf32>
    %176 = arith.subf %170, %175 : vector<16x32xf32>
    %177 = arith.mulf %176, %176 : vector<16x32xf32>
    %cst_36 = arith.constant dense<0.000000e+00> : vector<16xf32>
    %178 = vector.multi_reduction <add>, %177, %cst_36 [1] : vector<16x32xf32> to vector<16xf32>
    %179 = vector.shape_cast %178 : vector<16xf32> to vector<16x1xf32>
    %cst_37 = arith.constant 3.200000e+01 : f32
    %180 = vector.broadcast %cst_37 : f32 to vector<16x1xf32>
    %181 = arith.divf %179, %180 : vector<16x1xf32>
    %182 = vector.broadcast %174 : vector<16x1xf32> to vector<16x32xf32>
    %183 = arith.subf %170, %182 : vector<16x32xf32>
    %cst_38 = arith.constant 9.99999974E-6 : f32
    %184 = vector.broadcast %cst_38 : f32 to vector<16x1xf32>
    %185 = arith.addf %181, %184 : vector<16x1xf32>
    %186 = math.rsqrt %185 : vector<16x1xf32>
    %187 = vector.broadcast %186 : vector<16x1xf32> to vector<16x32xf32>
    %188 = arith.mulf %183, %187 : vector<16x32xf32>
    %c0_39 = arith.constant 0 : index
    %c0_40 = arith.constant 0 : index
    %189 = vector.load %arg9[%c0_39, %c0_40] : memref<32x32xbf16, #tpu.memory_space<vmem>>, vector<32x32xbf16>
    %c0_41 = arith.constant 0 : index
    %c0_42 = arith.constant 0 : index
    %190 = vector.load %arg10[%c0_41, %c0_42] : memref<1x32xf32, #tpu.memory_space<vmem>>, vector<1x32xf32>
    %191 = arith.truncf %188 : vector<16x32xf32> to vector<16x32xbf16>
    %cst_43 = arith.constant dense<0.000000e+00> : vector<16x32xf32>
    %192 = tpu.matmul %191, %189, %cst_43 {dimension_numbers = #tpu.dot_dimension_numbers<[1], [0], [0], [1], [0, 0, 1, 1], [], []>} : vector<16x32xbf16>, vector<32x32xbf16>, vector<16x32xf32> -> vector<16x32xf32>
    %193 = vector.broadcast %190 : vector<1x32xf32> to vector<16x32xf32>
    %194 = arith.addf %192, %193 : vector<16x32xf32>
    %c0_44 = arith.constant 0 : index
    %c0_45 = arith.constant 0 : index
    %195 = vector.load %arg11[%c0_44, %c0_45] : memref<32x64xbf16, #tpu.memory_space<vmem>>, vector<32x64xbf16>
    %c0_46 = arith.constant 0 : index
    %c0_47 = arith.constant 0 : index
    %196 = vector.load %arg12[%c0_46, %c0_47] : memref<1x64xf32, #tpu.memory_space<vmem>>, vector<1x64xf32>
    %197 = arith.truncf %9 : vector<16x32xf32> to vector<16x32xbf16>
    %cst_48 = arith.constant dense<0.000000e+00> : vector<16x64xf32>
    %198 = tpu.matmul %197, %195, %cst_48 {dimension_numbers = #tpu.dot_dimension_numbers<[1], [0], [0], [1], [0, 0, 1, 1], [], []>} : vector<16x32xbf16>, vector<32x64xbf16>, vector<16x64xf32> -> vector<16x64xf32>
    %199 = vector.broadcast %196 : vector<1x64xf32> to vector<16x64xf32>
    %200 = arith.addf %198, %199 : vector<16x64xf32>
    %201 = vector.extract_strided_slice %200 {offsets = [0, 0], sizes = [16, 32], strides = [1, 1]} : vector<16x64xf32> to vector<16x32xf32>
    %202 = vector.extract_strided_slice %200 {offsets = [0, 32], sizes = [16, 32], strides = [1, 1]} : vector<16x64xf32> to vector<16x32xf32>
    %203 = vector.extract_strided_slice %194 {offsets = [0, 0], sizes = [8, 32], strides = [1, 1]} : vector<16x32xf32> to vector<8x32xf32>
    %204 = vector.extract_strided_slice %201 {offsets = [0, 0], sizes = [8, 32], strides = [1, 1]} : vector<16x32xf32> to vector<8x32xf32>
    %205 = vector.extract_strided_slice %202 {offsets = [0, 0], sizes = [8, 32], strides = [1, 1]} : vector<16x32xf32> to vector<8x32xf32>
    %206 = vector.extract_strided_slice %203 {offsets = [0, 0], sizes = [8, 8], strides = [1, 1]} : vector<8x32xf32> to vector<8x8xf32>
    %207 = vector.extract_strided_slice %203 {offsets = [0, 8], sizes = [8, 8], strides = [1, 1]} : vector<8x32xf32> to vector<8x8xf32>
    %208 = vector.extract_strided_slice %203 {offsets = [0, 16], sizes = [8, 8], strides = [1, 1]} : vector<8x32xf32> to vector<8x8xf32>
    %209 = vector.extract_strided_slice %203 {offsets = [0, 24], sizes = [8, 8], strides = [1, 1]} : vector<8x32xf32> to vector<8x8xf32>
    %210 = vector.shape_cast %206 : vector<8x8xf32> to vector<1x8x8xf32>
    %211 = vector.shape_cast %207 : vector<8x8xf32> to vector<1x8x8xf32>
    %212 = vector.shape_cast %208 : vector<8x8xf32> to vector<1x8x8xf32>
    %213 = vector.shape_cast %209 : vector<8x8xf32> to vector<1x8x8xf32>
    %214 = tpu.concatenate %210, %211, %212, %213 in 0 : vector<1x8x8xf32>, vector<1x8x8xf32>, vector<1x8x8xf32>, vector<1x8x8xf32> -> vector<4x8x8xf32>
    %215 = arith.truncf %214 : vector<4x8x8xf32> to vector<4x8x8xbf16>
    %216 = vector.extract_strided_slice %204 {offsets = [0, 0], sizes = [8, 8], strides = [1, 1]} : vector<8x32xf32> to vector<8x8xf32>
    %217 = vector.extract_strided_slice %204 {offsets = [0, 8], sizes = [8, 8], strides = [1, 1]} : vector<8x32xf32> to vector<8x8xf32>
    %218 = vector.extract_strided_slice %204 {offsets = [0, 16], sizes = [8, 8], strides = [1, 1]} : vector<8x32xf32> to vector<8x8xf32>
    %219 = vector.extract_strided_slice %204 {offsets = [0, 24], sizes = [8, 8], strides = [1, 1]} : vector<8x32xf32> to vector<8x8xf32>
    %220 = vector.shape_cast %216 : vector<8x8xf32> to vector<1x8x8xf32>
    %221 = vector.shape_cast %217 : vector<8x8xf32> to vector<1x8x8xf32>
    %222 = vector.shape_cast %218 : vector<8x8xf32> to vector<1x8x8xf32>
    %223 = vector.shape_cast %219 : vector<8x8xf32> to vector<1x8x8xf32>
    %224 = tpu.concatenate %220, %221, %222, %223 in 0 : vector<1x8x8xf32>, vector<1x8x8xf32>, vector<1x8x8xf32>, vector<1x8x8xf32> -> vector<4x8x8xf32>
    %225 = arith.truncf %224 : vector<4x8x8xf32> to vector<4x8x8xbf16>
    %226 = vector.extract_strided_slice %205 {offsets = [0, 0], sizes = [8, 8], strides = [1, 1]} : vector<8x32xf32> to vector<8x8xf32>
    %227 = vector.extract_strided_slice %205 {offsets = [0, 8], sizes = [8, 8], strides = [1, 1]} : vector<8x32xf32> to vector<8x8xf32>
    %228 = vector.extract_strided_slice %205 {offsets = [0, 16], sizes = [8, 8], strides = [1, 1]} : vector<8x32xf32> to vector<8x8xf32>
    %229 = vector.extract_strided_slice %205 {offsets = [0, 24], sizes = [8, 8], strides = [1, 1]} : vector<8x32xf32> to vector<8x8xf32>
    %230 = vector.shape_cast %226 : vector<8x8xf32> to vector<1x8x8xf32>
    %231 = vector.shape_cast %227 : vector<8x8xf32> to vector<1x8x8xf32>
    %232 = vector.shape_cast %228 : vector<8x8xf32> to vector<1x8x8xf32>
    %233 = vector.shape_cast %229 : vector<8x8xf32> to vector<1x8x8xf32>
    %234 = tpu.concatenate %230, %231, %232, %233 in 0 : vector<1x8x8xf32>, vector<1x8x8xf32>, vector<1x8x8xf32>, vector<1x8x8xf32> -> vector<4x8x8xf32>
    %235 = arith.truncf %234 : vector<4x8x8xf32> to vector<4x8x8xbf16>
    "tpu.trace_start"() <{level = 10 : i32, message = "hqd,hkd->hqk"}> : () -> ()
    %cst_49 = arith.constant dense<0.000000e+00> : vector<4x8x8xf32>
    %236 = tpu.matmul %215, %225, %cst_49 {dimension_numbers = #tpu.dot_dimension_numbers<[2], [2], [1], [1], [0, 0, 0, 1, 1, 1], [0], [0]>} : vector<4x8x8xbf16>, vector<4x8x8xbf16>, vector<4x8x8xf32> -> vector<4x8x8xf32>
    "tpu.trace_stop"() : () -> ()
    %cst_50 = arith.constant dense<0xFF800000> : vector<4x8xf32>
    %237 = vector.multi_reduction <maximumf>, %236, %cst_50 [2] : vector<4x8x8xf32> to vector<4x8xf32>
    %238 = vector.shape_cast %237 : vector<4x8xf32> to vector<4x8x1xf32>
    %239 = vector.broadcast %238 : vector<4x8x1xf32> to vector<4x8x8xf32>
    %240 = arith.subf %236, %239 : vector<4x8x8xf32>
    %241 = math.exp %240 : vector<4x8x8xf32>
    %cst_51 = arith.constant dense<0.000000e+00> : vector<4x8xf32>
    %242 = vector.multi_reduction <add>, %241, %cst_51 [2] : vector<4x8x8xf32> to vector<4x8xf32>
    %243 = vector.shape_cast %242 : vector<4x8xf32> to vector<4x8x1xf32>
    %244 = tpu.reciprocal %243 {approx = true} : vector<4x8x1xf32> -> vector<4x8x1xf32>
    %245 = vector.broadcast %244 : vector<4x8x1xf32> to vector<4x8x8xf32>
    %246 = arith.mulf %241, %245 : vector<4x8x8xf32>
    %247 = arith.truncf %246 : vector<4x8x8xf32> to vector<4x8x8xbf16>
    "tpu.trace_start"() <{level = 10 : i32, message = "hqk,hkd->hqd"}> : () -> ()
    %cst_52 = arith.constant dense<0.000000e+00> : vector<4x8x8xf32>
    %248 = tpu.matmul %247, %235, %cst_52 {dimension_numbers = #tpu.dot_dimension_numbers<[2], [1], [1], [2], [0, 0, 0, 1, 1, 2], [0], [0]>} : vector<4x8x8xbf16>, vector<4x8x8xbf16>, vector<4x8x8xf32> -> vector<4x8x8xf32>
    "tpu.trace_stop"() : () -> ()
    %249 = vector.extract_strided_slice %248 {offsets = [0, 0, 0], sizes = [1, 8, 8], strides = [1, 1, 1]} : vector<4x8x8xf32> to vector<1x8x8xf32>
    %250 = vector.shape_cast %249 : vector<1x8x8xf32> to vector<8x8xf32>
    %251 = vector.extract_strided_slice %248 {offsets = [1, 0, 0], sizes = [1, 8, 8], strides = [1, 1, 1]} : vector<4x8x8xf32> to vector<1x8x8xf32>
    %252 = vector.shape_cast %251 : vector<1x8x8xf32> to vector<8x8xf32>
    %253 = vector.extract_strided_slice %248 {offsets = [2, 0, 0], sizes = [1, 8, 8], strides = [1, 1, 1]} : vector<4x8x8xf32> to vector<1x8x8xf32>
    %254 = vector.shape_cast %253 : vector<1x8x8xf32> to vector<8x8xf32>
    %255 = vector.extract_strided_slice %248 {offsets = [3, 0, 0], sizes = [1, 8, 8], strides = [1, 1, 1]} : vector<4x8x8xf32> to vector<1x8x8xf32>
    %256 = vector.shape_cast %255 : vector<1x8x8xf32> to vector<8x8xf32>
    %257 = tpu.concatenate %250, %252, %254, %256 in 1 : vector<8x8xf32>, vector<8x8xf32>, vector<8x8xf32>, vector<8x8xf32> -> vector<8x32xf32>
    %258 = vector.extract_strided_slice %194 {offsets = [8, 0], sizes = [8, 32], strides = [1, 1]} : vector<16x32xf32> to vector<8x32xf32>
    %259 = vector.extract_strided_slice %201 {offsets = [8, 0], sizes = [8, 32], strides = [1, 1]} : vector<16x32xf32> to vector<8x32xf32>
    %260 = vector.extract_strided_slice %202 {offsets = [8, 0], sizes = [8, 32], strides = [1, 1]} : vector<16x32xf32> to vector<8x32xf32>
    %261 = vector.extract_strided_slice %258 {offsets = [0, 0], sizes = [8, 8], strides = [1, 1]} : vector<8x32xf32> to vector<8x8xf32>
    %262 = vector.extract_strided_slice %258 {offsets = [0, 8], sizes = [8, 8], strides = [1, 1]} : vector<8x32xf32> to vector<8x8xf32>
    %263 = vector.extract_strided_slice %258 {offsets = [0, 16], sizes = [8, 8], strides = [1, 1]} : vector<8x32xf32> to vector<8x8xf32>
    %264 = vector.extract_strided_slice %258 {offsets = [0, 24], sizes = [8, 8], strides = [1, 1]} : vector<8x32xf32> to vector<8x8xf32>
    %265 = vector.shape_cast %261 : vector<8x8xf32> to vector<1x8x8xf32>
    %266 = vector.shape_cast %262 : vector<8x8xf32> to vector<1x8x8xf32>
    %267 = vector.shape_cast %263 : vector<8x8xf32> to vector<1x8x8xf32>
    %268 = vector.shape_cast %264 : vector<8x8xf32> to vector<1x8x8xf32>
    %269 = tpu.concatenate %265, %266, %267, %268 in 0 : vector<1x8x8xf32>, vector<1x8x8xf32>, vector<1x8x8xf32>, vector<1x8x8xf32> -> vector<4x8x8xf32>
    %270 = arith.truncf %269 : vector<4x8x8xf32> to vector<4x8x8xbf16>
    %271 = vector.extract_strided_slice %259 {offsets = [0, 0], sizes = [8, 8], strides = [1, 1]} : vector<8x32xf32> to vector<8x8xf32>
    %272 = vector.extract_strided_slice %259 {offsets = [0, 8], sizes = [8, 8], strides = [1, 1]} : vector<8x32xf32> to vector<8x8xf32>
    %273 = vector.extract_strided_slice %259 {offsets = [0, 16], sizes = [8, 8], strides = [1, 1]} : vector<8x32xf32> to vector<8x8xf32>
    %274 = vector.extract_strided_slice %259 {offsets = [0, 24], sizes = [8, 8], strides = [1, 1]} : vector<8x32xf32> to vector<8x8xf32>
    %275 = vector.shape_cast %271 : vector<8x8xf32> to vector<1x8x8xf32>
    %276 = vector.shape_cast %272 : vector<8x8xf32> to vector<1x8x8xf32>
    %277 = vector.shape_cast %273 : vector<8x8xf32> to vector<1x8x8xf32>
    %278 = vector.shape_cast %274 : vector<8x8xf32> to vector<1x8x8xf32>
    %279 = tpu.concatenate %275, %276, %277, %278 in 0 : vector<1x8x8xf32>, vector<1x8x8xf32>, vector<1x8x8xf32>, vector<1x8x8xf32> -> vector<4x8x8xf32>
    %280 = arith.truncf %279 : vector<4x8x8xf32> to vector<4x8x8xbf16>
    %281 = vector.extract_strided_slice %260 {offsets = [0, 0], sizes = [8, 8], strides = [1, 1]} : vector<8x32xf32> to vector<8x8xf32>
    %282 = vector.extract_strided_slice %260 {offsets = [0, 8], sizes = [8, 8], strides = [1, 1]} : vector<8x32xf32> to vector<8x8xf32>
    %283 = vector.extract_strided_slice %260 {offsets = [0, 16], sizes = [8, 8], strides = [1, 1]} : vector<8x32xf32> to vector<8x8xf32>
    %284 = vector.extract_strided_slice %260 {offsets = [0, 24], sizes = [8, 8], strides = [1, 1]} : vector<8x32xf32> to vector<8x8xf32>
    %285 = vector.shape_cast %281 : vector<8x8xf32> to vector<1x8x8xf32>
    %286 = vector.shape_cast %282 : vector<8x8xf32> to vector<1x8x8xf32>
    %287 = vector.shape_cast %283 : vector<8x8xf32> to vector<1x8x8xf32>
    %288 = vector.shape_cast %284 : vector<8x8xf32> to vector<1x8x8xf32>
    %289 = tpu.concatenate %285, %286, %287, %288 in 0 : vector<1x8x8xf32>, vector<1x8x8xf32>, vector<1x8x8xf32>, vector<1x8x8xf32> -> vector<4x8x8xf32>
    %290 = arith.truncf %289 : vector<4x8x8xf32> to vector<4x8x8xbf16>
    "tpu.trace_start"() <{level = 10 : i32, message = "hqd,hkd->hqk"}> : () -> ()
    %cst_53 = arith.constant dense<0.000000e+00> : vector<4x8x8xf32>
    %291 = tpu.matmul %270, %280, %cst_53 {dimension_numbers = #tpu.dot_dimension_numbers<[2], [2], [1], [1], [0, 0, 0, 1, 1, 1], [0], [0]>} : vector<4x8x8xbf16>, vector<4x8x8xbf16>, vector<4x8x8xf32> -> vector<4x8x8xf32>
    "tpu.trace_stop"() : () -> ()
    %cst_54 = arith.constant dense<0xFF800000> : vector<4x8xf32>
    %292 = vector.multi_reduction <maximumf>, %291, %cst_54 [2] : vector<4x8x8xf32> to vector<4x8xf32>
    %293 = vector.shape_cast %292 : vector<4x8xf32> to vector<4x8x1xf32>
    %294 = vector.broadcast %293 : vector<4x8x1xf32> to vector<4x8x8xf32>
    %295 = arith.subf %291, %294 : vector<4x8x8xf32>
    %296 = math.exp %295 : vector<4x8x8xf32>
    %cst_55 = arith.constant dense<0.000000e+00> : vector<4x8xf32>
    %297 = vector.multi_reduction <add>, %296, %cst_55 [2] : vector<4x8x8xf32> to vector<4x8xf32>
    %298 = vector.shape_cast %297 : vector<4x8xf32> to vector<4x8x1xf32>
    %299 = tpu.reciprocal %298 {approx = true} : vector<4x8x1xf32> -> vector<4x8x1xf32>
    %300 = vector.broadcast %299 : vector<4x8x1xf32> to vector<4x8x8xf32>
    %301 = arith.mulf %296, %300 : vector<4x8x8xf32>
    %302 = arith.truncf %301 : vector<4x8x8xf32> to vector<4x8x8xbf16>
    "tpu.trace_start"() <{level = 10 : i32, message = "hqk,hkd->hqd"}> : () -> ()
    %cst_56 = arith.constant dense<0.000000e+00> : vector<4x8x8xf32>
    %303 = tpu.matmul %302, %290, %cst_56 {dimension_numbers = #tpu.dot_dimension_numbers<[2], [1], [1], [2], [0, 0, 0, 1, 1, 2], [0], [0]>} : vector<4x8x8xbf16>, vector<4x8x8xbf16>, vector<4x8x8xf32> -> vector<4x8x8xf32>
    "tpu.trace_stop"() : () -> ()
    %304 = vector.extract_strided_slice %303 {offsets = [0, 0, 0], sizes = [1, 8, 8], strides = [1, 1, 1]} : vector<4x8x8xf32> to vector<1x8x8xf32>
    %305 = vector.shape_cast %304 : vector<1x8x8xf32> to vector<8x8xf32>
    %306 = vector.extract_strided_slice %303 {offsets = [1, 0, 0], sizes = [1, 8, 8], strides = [1, 1, 1]} : vector<4x8x8xf32> to vector<1x8x8xf32>
    %307 = vector.shape_cast %306 : vector<1x8x8xf32> to vector<8x8xf32>
    %308 = vector.extract_strided_slice %303 {offsets = [2, 0, 0], sizes = [1, 8, 8], strides = [1, 1, 1]} : vector<4x8x8xf32> to vector<1x8x8xf32>
    %309 = vector.shape_cast %308 : vector<1x8x8xf32> to vector<8x8xf32>
    %310 = vector.extract_strided_slice %303 {offsets = [3, 0, 0], sizes = [1, 8, 8], strides = [1, 1, 1]} : vector<4x8x8xf32> to vector<1x8x8xf32>
    %311 = vector.shape_cast %310 : vector<1x8x8xf32> to vector<8x8xf32>
    %312 = tpu.concatenate %305, %307, %309, %311 in 1 : vector<8x8xf32>, vector<8x8xf32>, vector<8x8xf32>, vector<8x8xf32> -> vector<8x32xf32>
    %313 = tpu.concatenate %257, %312 in 0 : vector<8x32xf32>, vector<8x32xf32> -> vector<16x32xf32>
    %c0_57 = arith.constant 0 : index
    %c0_58 = arith.constant 0 : index
    %314 = vector.load %arg13[%c0_57, %c0_58] : memref<32x32xbf16, #tpu.memory_space<vmem>>, vector<32x32xbf16>
    %c0_59 = arith.constant 0 : index
    %c0_60 = arith.constant 0 : index
    %315 = vector.load %arg14[%c0_59, %c0_60] : memref<1x32xf32, #tpu.memory_space<vmem>>, vector<1x32xf32>
    %316 = arith.truncf %313 : vector<16x32xf32> to vector<16x32xbf16>
    %cst_61 = arith.constant dense<0.000000e+00> : vector<16x32xf32>
    %317 = tpu.matmul %316, %314, %cst_61 {dimension_numbers = #tpu.dot_dimension_numbers<[1], [0], [0], [1], [0, 0, 1, 1], [], []>} : vector<16x32xbf16>, vector<32x32xbf16>, vector<16x32xf32> -> vector<16x32xf32>
    %318 = vector.broadcast %315 : vector<1x32xf32> to vector<16x32xf32>
    %319 = arith.addf %317, %318 : vector<16x32xf32>
    %320 = arith.addf %170, %319 : vector<16x32xf32>
    %cst_62 = arith.constant dense<0.000000e+00> : vector<16xf32>
    %321 = vector.multi_reduction <add>, %320, %cst_62 [1] : vector<16x32xf32> to vector<16xf32>
    %322 = vector.shape_cast %321 : vector<16xf32> to vector<16x1xf32>
    %cst_63 = arith.constant 3.200000e+01 : f32
    %323 = vector.broadcast %cst_63 : f32 to vector<16x1xf32>
    %324 = arith.divf %322, %323 : vector<16x1xf32>
    %325 = vector.broadcast %324 : vector<16x1xf32> to vector<16x32xf32>
    %326 = arith.subf %320, %325 : vector<16x32xf32>
    %327 = arith.mulf %326, %326 : vector<16x32xf32>
    %cst_64 = arith.constant dense<0.000000e+00> : vector<16xf32>
    %328 = vector.multi_reduction <add>, %327, %cst_64 [1] : vector<16x32xf32> to vector<16xf32>
    %329 = vector.shape_cast %328 : vector<16xf32> to vector<16x1xf32>
    %cst_65 = arith.constant 3.200000e+01 : f32
    %330 = vector.broadcast %cst_65 : f32 to vector<16x1xf32>
    %331 = arith.divf %329, %330 : vector<16x1xf32>
    %332 = vector.broadcast %324 : vector<16x1xf32> to vector<16x32xf32>
    %333 = arith.subf %320, %332 : vector<16x32xf32>
    %cst_66 = arith.constant 9.99999974E-6 : f32
    %334 = vector.broadcast %cst_66 : f32 to vector<16x1xf32>
    %335 = arith.addf %331, %334 : vector<16x1xf32>
    %336 = math.rsqrt %335 : vector<16x1xf32>
    %337 = vector.broadcast %336 : vector<16x1xf32> to vector<16x32xf32>
    %338 = arith.mulf %333, %337 : vector<16x32xf32>
    %c0_67 = arith.constant 0 : index
    %c0_68 = arith.constant 0 : index
    %339 = vector.load %arg15[%c0_67, %c0_68] : memref<32x32xbf16, #tpu.memory_space<vmem>>, vector<32x32xbf16>
    %c0_69 = arith.constant 0 : index
    %c0_70 = arith.constant 0 : index
    %340 = vector.load %arg16[%c0_69, %c0_70] : memref<1x32xf32, #tpu.memory_space<vmem>>, vector<1x32xf32>
    %341 = arith.truncf %338 : vector<16x32xf32> to vector<16x32xbf16>
    %cst_71 = arith.constant dense<0.000000e+00> : vector<16x32xf32>
    %342 = tpu.matmul %341, %339, %cst_71 {dimension_numbers = #tpu.dot_dimension_numbers<[1], [0], [0], [1], [0, 0, 1, 1], [], []>} : vector<16x32xbf16>, vector<32x32xbf16>, vector<16x32xf32> -> vector<16x32xf32>
    %343 = vector.broadcast %340 : vector<1x32xf32> to vector<16x32xf32>
    %344 = arith.addf %342, %343 : vector<16x32xf32>
    %cst_72 = arith.constant 0.000000e+00 : f32
    %345 = vector.broadcast %cst_72 : f32 to vector<16x32xf32>
    %346 = arith.maximumf %344, %345 : vector<16x32xf32>
    %c0_73 = arith.constant 0 : index
    %c0_74 = arith.constant 0 : index
    %347 = vector.load %arg17[%c0_73, %c0_74] : memref<32x32xbf16, #tpu.memory_space<vmem>>, vector<32x32xbf16>
    %c0_75 = arith.constant 0 : index
    %c0_76 = arith.constant 0 : index
    %348 = vector.load %arg18[%c0_75, %c0_76] : memref<1x32xf32, #tpu.memory_space<vmem>>, vector<1x32xf32>
    %349 = arith.truncf %346 : vector<16x32xf32> to vector<16x32xbf16>
    %cst_77 = arith.constant dense<0.000000e+00> : vector<16x32xf32>
    %350 = tpu.matmul %349, %347, %cst_77 {dimension_numbers = #tpu.dot_dimension_numbers<[1], [0], [0], [1], [0, 0, 1, 1], [], []>} : vector<16x32xbf16>, vector<32x32xbf16>, vector<16x32xf32> -> vector<16x32xf32>
    %351 = vector.broadcast %348 : vector<1x32xf32> to vector<16x32xf32>
    %352 = arith.addf %350, %351 : vector<16x32xf32>
    %353 = arith.addf %320, %352 : vector<16x32xf32>
    %cst_78 = arith.constant dense<0.000000e+00> : vector<16xf32>
    %354 = vector.multi_reduction <add>, %353, %cst_78 [1] : vector<16x32xf32> to vector<16xf32>
    %355 = vector.shape_cast %354 : vector<16xf32> to vector<16x1xf32>
    %cst_79 = arith.constant 3.200000e+01 : f32
    %356 = vector.broadcast %cst_79 : f32 to vector<16x1xf32>
    %357 = arith.divf %355, %356 : vector<16x1xf32>
    %358 = vector.broadcast %357 : vector<16x1xf32> to vector<16x32xf32>
    %359 = arith.subf %353, %358 : vector<16x32xf32>
    %360 = arith.mulf %359, %359 : vector<16x32xf32>
    %cst_80 = arith.constant dense<0.000000e+00> : vector<16xf32>
    %361 = vector.multi_reduction <add>, %360, %cst_80 [1] : vector<16x32xf32> to vector<16xf32>
    %362 = vector.shape_cast %361 : vector<16xf32> to vector<16x1xf32>
    %cst_81 = arith.constant 3.200000e+01 : f32
    %363 = vector.broadcast %cst_81 : f32 to vector<16x1xf32>
    %364 = arith.divf %362, %363 : vector<16x1xf32>
    %365 = vector.broadcast %357 : vector<16x1xf32> to vector<16x32xf32>
    %366 = arith.subf %353, %365 : vector<16x32xf32>
    %cst_82 = arith.constant 9.99999974E-6 : f32
    %367 = vector.broadcast %cst_82 : f32 to vector<16x1xf32>
    %368 = arith.addf %364, %367 : vector<16x1xf32>
    %369 = math.rsqrt %368 : vector<16x1xf32>
    %370 = vector.broadcast %369 : vector<16x1xf32> to vector<16x32xf32>
    %371 = arith.mulf %366, %370 : vector<16x32xf32>
    %c0_83 = arith.constant 0 : index
    %c0_84 = arith.constant 0 : index
    %372 = vector.load %arg3[%c0_83, %c0_84] : memref<1x32xf32, #tpu.memory_space<vmem>>, vector<1x32xf32>
    %373 = vector.broadcast %372 : vector<1x32xf32> to vector<16x32xf32>
    %374 = arith.mulf %371, %373 : vector<16x32xf32>
    %c0_85 = arith.constant 0 : index
    %c0_86 = arith.constant 0 : index
    %375 = vector.load %arg4[%c0_85, %c0_86] : memref<1x32xf32, #tpu.memory_space<vmem>>, vector<1x32xf32>
    %376 = vector.broadcast %375 : vector<1x32xf32> to vector<16x32xf32>
    %377 = arith.addf %374, %376 : vector<16x32xf32>
    %378 = vector.extract_strided_slice %377 {offsets = [0, 0], sizes = [8, 32], strides = [1, 1]} : vector<16x32xf32> to vector<8x32xf32>
    %c0_87 = arith.constant 0 : index
    %c0_88 = arith.constant 0 : index
    %c0_89 = arith.constant 0 : index
    %379 = vector.load %arg19[%c0_87, %c0_88, %c0_89] : memref<2x8x32xf32, #tpu.memory_space<vmem>>, vector<1x8x32xf32>
    %380 = vector.shape_cast %379 : vector<1x8x32xf32> to vector<8x32xf32>
    %381 = vector.shape_cast %378 : vector<8x32xf32> to vector<1x8x32xf32>
    tpu.vector_store %arg19[%c0_87, %c0_88, %c0_89], %381 {strides = array<i32>} : memref<2x8x32xf32, #tpu.memory_space<vmem>>, vector<1x8x32xf32>,
    %382 = vector.extract_strided_slice %377 {offsets = [8, 0], sizes = [8, 32], strides = [1, 1]} : vector<16x32xf32> to vector<8x32xf32>
    %c1_90 = arith.constant 1 : index
    %c0_91 = arith.constant 0 : index
    %c0_92 = arith.constant 0 : index
    %383 = vector.load %arg19[%c1_90, %c0_91, %c0_92] : memref<2x8x32xf32, #tpu.memory_space<vmem>>, vector<1x8x32xf32>
    %384 = vector.shape_cast %383 : vector<1x8x32xf32> to vector<8x32xf32>
    %385 = vector.shape_cast %382 : vector<8x32xf32> to vector<1x8x32xf32>
    tpu.vector_store %arg19[%c1_90, %c0_91, %c0_92], %385 {strides = array<i32>} : memref<2x8x32xf32, #tpu.memory_space<vmem>>, vector<1x8x32xf32>,
    return
  }
  func.func @transform_0(%arg0: i32) -> (i32, i32, i32) {
    %c0_i32 = arith.constant 0 : i32
    %c0_i32_0 = arith.constant 0 : i32
    %c0_i32_1 = arith.constant 0 : i32
    return %arg0, %c0_i32, %c0_i32_0 : i32, i32, i32
  }
  func.func @transform_1(%arg0: i32) -> (i32, i32, i32) {
    %c0_i32 = arith.constant 0 : i32
    %c0_i32_0 = arith.constant 0 : i32
    %c0_i32_1 = arith.constant 0 : i32
    return %arg0, %c0_i32, %c0_i32_0 : i32, i32, i32
  }
  func.func @transform_2(%arg0: i32) -> (i32, i32) {
    %c0_i32 = arith.constant 0 : i32
    %c0_i32_0 = arith.constant 0 : i32
    %c0_i32_1 = arith.constant 0 : i32
    return %c0_i32, %c0_i32_0 : i32, i32
  }
  func.func @transform_3(%arg0: i32) -> (i32, i32) {
    %c0_i32 = arith.constant 0 : i32
    %c0_i32_0 = arith.constant 0 : i32
    %c0_i32_1 = arith.constant 0 : i32
    return %c0_i32, %c0_i32_0 : i32, i32
  }
  func.func @transform_4(%arg0: i32) -> (i32, i32) {
    %c0_i32 = arith.constant 0 : i32
    %c0_i32_0 = arith.constant 0 : i32
    %c0_i32_1 = arith.constant 0 : i32
    return %c0_i32, %c0_i32_0 : i32, i32
  }
  func.func @transform_5(%arg0: i32) -> (i32, i32) {
    %c0_i32 = arith.constant 0 : i32
    %c0_i32_0 = arith.constant 0 : i32
    %c0_i32_1 = arith.constant 0 : i32
    return %c0_i32, %c0_i32_0 : i32, i32
  }
  func.func @transform_6(%arg0: i32) -> (i32, i32) {
    %c0_i32 = arith.constant 0 : i32
    %c0_i32_0 = arith.constant 0 : i32
    %c0_i32_1 = arith.constant 0 : i32
    return %c0_i32, %c0_i32_0 : i32, i32
  }
  func.func @transform_7(%arg0: i32) -> (i32, i32) {
    %c0_i32 = arith.constant 0 : i32
    %c0_i32_0 = arith.constant 0 : i32
    %c0_i32_1 = arith.constant 0 : i32
    return %c0_i32, %c0_i32_0 : i32, i32
  }
  func.func @transform_8(%arg0: i32) -> (i32, i32) {
    %c0_i32 = arith.constant 0 : i32
    %c0_i32_0 = arith.constant 0 : i32
    %c0_i32_1 = arith.constant 0 : i32
    return %c0_i32, %c0_i32_0 : i32, i32
  }
  func.func @transform_9(%arg0: i32) -> (i32, i32) {
    %c0_i32 = arith.constant 0 : i32
    %c0_i32_0 = arith.constant 0 : i32
    %c0_i32_1 = arith.constant 0 : i32
    return %c0_i32, %c0_i32_0 : i32, i32
  }
  func.func @transform_10(%arg0: i32) -> (i32, i32) {
    %c0_i32 = arith.constant 0 : i32
    %c0_i32_0 = arith.constant 0 : i32
    %c0_i32_1 = arith.constant 0 : i32
    return %c0_i32, %c0_i32_0 : i32, i32
  }
  func.func @transform_11(%arg0: i32) -> (i32, i32) {
    %c0_i32 = arith.constant 0 : i32
    %c0_i32_0 = arith.constant 0 : i32
    %c0_i32_1 = arith.constant 0 : i32
    return %c0_i32, %c0_i32_0 : i32, i32
  }
  func.func @transform_12(%arg0: i32) -> (i32, i32) {
    %c0_i32 = arith.constant 0 : i32
    %c0_i32_0 = arith.constant 0 : i32
    %c0_i32_1 = arith.constant 0 : i32
    return %c0_i32, %c0_i32_0 : i32, i32
  }
  func.func @transform_13(%arg0: i32) -> (i32, i32) {
    %c0_i32 = arith.constant 0 : i32
    %c0_i32_0 = arith.constant 0 : i32
    %c0_i32_1 = arith.constant 0 : i32
    return %c0_i32, %c0_i32_0 : i32, i32
  }
  func.func @transform_14(%arg0: i32) -> (i32, i32) {
    %c0_i32 = arith.constant 0 : i32
    %c0_i32_0 = arith.constant 0 : i32
    %c0_i32_1 = arith.constant 0 : i32
    return %c0_i32, %c0_i32_0 : i32, i32
  }
  func.func @transform_15(%arg0: i32) -> (i32, i32) {
    %c0_i32 = arith.constant 0 : i32
    %c0_i32_0 = arith.constant 0 : i32
    %c0_i32_1 = arith.constant 0 : i32
    return %c0_i32, %c0_i32_0 : i32, i32
  }
  func.func @transform_16(%arg0: i32) -> (i32, i32) {
    %c0_i32 = arith.constant 0 : i32
    %c0_i32_0 = arith.constant 0 : i32
    %c0_i32_1 = arith.constant 0 : i32
    return %c0_i32, %c0_i32_0 : i32, i32
  }
  func.func @transform_17(%arg0: i32) -> (i32, i32) {
    %c0_i32 = arith.constant 0 : i32
    %c0_i32_0 = arith.constant 0 : i32
    %c0_i32_1 = arith.constant 0 : i32
    return %c0_i32, %c0_i32_0 : i32, i32
  }
  func.func @transform_18(%arg0: i32) -> (i32, i32, i32) {
    %c0_i32 = arith.constant 0 : i32
    %c0_i32_0 = arith.constant 0 : i32
    %c0_i32_1 = arith.constant 0 : i32
    return %arg0, %c0_i32, %c0_i32_0 : i32, i32, i32
  }
}

</mosaic_0001>

<llo_original>
// kernel: tpu_custom_call.1
$region0: #{tpu_custom_call.1}
  #allocation0 [shape = 'u32[]', space=smem, size = 0x4, offset = 0x4, fixed_abs, tag = 'smem constant byte address 0x4 - core index']
  #allocation1 [shape = 'u32[144,128]{1,0:T(1,128)}', space=vmem, size = 0x12000, scoped, tag = 'internal scratch']
  %s0 = inlined_call_operand.hbm [shape: f32[4,8,32], index: 0, kind: input, shape index: {}]
  %s1 = inlined_call_operand.hbm [shape: f32[4,8,32], index: 1, kind: input, shape index: {}]
  %s2 = inlined_call_operand.vmem [shape: f32[1,32], index: 2, kind: input, shape index: {}]
  %s3 = inlined_call_operand.vmem [shape: f32[1,32], index: 3, kind: input, shape index: {}]
  %s4 = inlined_call_operand.hbm [shape: bf16[32,96], index: 4, kind: input, shape index: {}]
  %s5 = inlined_call_operand.hbm [shape: f32[1,96], index: 5, kind: input, shape index: {}]
  %s6 = inlined_call_operand.hbm [shape: bf16[32,32], index: 6, kind: input, shape index: {}]
  %s7 = inlined_call_operand.hbm [shape: f32[1,32], index: 7, kind: input, shape index: {}]
  %s8 = inlined_call_operand.hbm [shape: bf16[32,32], index: 8, kind: input, shape index: {}]
  %s9 = inlined_call_operand.hbm [shape: f32[1,32], index: 9, kind: input, shape index: {}]
  %s10 = inlined_call_operand.vmem [shape: bf16[32,64], index: 10, kind: input, shape index: {}]
  %s11 = inlined_call_operand.vmem [shape: f32[1,64], index: 11, kind: input, shape index: {}]
  %s12 = inlined_call_operand.hbm [shape: bf16[32,32], index: 12, kind: input, shape index: {}]
  %s13 = inlined_call_operand.vmem [shape: f32[1,32], index: 13, kind: input, shape index: {}]
  %s14 = inlined_call_operand.hbm [shape: bf16[32,32], index: 14, kind: input, shape index: {}]
  %s15 = inlined_call_operand.vmem [shape: f32[1,32], index: 15, kind: input, shape index: {}]
  %s16 = inlined_call_operand.hbm [shape: bf16[32,32], index: 16, kind: input, shape index: {}]
  %s17 = inlined_call_operand.vmem [shape: f32[1,32], index: 17, kind: input, shape index: {}]
  %s18 = inlined_call_operand.hbm [shape: f32[4,8,32], index: 18, kind: output, shape index: {}]
  %s19 = sld [smem:[#allocation0]]
  $region149: #{tpu_custom_call.1} parent=0
    _
  %s21 = ssub.s32 1, %s19
  %s22 = scalar_select 0, %s21, %s19
  $region1: #{tpu_custom_call.1} parent=0
    #allocation2 [shape = 'u8[16384]{0}', space=vmem, size = 0x4000, scoped, tag = 'input window, operand 0']
    #allocation3 [shape = 's32[2]{0}', space=sflag, size = 0x8, scoped, tag = 'scoped memory for tpu_custom_call.1']
    #allocation4 [shape = 's32[2]{0}', space=sflag, size = 0x8, scoped, tag = 'scoped memory for tpu_custom_call.1']
    #allocation5 [shape = 'u8[16384]{0}', space=vmem, size = 0x4000, scoped, tag = 'input window, operand 1']
    #allocation6 [shape = 's32[2]{0}', space=sflag, size = 0x8, scoped, tag = 'scoped memory for tpu_custom_call.1']
    #allocation7 [shape = 'u8[8192]{0}', space=vmem, size = 0x2000, scoped, tag = 'input window, operand 4, single buffered']
    #allocation8 [shape = 'u8[512]{0}', space=vmem, size = 0x400, scoped, tag = 'input window, operand 5, single buffered']
    #allocation9 [shape = 's32[1]{0}', space=sflag, size = 0x4, scoped, tag = 'scoped memory for tpu_custom_call.1']
    #allocation10 [shape = 'u8[8192]{0}', space=vmem, size = 0x2000, scoped, tag = 'input window, operand 6, single buffered']
    #allocation11 [shape = 'u8[512]{0}', space=vmem, size = 0x400, scoped, tag = 'input window, operand 7, single buffered']
    #allocation12 [shape = 's32[1]{0}', space=sflag, size = 0x4, scoped, tag = 'scoped memory for tpu_custom_call.1']
    #allocation13 [shape = 'u8[8192]{0}', space=vmem, size = 0x2000, scoped, tag = 'input window, operand 8, single buffered']
    #allocation14 [shape = 'u8[512]{0}', space=vmem, size = 0x400, scoped, tag = 'input window, operand 9, single buffered']
    #allocation15 [shape = 's32[1]{0}', space=sflag, size = 0x4, scoped, tag = 'scoped memory for tpu_custom_call.1']
    #allocation16 [shape = 'u8[8192]{0}', space=vmem, size = 0x2000, scoped, tag = 'input window, operand 12, single buffered']
    #allocation17 [shape = 'u8[8192]{0}', space=vmem, size = 0x2000, scoped, tag = 'input window, operand 14, single buffered']
    #allocation18 [shape = 's32[1]{0}', space=sflag, size = 0x4, scoped, tag = 'scoped memory for tpu_custom_call.1']
    #allocation19 [shape = 'u8[8192]{0}', space=vmem, size = 0x2000, scoped, tag = 'input window, operand 16, single buffered']
    #allocation20 [shape = 'u8[16384]{0}', space=vmem, size = 0x4000, scoped, tag = 'output window, operand 0']
    %23 = vsyncpa [#allocation3], 0
    %s24 = scalar_lea.sflag [#allocation3], 1
    %25 = vsyncpa %s24, 0
    %26 = vsyncpa [#allocation6], 0
    %s27 = scalar_lea.sflag [#allocation6], 1
    %28 = vsyncpa %s27, 0
    %29 = vsyncpa [#allocation9], 0
    %30 = vsyncpa [#allocation12], 0
    %31 = vsyncpa [#allocation15], 0
    %32 = vsyncpa [#allocation18], 0
    %33 = vsyncpa [#allocation4], 0
    %s34 = scalar_lea.sflag [#allocation4], 1
    %35 = vsyncpa %s34, 0
    loop: start=0, step=1, limit=4
    $region2: #{tpu_custom_call.1} parent=1 // loop_pre_header
      _
    $region3: #{tpu_custom_call.1} parent=1 // loop_header
      %s37 = sphi 0, %s41
      %p38 = scmp.ge.s32.totalorder %s37, 4
      %s47 = sphi 0, %s49
      %s50 = sphi 0, %s47
      %s51 = sphi 0, %s50
      %s67 = sphi 0, %s51
      %s73 = sphi 0, %s75
      %s76 = sphi 0, %s73
      %s77 = sphi 0, %s76
      %s93 = sphi 0, %s77
      %s97 = sphi 0, %s97
      %s99 = sphi 0, %s97
      %s100 = sphi 0, %s99
      %s114 = sphi 0, %s100
      %s118 = sphi 0, %s118
      %s120 = sphi 0, %s118
      %s121 = sphi 0, %s120
      %s135 = sphi 0, %s121
      %s139 = sphi 0, %s139
      %s141 = sphi 0, %s139
      %s142 = sphi 0, %s141
      %s156 = sphi 0, %s142
      %s160 = sphi 0, %s160
      %s162 = sphi 0, %s160
      %s163 = sphi 0, %s162
      %s177 = sphi 0, %s163
      %s181 = sphi 0, %s181
      %s183 = sphi 0, %s181
      %s184 = sphi 0, %s183
      %s198 = sphi 0, %s184
      %s202 = sphi 0, %s202
      %s204 = sphi 0, %s202
      %s205 = sphi 0, %s204
      %s219 = sphi 0, %s205
      %s223 = sphi 0, %s223
      %s225 = sphi 0, %s223
      %s226 = sphi 0, %s225
      %s240 = sphi 0, %s226
      %s244 = sphi 0, %s244
      %s246 = sphi 0, %s244
      %s247 = sphi 0, %s246
      %s261 = sphi 0, %s247
      %s265 = sphi 0, %s265
      %s267 = sphi 0, %s265
      %s268 = sphi 0, %s267
      %s282 = sphi 0, %s268
      %s286 = sphi 0, %s286
      %s288 = sphi 0, %s286
      %s289 = sphi 0, %s288
      %s303 = sphi 0, %s289
      %s307 = sphi 0, %s307
      %s309 = sphi 0, %s307
      %s310 = sphi 0, %s309
      %s324 = sphi 0, %s310
      %s328 = sphi 0, %s328
      %s330 = sphi 0, %s328
      %s331 = sphi 0, %s330
      %s345 = sphi 0, %s331
      %s349 = sphi 0, %s349
      %s351 = sphi 0, %s349
      %s352 = sphi 0, %s351
      %s366 = sphi 0, %s352
      %s370 = sphi 0, %s370
      %s372 = sphi 0, %s370
      %s373 = sphi 0, %s372
      %s387 = sphi 0, %s373
      %s391 = sphi 0, %s391
      %s393 = sphi 0, %s391
      %s394 = sphi 0, %s393
      %s408 = sphi 0, %s394
      %s412 = sphi 0, %s412
      %s414 = sphi 0, %s412
      %s415 = sphi 0, %s414
      %s429 = sphi 0, %s415
      %s435 = sphi 0, %s437
      %s438 = sphi 0, %s435
      %s439 = sphi 0, %s438
      %s455 = sphi 0, %s439
    $region4: #{tpu_custom_call.1} parent=1 // loop_header_branch
      %40 = sbr.rel (%p38) target = $region8
    $region5: #{tpu_custom_call.1} parent=1 // loop_body
      %s42 = ssub.s32 %s37, 1
      %s43 = ssub.s32 %s37, 2
      %s44 = sadd.s32 %s37, 1
      %s45 = ssub.s32 %s37, %s44
      %p46 = scmp.eq.s32.totalorder %s45, 0
      %s48 = sadd.s32 %s47, 1
      %s49 = scalar_select %p46, %s47, %s48
      %p52 = pneg %p46
      %p53 = scmp.eq.s32.totalorder %s37, 1
      %p54 = por %p52, %p53
      %p55 = scmp.ne.s32.totalorder %s47, %s50
      %p56 = scmp.eq.s32.totalorder %s37, 0
      %p57 = por %p55, %p56
      %p58 = scmp.ne.s32.totalorder %s47, %s50
      %p59 = scmp.eq.s32.totalorder %s42, 1
      %p60 = por %p58, %p59
      %p61 = scmp.ne.s32.totalorder %s50, %s51
      %p62 = scmp.eq.s32.totalorder %s42, 0
      %p63 = por %p61, %p62
      %p64 = scmp.ne.s32.totalorder %s50, %s51
      %p65 = scmp.eq.s32.totalorder %s43, 1
      %p66 = por %p64, %p65
      %p68 = scmp.ne.s32.totalorder %s51, %s67
      %p69 = scmp.eq.s32.totalorder %s43, 0
      %p70 = por %p68, %p69
      %s71 = ssub.s32 %s37, %s44
      %p72 = scmp.eq.s32.totalorder %s71, 0
      %s74 = sadd.s32 %s73, 1
      %s75 = scalar_select %p72, %s73, %s74
      %p78 = pneg %p72
      %p79 = scmp.eq.s32.totalorder %s37, 1
      %p80 = por %p78, %p79
      %p81 = scmp.ne.s32.totalorder %s73, %s76
      %p82 = scmp.eq.s32.totalorder %s37, 0
      %p83 = por %p81, %p82
      %p84 = scmp.ne.s32.totalorder %s73, %s76
      %p85 = scmp.eq.s32.totalorder %s42, 1
      %p86 = por %p84, %p85
      %p87 = scmp.ne.s32.totalorder %s76, %s77
      %p88 = scmp.eq.s32.totalorder %s42, 0
      %p89 = por %p87, %p88
      %p90 = scmp.ne.s32.totalorder %s76, %s77
      %p91 = scmp.eq.s32.totalorder %s43, 1
      %p92 = por %p90, %p91
      %p94 = scmp.ne.s32.totalorder %s77, %s93
      %p95 = scmp.eq.s32.totalorder %s43, 0
      %p96 = por %p94, %p95
      %s98 = sadd.s32 %s97, 1
      %p101 = scmp.eq.s32.totalorder %s37, 1
      %p102 = scmp.ne.s32.totalorder %s97, %s99
      %p103 = scmp.eq.s32.totalorder %s37, 0
      %p104 = por %p102, %p103
      %p105 = scmp.ne.s32.totalorder %s97, %s99
      %p106 = scmp.eq.s32.totalorder %s42, 1
      %p107 = por %p105, %p106
      %p108 = scmp.ne.s32.totalorder %s99, %s100
      %p109 = scmp.eq.s32.totalorder %s42, 0
      %p110 = por %p108, %p109
      %p111 = scmp.ne.s32.totalorder %s99, %s100
      %p112 = scmp.eq.s32.totalorder %s43, 1
      %p113 = por %p111, %p112
      %p115 = scmp.ne.s32.totalorder %s100, %s114
      %p116 = scmp.eq.s32.totalorder %s43, 0
      %p117 = por %p115, %p116
      %s119 = sadd.s32 %s118, 1
      %p122 = scmp.eq.s32.totalorder %s37, 1
      %p123 = scmp.ne.s32.totalorder %s118, %s120
      %p124 = scmp.eq.s32.totalorder %s37, 0
      %p125 = por %p123, %p124
      %p126 = scmp.ne.s32.totalorder %s118, %s120
      %p127 = scmp.eq.s32.totalorder %s42, 1
      %p128 = por %p126, %p127
      %p129 = scmp.ne.s32.totalorder %s120, %s121
      %p130 = scmp.eq.s32.totalorder %s42, 0
      %p131 = por %p129, %p130
      %p132 = scmp.ne.s32.totalorder %s120, %s121
      %p133 = scmp.eq.s32.totalorder %s43, 1
      %p134 = por %p132, %p133
      %p136 = scmp.ne.s32.totalorder %s121, %s135
      %p137 = scmp.eq.s32.totalorder %s43, 0
      %p138 = por %p136, %p137
      %s140 = sadd.s32 %s139, 1
      %p143 = scmp.eq.s32.totalorder %s37, 1
      %p144 = scmp.ne.s32.totalorder %s139, %s141
      %p145 = scmp.eq.s32.totalorder %s37, 0
      %p146 = por %p144, %p145
      %p147 = scmp.ne.s32.totalorder %s139, %s141
      %p148 = scmp.eq.s32.totalorder %s42, 1
      %p149 = por %p147, %p148
      %p150 = scmp.ne.s32.totalorder %s141, %s142
      %p151 = scmp.eq.s32.totalorder %s42, 0
      %p152 = por %p150, %p151
      %p153 = scmp.ne.s32.totalorder %s141, %s142
      %p154 = scmp.eq.s32.totalorder %s43, 1
      %p155 = por %p153, %p154
      %p157 = scmp.ne.s32.totalorder %s142, %s156
      %p158 = scmp.eq.s32.totalorder %s43, 0
      %p159 = por %p157, %p158
      %s161 = sadd.s32 %s160, 1
      %p164 = scmp.eq.s32.totalorder %s37, 1
      %p165 = scmp.ne.s32.totalorder %s160, %s162
      %p166 = scmp.eq.s32.totalorder %s37, 0
      %p167 = por %p165, %p166
      %p168 = scmp.ne.s32.totalorder %s160, %s162
      %p169 = scmp.eq.s32.totalorder %s42, 1
      %p170 = por %p168, %p169
      %p171 = scmp.ne.s32.totalorder %s162, %s163
      %p172 = scmp.eq.s32.totalorder %s42, 0
      %p173 = por %p171, %p172
      %p174 = scmp.ne.s32.totalorder %s162, %s163
      %p175 = scmp.eq.s32.totalorder %s43, 1
      %p176 = por %p174, %p175
      %p178 = scmp.ne.s32.totalorder %s163, %s177
      %p179 = scmp.eq.s32.totalorder %s43, 0
      %p180 = por %p178, %p179
      %s182 = sadd.s32 %s181, 1
      %p185 = scmp.eq.s32.totalorder %s37, 1
      %p186 = scmp.ne.s32.totalorder %s181, %s183
      %p187 = scmp.eq.s32.totalorder %s37, 0
      %p188 = por %p186, %p187
      %p189 = scmp.ne.s32.totalorder %s181, %s183
      %p190 = scmp.eq.s32.totalorder %s42, 1
      %p191 = por %p189, %p190
      %p192 = scmp.ne.s32.totalorder %s183, %s184
      %p193 = scmp.eq.s32.totalorder %s42, 0
      %p194 = por %p192, %p193
      %p195 = scmp.ne.s32.totalorder %s183, %s184
      %p196 = scmp.eq.s32.totalorder %s43, 1
      %p197 = por %p195, %p196
      %p199 = scmp.ne.s32.totalorder %s184, %s198
      %p200 = scmp.eq.s32.totalorder %s43, 0
      %p201 = por %p199, %p200
      %s203 = sadd.s32 %s202, 1
      %p206 = scmp.eq.s32.totalorder %s37, 1
      %p207 = scmp.ne.s32.totalorder %s202, %s204
      %p208 = scmp.eq.s32.totalorder %s37, 0
      %p209 = por %p207, %p208
      %p210 = scmp.ne.s32.totalorder %s202, %s204
      %p211 = scmp.eq.s32.totalorder %s42, 1
      %p212 = por %p210, %p211
      %p213 = scmp.ne.s32.totalorder %s204, %s205
      %p214 = scmp.eq.s32.totalorder %s42, 0
      %p215 = por %p213, %p214
      %p216 = scmp.ne.s32.totalorder %s204, %s205
      %p217 = scmp.eq.s32.totalorder %s43, 1
      %p218 = por %p216, %p217
      %p220 = scmp.ne.s32.totalorder %s205, %s219
      %p221 = scmp.eq.s32.totalorder %s43, 0
      %p222 = por %p220, %p221
      %s224 = sadd.s32 %s223, 1
      %p227 = scmp.eq.s32.totalorder %s37, 1
      %p228 = scmp.ne.s32.totalorder %s223, %s225
      %p229 = scmp.eq.s32.totalorder %s37, 0
      %p230 = por %p228, %p229
      %p231 = scmp.ne.s32.totalorder %s223, %s225
      %p232 = scmp.eq.s32.totalorder %s42, 1
      %p233 = por %p231, %p232
      %p234 = scmp.ne.s32.totalorder %s225, %s226
      %p235 = scmp.eq.s32.totalorder %s42, 0
      %p236 = por %p234, %p235
      %p237 = scmp.ne.s32.totalorder %s225, %s226
      %p238 = scmp.eq.s32.totalorder %s43, 1
      %p239 = por %p237, %p238
      %p241 = scmp.ne.s32.totalorder %s226, %s240
      %p242 = scmp.eq.s32.totalorder %s43, 0
      %p243 = por %p241, %p242
      %s245 = sadd.s32 %s244, 1
      %p248 = scmp.eq.s32.totalorder %s37, 1
      %p249 = scmp.ne.s32.totalorder %s244, %s246
      %p250 = scmp.eq.s32.totalorder %s37, 0
      %p251 = por %p249, %p250
      %p252 = scmp.ne.s32.totalorder %s244, %s246
      %p253 = scmp.eq.s32.totalorder %s42, 1
      %p254 = por %p252, %p253
      %p255 = scmp.ne.s32.totalorder %s246, %s247
      %p256 = scmp.eq.s32.totalorder %s42, 0
      %p257 = por %p255, %p256
      %p258 = scmp.ne.s32.totalorder %s246, %s247
      %p259 = scmp.eq.s32.totalorder %s43, 1
      %p260 = por %p258, %p259
      %p262 = scmp.ne.s32.totalorder %s247, %s261
      %p263 = scmp.eq.s32.totalorder %s43, 0
      %p264 = por %p262, %p263
      %s266 = sadd.s32 %s265, 1
      %p269 = scmp.eq.s32.totalorder %s37, 1
      %p270 = scmp.ne.s32.totalorder %s265, %s267
      %p271 = scmp.eq.s32.totalorder %s37, 0
      %p272 = por %p270, %p271
      %p273 = scmp.ne.s32.totalorder %s265, %s267
      %p274 = scmp.eq.s32.totalorder %s42, 1
      %p275 = por %p273, %p274
      %p276 = scmp.ne.s32.totalorder %s267, %s268
      %p277 = scmp.eq.s32.totalorder %s42, 0
      %p278 = por %p276, %p277
      %p279 = scmp.ne.s32.totalorder %s267, %s268
      %p280 = scmp.eq.s32.totalorder %s43, 1
      %p281 = por %p279, %p280
      %p283 = scmp.ne.s32.totalorder %s268, %s282
      %p284 = scmp.eq.s32.totalorder %s43, 0
      %p285 = por %p283, %p284
      %s287 = sadd.s32 %s286, 1
      %p290 = scmp.eq.s32.totalorder %s37, 1
      %p291 = scmp.ne.s32.totalorder %s286, %s288
      %p292 = scmp.eq.s32.totalorder %s37, 0
      %p293 = por %p291, %p292
      %p294 = scmp.ne.s32.totalorder %s286, %s288
      %p295 = scmp.eq.s32.totalorder %s42, 1
      %p296 = por %p294, %p295
      %p297 = scmp.ne.s32.totalorder %s288, %s289
      %p298 = scmp.eq.s32.totalorder %s42, 0
      %p299 = por %p297, %p298
      %p300 = scmp.ne.s32.totalorder %s288, %s289
      %p301 = scmp.eq.s32.totalorder %s43, 1
      %p302 = por %p300, %p301
      %p304 = scmp.ne.s32.totalorder %s289, %s303
      %p305 = scmp.eq.s32.totalorder %s43, 0
      %p306 = por %p304, %p305
      %s308 = sadd.s32 %s307, 1
      %p311 = scmp.eq.s32.totalorder %s37, 1
      %p312 = scmp.ne.s32.totalorder %s307, %s309
      %p313 = scmp.eq.s32.totalorder %s37, 0
      %p314 = por %p312, %p313
      %p315 = scmp.ne.s32.totalorder %s307, %s309
      %p316 = scmp.eq.s32.totalorder %s42, 1
      %p317 = por %p315, %p316
      %p318 = scmp.ne.s32.totalorder %s309, %s310
      %p319 = scmp.eq.s32.totalorder %s42, 0
      %p320 = por %p318, %p319
      %p321 = scmp.ne.s32.totalorder %s309, %s310
      %p322 = scmp.eq.s32.totalorder %s43, 1
      %p323 = por %p321, %p322
      %p325 = scmp.ne.s32.totalorder %s310, %s324
      %p326 = scmp.eq.s32.totalorder %s43, 0
      %p327 = por %p325, %p326
      %s329 = sadd.s32 %s328, 1
      %p332 = scmp.eq.s32.totalorder %s37, 1
      %p333 = scmp.ne.s32.totalorder %s328, %s330
      %p334 = scmp.eq.s32.totalorder %s37, 0
      %p335 = por %p333, %p334
      %p336 = scmp.ne.s32.totalorder %s328, %s330
      %p337 = scmp.eq.s32.totalorder %s42, 1
      %p338 = por %p336, %p337
      %p339 = scmp.ne.s32.totalorder %s330, %s331
      %p340 = scmp.eq.s32.totalorder %s42, 0
      %p341 = por %p339, %p340
      %p342 = scmp.ne.s32.totalorder %s330, %s331
      %p343 = scmp.eq.s32.totalorder %s43, 1
      %p344 = por %p342, %p343
      %p346 = scmp.ne.s32.totalorder %s331, %s345
      %p347 = scmp.eq.s32.totalorder %s43, 0
      %p348 = por %p346, %p347
      %s350 = sadd.s32 %s349, 1
      %p353 = scmp.eq.s32.totalorder %s37, 1
      %p354 = scmp.ne.s32.totalorder %s349, %s351
      %p355 = scmp.eq.s32.totalorder %s37, 0
      %p356 = por %p354, %p355
      %p357 = scmp.ne.s32.totalorder %s349, %s351
      %p358 = scmp.eq.s32.totalorder %s42, 1
      %p359 = por %p357, %p358
      %p360 = scmp.ne.s32.totalorder %s351, %s352
      %p361 = scmp.eq.s32.totalorder %s42, 0
      %p362 = por %p360, %p361
      %p363 = scmp.ne.s32.totalorder %s351, %s352
      %p364 = scmp.eq.s32.totalorder %s43, 1
      %p365 = por %p363, %p364
      %p367 = scmp.ne.s32.totalorder %s352, %s366
      %p368 = scmp.eq.s32.totalorder %s43, 0
      %p369 = por %p367, %p368
      %s371 = sadd.s32 %s370, 1
      %p374 = scmp.eq.s32.totalorder %s37, 1
      %p375 = scmp.ne.s32.totalorder %s370, %s372
      %p376 = scmp.eq.s32.totalorder %s37, 0
      %p377 = por %p375, %p376
      %p378 = scmp.ne.s32.totalorder %s370, %s372
      %p379 = scmp.eq.s32.totalorder %s42, 1
      %p380 = por %p378, %p379
      %p381 = scmp.ne.s32.totalorder %s372, %s373
      %p382 = scmp.eq.s32.totalorder %s42, 0
      %p383 = por %p381, %p382
      %p384 = scmp.ne.s32.totalorder %s372, %s373
      %p385 = scmp.eq.s32.totalorder %s43, 1
      %p386 = por %p384, %p385
      %p388 = scmp.ne.s32.totalorder %s373, %s387
      %p389 = scmp.eq.s32.totalorder %s43, 0
      %p390 = por %p388, %p389
      %s392 = sadd.s32 %s391, 1
      %p395 = scmp.eq.s32.totalorder %s37, 1
      %p396 = scmp.ne.s32.totalorder %s391, %s393
      %p397 = scmp.eq.s32.totalorder %s37, 0
      %p398 = por %p396, %p397
      %p399 = scmp.ne.s32.totalorder %s391, %s393
      %p400 = scmp.eq.s32.totalorder %s42, 1
      %p401 = por %p399, %p400
      %p402 = scmp.ne.s32.totalorder %s393, %s394
      %p403 = scmp.eq.s32.totalorder %s42, 0
      %p404 = por %p402, %p403
      %p405 = scmp.ne.s32.totalorder %s393, %s394
      %p406 = scmp.eq.s32.totalorder %s43, 1
      %p407 = por %p405, %p406
      %p409 = scmp.ne.s32.totalorder %s394, %s408
      %p410 = scmp.eq.s32.totalorder %s43, 0
      %p411 = por %p409, %p410
      %s413 = sadd.s32 %s412, 1
      %p416 = scmp.eq.s32.totalorder %s37, 1
      %p417 = scmp.ne.s32.totalorder %s412, %s414
      %p418 = scmp.eq.s32.totalorder %s37, 0
      %p419 = por %p417, %p418
      %p420 = scmp.ne.s32.totalorder %s412, %s414
      %p421 = scmp.eq.s32.totalorder %s42, 1
      %p422 = por %p420, %p421
      %p423 = scmp.ne.s32.totalorder %s414, %s415
      %p424 = scmp.eq.s32.totalorder %s42, 0
      %p425 = por %p423, %p424
      %p426 = scmp.ne.s32.totalorder %s414, %s415
      %p427 = scmp.eq.s32.totalorder %s43, 1
      %p428 = por %p426, %p427
      %p430 = scmp.ne.s32.totalorder %s415, %s429
      %p431 = scmp.eq.s32.totalorder %s43, 0
      %p432 = por %p430, %p431
      %s433 = ssub.s32 %s37, %s44
      %p434 = scmp.eq.s32.totalorder %s433, 0
      %s436 = sadd.s32 %s435, 1
      %s437 = scalar_select %p434, %s435, %s436
      %p440 = pneg %p434
      %p441 = scmp.eq.s32.totalorder %s37, 1
      %p442 = por %p440, %p441
      %p443 = scmp.ne.s32.totalorder %s435, %s438
      %p444 = scmp.eq.s32.totalorder %s37, 0
      %p445 = por %p443, %p444
      %p446 = scmp.ne.s32.totalorder %s435, %s438
      %p447 = scmp.eq.s32.totalorder %s42, 1
      %p448 = por %p446, %p447
      %p449 = scmp.ne.s32.totalorder %s438, %s439
      %p450 = scmp.eq.s32.totalorder %s42, 0
      %p451 = por %p449, %p450
      %p452 = scmp.ne.s32.totalorder %s438, %s439
      %p453 = scmp.eq.s32.totalorder %s43, 1
      %p454 = por %p452, %p453
      %p456 = scmp.ne.s32.totalorder %s439, %s455
      %p457 = scmp.eq.s32.totalorder %s43, 0
      %p458 = por %p456, %p457
      %p459 = scmp.le.s32.totalorder 1, %s37
      %p460 = scmp.lt.s32.totalorder %s37, 3
      %p461 = pnand %p459, %p460
      %p462 = pneg %p461
      // Predicated region
      $region9: #{tpu_custom_call.1} parent=5 // pred_check
        _
      $region10: #{tpu_custom_call.1} parent=5 // pred_check_branch
        %464 = sbr.rel (%p461) target = $region12
      $region11: #{tpu_custom_call.1} parent=5 // pred_region
        %s465 = ssub.s32 %s37, 1
        // Predicated region
        $region13: #{tpu_custom_call.1} parent=11 // pred_check
          %p466 = pneg %p110
        $region14: #{tpu_custom_call.1} parent=11 // pred_check_branch
          %468 = sbr.rel (%p466) target = $region16
        $region15: #{tpu_custom_call.1} parent=11 // pred_region
          _
        $region16: #{tpu_custom_call.1} parent=11 // pred_fallthru
          _
        // Predicated region
        $region17: #{tpu_custom_call.1} parent=11 // pred_check
          %p469 = pneg %p131
        $region18: #{tpu_custom_call.1} parent=11 // pred_check_branch
          %471 = sbr.rel (%p469) target = $region20
        $region19: #{tpu_custom_call.1} parent=11 // pred_region
          _
        $region20: #{tpu_custom_call.1} parent=11 // pred_fallthru
          _
        // Predicated region
        $region21: #{tpu_custom_call.1} parent=11 // pred_check
          %p472 = pneg %p152
        $region22: #{tpu_custom_call.1} parent=11 // pred_check_branch
          %474 = sbr.rel (%p472) target = $region24
        $region23: #{tpu_custom_call.1} parent=11 // pred_region
          %s476 = ssub.s32 256, 256
          %477 = vsyncadd [#allocation6], %s476
          %s478 = sshll.u32 [#allocation7], 4
          %s479 = int_to_ptr.vmem [resolvable:$true] %s478
          %484 = dma.hbm_to_vmem [thread:$0]  %s4, 256, %s479, [#allocation6], 64, 64, 4
        $region24: #{tpu_custom_call.1} parent=11 // pred_fallthru
          _
        // Predicated region
        $region25: #{tpu_custom_call.1} parent=11 // pred_check
          %p485 = pneg %p173
        $region26: #{tpu_custom_call.1} parent=11 // pred_check_branch
          %487 = sbr.rel (%p485) target = $region28
        $region27: #{tpu_custom_call.1} parent=11 // pred_region
          %s489 = ssub.s32 16, 16
          %490 = vsyncadd [#allocation9], %s489
          %s492 = sshll.u32 [#allocation8], 4
          %s493 = int_to_ptr.vmem [resolvable:$true] %s492
          %495 = dma.hbm_to_vmem [thread:$0]  %s5, 16, %s493, [#allocation9]
        $region28: #{tpu_custom_call.1} parent=11 // pred_fallthru
          _
        // Predicated region
        $region29: #{tpu_custom_call.1} parent=11 // pred_check
          %p496 = pneg %p194
        $region30: #{tpu_custom_call.1} parent=11 // pred_check_branch
          %498 = sbr.rel (%p496) target = $region32
        $region31: #{tpu_custom_call.1} parent=11 // pred_region
          %s500 = ssub.s32 256, 256
          %501 = vsyncadd [#allocation9], %s500
          %s502 = sshll.u32 [#allocation10], 4
          %s503 = int_to_ptr.vmem [resolvable:$true] %s502
          %508 = dma.hbm_to_vmem [thread:$0]  %s6, 256, %s503, [#allocation9], 64, 64, 4
        $region32: #{tpu_custom_call.1} parent=11 // pred_fallthru
          _
        // Predicated region
        $region33: #{tpu_custom_call.1} parent=11 // pred_check
          %p509 = pneg %p215
        $region34: #{tpu_custom_call.1} parent=11 // pred_check_branch
          %511 = sbr.rel (%p509) target = $region36
        $region35: #{tpu_custom_call.1} parent=11 // pred_region
          %s513 = ssub.s32 16, 16
          %514 = vsyncadd [#allocation12], %s513
          %s516 = sshll.u32 [#allocation11], 4
          %s517 = int_to_ptr.vmem [resolvable:$true] %s516
          %519 = dma.hbm_to_vmem [thread:$0]  %s7, 16, %s517, [#allocation12]
        $region36: #{tpu_custom_call.1} parent=11 // pred_fallthru
          _
        // Predicated region
        $region37: #{tpu_custom_call.1} parent=11 // pred_check
          %p520 = pneg %p236
        $region38: #{tpu_custom_call.1} parent=11 // pred_check_branch
          %522 = sbr.rel (%p520) target = $region40
        $region39: #{tpu_custom_call.1} parent=11 // pred_region
          %s524 = ssub.s32 256, 256
          %525 = vsyncadd [#allocation12], %s524
          %s526 = sshll.u32 [#allocation13], 4
          %s527 = int_to_ptr.vmem [resolvable:$true] %s526
          %532 = dma.hbm_to_vmem [thread:$0]  %s8, 256, %s527, [#allocation12], 64, 64, 4
        $region40: #{tpu_custom_call.1} parent=11 // pred_fallthru
          _
        // Predicated region
        $region41: #{tpu_custom_call.1} parent=11 // pred_check
          %p533 = pneg %p257
        $region42: #{tpu_custom_call.1} parent=11 // pred_check_branch
          %535 = sbr.rel (%p533) target = $region44
        $region43: #{tpu_custom_call.1} parent=11 // pred_region
          %s537 = ssub.s32 16, 16
          %538 = vsyncadd [#allocation15], %s537
          %s540 = sshll.u32 [#allocation14], 4
          %s541 = int_to_ptr.vmem [resolvable:$true] %s540
          %543 = dma.hbm_to_vmem [thread:$0]  %s9, 16, %s541, [#allocation15]
        $region44: #{tpu_custom_call.1} parent=11 // pred_fallthru
          _
        // Predicated region
        $region45: #{tpu_custom_call.1} parent=11 // pred_check
          %p544 = pneg %p278
        $region46: #{tpu_custom_call.1} parent=11 // pred_check_branch
          %546 = sbr.rel (%p544) target = $region48
        $region47: #{tpu_custom_call.1} parent=11 // pred_region
          _
        $region48: #{tpu_custom_call.1} parent=11 // pred_fallthru
          _
        // Predicated region
        $region49: #{tpu_custom_call.1} parent=11 // pred_check
          %p547 = pneg %p299
        $region50: #{tpu_custom_call.1} parent=11 // pred_check_branch
          %549 = sbr.rel (%p547) target = $region52
        $region51: #{tpu_custom_call.1} parent=11 // pred_region
          _
        $region52: #{tpu_custom_call.1} parent=11 // pred_fallthru
          _
        // Predicated region
        $region53: #{tpu_custom_call.1} parent=11 // pred_check
          %p550 = pneg %p320
        $region54: #{tpu_custom_call.1} parent=11 // pred_check_branch
          %552 = sbr.rel (%p550) target = $region56
        $region55: #{tpu_custom_call.1} parent=11 // pred_region
          %s554 = ssub.s32 256, 256
          %555 = vsyncadd [#allocation15], %s554
          %s556 = sshll.u32 [#allocation16], 4
          %s557 = int_to_ptr.vmem [resolvable:$true] %s556
          %562 = dma.hbm_to_vmem [thread:$0]  %s12, 256, %s557, [#allocation15], 64, 64, 4
        $region56: #{tpu_custom_call.1} parent=11 // pred_fallthru
          _
        // Predicated region
        $region57: #{tpu_custom_call.1} parent=11 // pred_check
          %p563 = pneg %p341
        $region58: #{tpu_custom_call.1} parent=11 // pred_check_branch
          %565 = sbr.rel (%p563) target = $region60
        $region59: #{tpu_custom_call.1} parent=11 // pred_region
          _
        $region60: #{tpu_custom_call.1} parent=11 // pred_fallthru
          _
        // Predicated region
        $region61: #{tpu_custom_call.1} parent=11 // pred_check
          %p566 = pneg %p362
        $region62: #{tpu_custom_call.1} parent=11 // pred_check_branch
          %568 = sbr.rel (%p566) target = $region64
        $region63: #{tpu_custom_call.1} parent=11 // pred_region
          %s570 = ssub.s32 256, 256
          %571 = vsyncadd [#allocation18], %s570
          %s572 = sshll.u32 [#allocation17], 4
          %s573 = int_to_ptr.vmem [resolvable:$true] %s572
          %578 = dma.hbm_to_vmem [thread:$0]  %s14, 256, %s573, [#allocation18], 64, 64, 4
        $region64: #{tpu_custom_call.1} parent=11 // pred_fallthru
          _
        // Predicated region
        $region65: #{tpu_custom_call.1} parent=11 // pred_check
          %p579 = pneg %p383
        $region66: #{tpu_custom_call.1} parent=11 // pred_check_branch
          %581 = sbr.rel (%p579) target = $region68
        $region67: #{tpu_custom_call.1} parent=11 // pred_region
          _
        $region68: #{tpu_custom_call.1} parent=11 // pred_fallthru
          _
        // Predicated region
        $region69: #{tpu_custom_call.1} parent=11 // pred_check
          %p582 = pneg %p404
        $region70: #{tpu_custom_call.1} parent=11 // pred_check_branch
          %584 = sbr.rel (%p582) target = $region72
        $region71: #{tpu_custom_call.1} parent=11 // pred_region
          %s586 = ssub.s32 256, 256
          %587 = vsyncadd [#allocation18], %s586
          %s588 = sshll.u32 [#allocation19], 4
          %s589 = int_to_ptr.vmem [resolvable:$true] %s588
          %594 = dma.hbm_to_vmem [thread:$0]  %s16, 256, %s589, [#allocation18], 64, 64, 4
        $region72: #{tpu_custom_call.1} parent=11 // pred_fallthru
          _
        // Predicated region
        $region73: #{tpu_custom_call.1} parent=11 // pred_check
          %p595 = pneg %p425
        $region74: #{tpu_custom_call.1} parent=11 // pred_check_branch
          %597 = sbr.rel (%p595) target = $region76
        $region75: #{tpu_custom_call.1} parent=11 // pred_region
          _
        $region76: #{tpu_custom_call.1} parent=11 // pred_fallthru
          _
      $region12: #{tpu_custom_call.1} parent=5 // pred_fallthru
        _
      %p598 = scmp.lt.s32.totalorder %s37, 2
      // Predicated region
      $region77: #{tpu_custom_call.1} parent=5 // pred_check
        %p599 = pneg %p598
      $region78: #{tpu_custom_call.1} parent=5 // pred_check_branch
        %601 = sbr.rel (%p599) target = $region80
      $region79: #{tpu_custom_call.1} parent=5 // pred_region
        // Predicated region
        $region81: #{tpu_custom_call.1} parent=79 // pred_check
          %p602 = pneg %p57
        $region82: #{tpu_custom_call.1} parent=79 // pred_check_branch
          %604 = sbr.rel (%p602) target = $region84
        $region83: #{tpu_custom_call.1} parent=79 // pred_region
          %s605 = sand.u32 %s47, 1
          %s606 = scalar_lea.sflag [#allocation3], %s605
          %s607 = sand.u32 %s47, 1
          %s608 = smul.addr %s607, 16
          %s609 = scalar_lea.vmem [#allocation2], %s608
          %s610 = smul.u32 2, %s37
          %s612 = ssub.s32 256, 256
          %613 = vsyncadd %s606, %s612
          %s614 = smul.addr %s610, 128
          %s615 = scalar_lea.hbm %s0, %s614
          %s616 = sshll.u32 %s609, 4
          %s617 = int_to_ptr.vmem [resolvable:$true] %s616
          %622 = dma.hbm_to_vmem [thread:$0]  %s615, 256, %s617, %s606, 128, 128, 8
        $region84: #{tpu_custom_call.1} parent=79 // pred_fallthru
          _
        // Predicated region
        $region85: #{tpu_custom_call.1} parent=79 // pred_check
          %p623 = pneg %p83
        $region86: #{tpu_custom_call.1} parent=79 // pred_check_branch
          %625 = sbr.rel (%p623) target = $region88
        $region87: #{tpu_custom_call.1} parent=79 // pred_region
          %s626 = sand.u32 %s37, 1
          %s627 = scalar_lea.sflag [#allocation6], %s626
          %s628 = sand.u32 %s73, 1
          %s629 = smul.addr %s628, 16
          %s630 = scalar_lea.vmem [#allocation5], %s629
          %s631 = smul.u32 2, %s37
          %s633 = ssub.s32 256, 256
          %634 = vsyncadd %s627, %s633
          %s635 = smul.addr %s631, 128
          %s636 = scalar_lea.hbm %s1, %s635
          %s637 = sshll.u32 %s630, 4
          %s638 = int_to_ptr.vmem [resolvable:$true] %s637
          %643 = dma.hbm_to_vmem [thread:$0]  %s636, 256, %s638, %s627, 128, 128, 8
        $region88: #{tpu_custom_call.1} parent=79 // pred_fallthru
          _
      $region80: #{tpu_custom_call.1} parent=5 // pred_fallthru
        _
      %p644 = scmp.le.s32.totalorder 1, %s37
      %p645 = scmp.lt.s32.totalorder %s37, 3
      %p646 = pnand %p644, %p645
      %p647 = pneg %p646
      // Predicated region
      $region89: #{tpu_custom_call.1} parent=5 // pred_check
        _
      $region90: #{tpu_custom_call.1} parent=5 // pred_check_branch
        %649 = sbr.rel (%p646) target = $region92
      $region91: #{tpu_custom_call.1} parent=5 // pred_region
        %s650 = ssub.s32 %s37, 1
        %s651 = sand.u32 %s50, 1
        %s652 = scalar_lea.sflag [#allocation3], %s651
        %s653 = sand.u32 %s50, 1
        %s654 = smul.addr %s653, 16
        %s655 = scalar_lea.vmem [#allocation2], %s654
        // Predicated region
        $region93: #{tpu_custom_call.1} parent=91 // pred_check
          %p656 = pneg %p63
        $region94: #{tpu_custom_call.1} parent=91 // pred_check_branch
          %658 = sbr.rel (%p656) target = $region96
        $region95: #{tpu_custom_call.1} parent=91 // pred_region
          %659 = dma.done %s652, 256
        $region96: #{tpu_custom_call.1} parent=91 // pred_fallthru
          _
        %s660 = sand.u32 %s42, 1
        %s661 = scalar_lea.sflag [#allocation6], %s660
        %s662 = sand.u32 %s76, 1
        %s663 = smul.addr %s662, 16
        %s664 = scalar_lea.vmem [#allocation5], %s663
        // Predicated region
        $region97: #{tpu_custom_call.1} parent=91 // pred_check
          %p665 = pneg %p89
        $region98: #{tpu_custom_call.1} parent=91 // pred_check_branch
          %667 = sbr.rel (%p665) target = $region100
        $region99: #{tpu_custom_call.1} parent=91 // pred_region
          %668 = dma.done %s661, 256
        $region100: #{tpu_custom_call.1} parent=91 // pred_fallthru
          _
        // Predicated region
        $region101: #{tpu_custom_call.1} parent=91 // pred_check
          %p669 = pneg %p152
        $region102: #{tpu_custom_call.1} parent=91 // pred_check_branch
          %671 = sbr.rel (%p669) target = $region104
        $region103: #{tpu_custom_call.1} parent=91 // pred_region
          %672 = dma.done [#allocation6], 256
        $region104: #{tpu_custom_call.1} parent=91 // pred_fallthru
          _
        // Predicated region
        $region105: #{tpu_custom_call.1} parent=91 // pred_check
          %p673 = pneg %p173
        $region106: #{tpu_custom_call.1} parent=91 // pred_check_branch
          %675 = sbr.rel (%p673) target = $region108
        $region107: #{tpu_custom_call.1} parent=91 // pred_region
          %676 = dma.done [#allocation9], 16
        $region108: #{tpu_custom_call.1} parent=91 // pred_fallthru
          _
        // Predicated region
        $region109: #{tpu_custom_call.1} parent=91 // pred_check
          %p677 = pneg %p194
        $region110: #{tpu_custom_call.1} parent=91 // pred_check_branch
          %679 = sbr.rel (%p677) target = $region112
        $region111: #{tpu_custom_call.1} parent=91 // pred_region
          %680 = dma.done [#allocation9], 256
        $region112: #{tpu_custom_call.1} parent=91 // pred_fallthru
          _
        // Predicated region
        $region113: #{tpu_custom_call.1} parent=91 // pred_check
          %p681 = pneg %p215
        $region114: #{tpu_custom_call.1} parent=91 // pred_check_branch
          %683 = sbr.rel (%p681) target = $region116
        $region115: #{tpu_custom_call.1} parent=91 // pred_region
          %684 = dma.done [#allocation12], 16
        $region116: #{tpu_custom_call.1} parent=91 // pred_fallthru
          _
        // Predicated region
        $region117: #{tpu_custom_call.1} parent=91 // pred_check
          %p685 = pneg %p236
        $region118: #{tpu_custom_call.1} parent=91 // pred_check_branch
          %687 = sbr.rel (%p685) target = $region120
        $region119: #{tpu_custom_call.1} parent=91 // pred_region
          %688 = dma.done [#allocation12], 256
        $region120: #{tpu_custom_call.1} parent=91 // pred_fallthru
          _
        // Predicated region
        $region121: #{tpu_custom_call.1} parent=91 // pred_check
          %p689 = pneg %p257
        $region122: #{tpu_custom_call.1} parent=91 // pred_check_branch
          %691 = sbr.rel (%p689) target = $region124
        $region123: #{tpu_custom_call.1} parent=91 // pred_region
          %692 = dma.done [#allocation15], 16
        $region124: #{tpu_custom_call.1} parent=91 // pred_fallthru
          _
        // Predicated region
        $region125: #{tpu_custom_call.1} parent=91 // pred_check
          %p693 = pneg %p320
        $region126: #{tpu_custom_call.1} parent=91 // pred_check_branch
          %695 = sbr.rel (%p693) target = $region128
        $region127: #{tpu_custom_call.1} parent=91 // pred_region
          %696 = dma.done [#allocation15], 256
        $region128: #{tpu_custom_call.1} parent=91 // pred_fallthru
          _
        // Predicated region
        $region129: #{tpu_custom_call.1} parent=91 // pred_check
          %p697 = pneg %p362
        $region130: #{tpu_custom_call.1} parent=91 // pred_check_branch
          %699 = sbr.rel (%p697) target = $region132
        $region131: #{tpu_custom_call.1} parent=91 // pred_region
          %700 = dma.done [#allocation18], 256
        $region132: #{tpu_custom_call.1} parent=91 // pred_fallthru
          _
        // Predicated region
        $region133: #{tpu_custom_call.1} parent=91 // pred_check
          %p701 = pneg %p404
        $region134: #{tpu_custom_call.1} parent=91 // pred_check_branch
          %703 = sbr.rel (%p701) target = $region136
        $region135: #{tpu_custom_call.1} parent=91 // pred_region
          %704 = dma.done [#allocation18], 256
        $region136: #{tpu_custom_call.1} parent=91 // pred_fallthru
          _
        %s705 = sand.u32 %s50, 1
        %s706 = scalar_lea.sflag [#allocation3], %s705
        %s707 = sand.u32 %s50, 1
        %s708 = smul.addr %s707, 16
        %s709 = scalar_lea.vmem [#allocation2], %s708
        %p710 = pneg %p63
        %p711 = pneg %p60
        %s712 = sand.u32 %s42, 1
        %s713 = scalar_lea.sflag [#allocation6], %s712
        %s714 = sand.u32 %s76, 1
        %s715 = smul.addr %s714, 16
        %s716 = scalar_lea.vmem [#allocation5], %s715
        %p717 = pneg %p89
        %p718 = pneg %p86
        %p719 = pneg %p110
        %p720 = pneg %p107
        %p721 = pneg %p131
        %p722 = pneg %p128
        %p723 = pneg %p152
        %p724 = pneg %p149
        %p725 = pneg %p173
        %p726 = pneg %p170
        %p727 = pneg %p194
        %p728 = pneg %p191
        %p729 = pneg %p215
        %p730 = pneg %p212
        %p731 = pneg %p236
        %p732 = pneg %p233
        %p733 = pneg %p257
        %p734 = pneg %p254
        %p735 = pneg %p278
        %p736 = pneg %p275
        %p737 = pneg %p299
        %p738 = pneg %p296
        %p739 = pneg %p320
        %p740 = pneg %p317
        %p741 = pneg %p341
        %p742 = pneg %p338
        %p743 = pneg %p362
        %p744 = pneg %p359
        %p745 = pneg %p383
        %p746 = pneg %p380
        %p747 = pneg %p404
        %p748 = pneg %p401
        %p749 = pneg %p425
        %p750 = pneg %p422
        %p751 = pneg %p451
        %p752 = pneg %p448
        %s753 = sand.u32 %s438, 1
        %s754 = scalar_lea.sflag [#allocation4], %s753
        %s755 = sand.u32 %s438, 1
        %s756 = smul.addr %s755, 16
        %s757 = scalar_lea.vmem [#allocation20], %s756
        %s758 = smul.u32 2, %s42
        %s759 = smul.u32 2, %s42
        %s760 = smul.u32 2, %s42
        %v762 = vld [vmem:[%s655] sm:$0xff]
        %s763 = scalar_lea.vmem %s655, 8 [#allocation2]
        %v764 = vld [vmem:[%s763] sm:$0xff]
        %v765 = vld [vmem:[%s664] sm:$0xff]
        %s766 = scalar_lea.vmem %s664, 8 [#allocation5]
        %v767 = vld [vmem:[%s766] sm:$0xff]
        %vm768 = vcmask 261120
        %v769 = vsel %vm768, %v762, 0.0
        %770 = vadd.xlane.f32.xlu0 %v769
        %v771 = vpop.xlane.xlu0 %770
        %v772 = vsel %vm768, %v764, 0.0
        %773 = vadd.xlane.f32.xlu0 %v772
        %v774 = vpop.xlane.xlu0 %773
        %v775 = vrcp.pop 32.0
        %v776 = vmul.f32 %v771, %v775
        %v777 = vmul.f32 %v774, %v775
        %v778 = vsub.f32 %v762, %v776
        %v779 = vsub.f32 %v764, %v777
        %v780 = vmul.f32 %v778, %v778
        %v781 = vmul.f32 %v779, %v779
        %v782 = vsel %vm768, %v780, 0.0
        %783 = vadd.xlane.f32.xlu0 %v782
        %v784 = vpop.xlane.xlu0 %783
        %v785 = vsel %vm768, %v781, 0.0
        %786 = vadd.xlane.f32.xlu0 %v785
        %v787 = vpop.xlane.xlu0 %786
        %v788 = vmul.f32 %v784, %v775
        %v789 = vmul.f32 %v787, %v775
        %v790 = vadd.f32 %v788, 1e-05
        %v791 = vadd.f32 %v789, 1e-05
        %v792 = vrsqrt.pop %v790
        %v793 = vrsqrt.pop %v791
        %v794 = vmul.f32 %v778, %v792
        %v795 = vmul.f32 %v779, %v793
        %v796 = vld [vmem:[#allocation7] sm:$0xf]
        %v797 = vld [vmem:[#allocation7 + $0x4] sm:$0xf]
        %v798 = vld [vmem:[#allocation7 + $0x8] sm:$0xf]
        %v799 = vld [vmem:[#allocation7 + $0xc] sm:$0xf]
        %v800 = vld [vmem:[#allocation8] sm:$0x1]
        %v801 = vpack.c.bf16 %v795, %v794
        %v803 = vlaneseq
        %v804 = vshrl.u32 %v803, 7
        %v805 = vsub.s32 0, %v804
        %v806 = vrot.slane %v800, %v805
        %v812 = vunpack.c.l.b16 %v796
        %v813 = vunpack.c.l.b16 %v797
        %v814 = vunpack.c.l.b16 %v798
        %v815 = vunpack.c.l.b16 %v799
        %v816 = vpack.c.b16 %v813, %v812
        %v817 = vpack.c.b16 %v815, %v814
        %v821 = vsel %vm768, %v801, 0
        %823 = vmatprep.subr.bf16.mxu0 0
        %824 = vmatpush1.bf16.msra.mxu0 0
        %825 = vmatprep.subr.bf16.mxu0 0
        %826 = vmatpush1.bf16.msra.mxu0 0
        %827 = vmatprep.subr.bf16.mxu0 0
        %828 = vmatpush1.bf16.msra.mxu0 0
        %829 = vmatprep.subr.bf16.mxu0 0
        %830 = vmatpush1.bf16.msra.mxu0 0
        %831 = vmatprep.subr.bf16.mxu0 0
        %832 = vmatpush1.bf16.msra.mxu0 0
        %833 = vmatprep.subr.bf16.mxu0 0
        %834 = vmatpush1.bf16.msra.mxu0 0
        %835 = vmatprep.subr.bf16.mxu0 0
        %836 = vmatpush1.bf16.msra.mxu0 %v817
        %837 = vmatprep.subr.bf16.mxu0 0
        %838 = vmatpush1.bf16.msra.mxu0 %v816
        %839 = vmatprep.subr.bf16.mxu0 0
        %840 = vmatpush2.bf16.msra.mxu0 0
        %841 = vmatprep.subr.bf16.mxu0 0
        %842 = vmatpush2.bf16.msra.mxu0 0
        %843 = vmatprep.subr.bf16.mxu0 0
        %844 = vmatpush2.bf16.msra.mxu0 0
        %845 = vmatprep.subr.bf16.mxu0 0
        %846 = vmatpush2.bf16.msra.mxu0 0
        %847 = vmatprep.subr.bf16.mxu0 0
        %848 = vmatpush2.bf16.msra.mxu0 0
        %849 = vmatprep.subr.bf16.mxu0 0
        %850 = vmatpush2.bf16.msra.mxu0 0
        %851 = vmatprep.subr.bf16.mxu0 0
        %852 = vmatpush2.bf16.msra.mxu0 0
        %853 = vmatprep.subr.bf16.mxu0 0
        %854 = vmatpush2.bf16.msra.mxu0 0
        %855 = vmatprep.mubr.bf16.mxu0 0
        %856 = vmatmul.mubr.bf16.gmra.mxu0 %v821
        %v857 = vpop.f32.mrf.mxu0
        %v858 = vadd.f32 %v806, %v857
        %v859 = vpop.f32.mrf.mxu0
        %v860 = vpop.f32.mrf.mxu0
        %v861 = vadd.f32 %v806, %v860
        %v862 = vpop.f32.mrf.mxu0
        %863 = vdwg.mxu0
        %865 = vrot.lane.b32.xlu0 %v858, 120
        %v866 = vpop.permute.xlu0 %865
        %868 = vrot.lane.b32.xlu0 %v858, 112
        %v869 = vpop.permute.xlu0 %868
        %871 = vrot.lane.b32.xlu0 %v858, 104
        %v872 = vpop.permute.xlu0 %871
        %v874 = vpack.c.bf16 %v858, %v858
        %v875 = vpack.c.bf16 %v866, %v866
        %v876 = vpack.c.bf16 %v869, %v869
        %v877 = vpack.c.bf16 %v872, %v872
        %879 = vrot.lane.b32.xlu0 %v874, 96
        %v880 = vpop.permute.xlu0 %879
        %vm881 = vcmask 64512
        %v883 = vsel %vm881, %v874, 0
        %v886 = vsel %vm881, %v880, 0
        %888 = vmatprep.subr.bf16.mxu0 0
        %889 = vmatpush1.bf16.xpose.msra.mxu0 0
        %890 = vmatprep.subr.bf16.mxu0 0
        %891 = vmatpush1.bf16.xpose.msra.mxu0 0
        %892 = vmatprep.subr.bf16.mxu0 0
        %893 = vmatpush1.bf16.xpose.msra.mxu0 0
        %894 = vmatprep.subr.bf16.mxu0 0
        %895 = vmatpush1.bf16.xpose.msra.mxu0 0
        %896 = vmatprep.subr.bf16.mxu0 0
        %897 = vmatpush1.bf16.xpose.msra.mxu0 0
        %898 = vmatprep.subr.bf16.mxu0 0
        %899 = vmatpush1.bf16.xpose.msra.mxu0 0
        %900 = vmatprep.subr.bf16.mxu0 0
        %901 = vmatpush1.bf16.xpose.msra.mxu0 0
        %902 = vmatprep.subr.bf16.mxu0 0
        %903 = vmatpush1.bf16.xpose.msra.mxu0 %v886
        %904 = vmatprep.subr.bf16.mxu0 0
        %905 = vmatpush2.bf16.xpose.msra.mxu0 0
        %906 = vmatprep.subr.bf16.mxu0 0
        %907 = vmatpush2.bf16.xpose.msra.mxu0 0
        %908 = vmatprep.subr.bf16.mxu0 0
        %909 = vmatpush2.bf16.xpose.msra.mxu0 0
        %910 = vmatprep.subr.bf16.mxu0 0
        %911 = vmatpush2.bf16.xpose.msra.mxu0 0
        %912 = vmatprep.subr.bf16.mxu0 0
        %913 = vmatpush2.bf16.xpose.msra.mxu0 0
        %914 = vmatprep.subr.bf16.mxu0 0
        %915 = vmatpush2.bf16.xpose.msra.mxu0 0
        %916 = vmatprep.subr.bf16.mxu0 0
        %917 = vmatpush2.bf16.xpose.msra.mxu0 0
        %918 = vmatprep.subr.bf16.mxu0 0
        %919 = vmatpush2.bf16.xpose.msra.mxu0 0
        %920 = vmatprep.mubr.bf16.mxu0 0
        %921 = vmatmul.mubr.bf16.gmra.mxu0 %v883
        %v922 = vpop.f32.mrf.mxu0
        %v923 = vadd.f32 0.0, %v922
        %v924 = vpop.f32.mrf.mxu0
        %v925 = vpop.f32.mrf.mxu0
        %v926 = vpop.f32.mrf.mxu0
        %927 = vdwg.mxu0
        %929 = vrot.lane.b32.xlu0 %v875, 96
        %v930 = vpop.permute.xlu0 %929
        %v932 = vsel %vm881, %v875, 0
        %v935 = vsel %vm881, %v930, 0
        %937 = vmatprep.subr.bf16.mxu0 0
        %938 = vmatpush1.bf16.xpose.msra.mxu0 0
        %939 = vmatprep.subr.bf16.mxu0 0
        %940 = vmatpush1.bf16.xpose.msra.mxu0 0
        %941 = vmatprep.subr.bf16.mxu0 0
        %942 = vmatpush1.bf16.xpose.msra.mxu0 0
        %943 = vmatprep.subr.bf16.mxu0 0
        %944 = vmatpush1.bf16.xpose.msra.mxu0 0
        %945 = vmatprep.subr.bf16.mxu0 0
        %946 = vmatpush1.bf16.xpose.msra.mxu0 0
        %947 = vmatprep.subr.bf16.mxu0 0
        %948 = vmatpush1.bf16.xpose.msra.mxu0 0
        %949 = vmatprep.subr.bf16.mxu0 0
        %950 = vmatpush1.bf16.xpose.msra.mxu0 0
        %951 = vmatprep.subr.bf16.mxu0 0
        %952 = vmatpush1.bf16.xpose.msra.mxu0 %v935
        %953 = vmatprep.subr.bf16.mxu0 0
        %954 = vmatpush2.bf16.xpose.msra.mxu0 0
        %955 = vmatprep.subr.bf16.mxu0 0
        %956 = vmatpush2.bf16.xpose.msra.mxu0 0
        %957 = vmatprep.subr.bf16.mxu0 0
        %958 = vmatpush2.bf16.xpose.msra.mxu0 0
        %959 = vmatprep.subr.bf16.mxu0 0
        %960 = vmatpush2.bf16.xpose.msra.mxu0 0
        %961 = vmatprep.subr.bf16.mxu0 0
        %962 = vmatpush2.bf16.xpose.msra.mxu0 0
        %963 = vmatprep.subr.bf16.mxu0 0
        %964 = vmatpush2.bf16.xpose.msra.mxu0 0
        %965 = vmatprep.subr.bf16.mxu0 0
        %966 = vmatpush2.bf16.xpose.msra.mxu0 0
        %967 = vmatprep.subr.bf16.mxu0 0
        %968 = vmatpush2.bf16.xpose.msra.mxu0 0
        %969 = vmatprep.mubr.bf16.mxu0 0
        %970 = vmatmul.mubr.bf16.gmra.mxu0 %v932
        %v971 = vpop.f32.mrf.mxu0
        %v972 = vadd.f32 0.0, %v971
        %v973 = vpop.f32.mrf.mxu0
        %v974 = vpop.f32.mrf.mxu0
        %v975 = vpop.f32.mrf.mxu0
        %976 = vdwg.mxu0
        %978 = vrot.lane.b32.xlu0 %v876, 96
        %v979 = vpop.permute.xlu0 %978
        %v981 = vsel %vm881, %v876, 0
        %v984 = vsel %vm881, %v979, 0
        %986 = vmatprep.subr.bf16.mxu0 0
        %987 = vmatpush1.bf16.xpose.msra.mxu0 0
        %988 = vmatprep.subr.bf16.mxu0 0
        %989 = vmatpush1.bf16.xpose.msra.mxu0 0
        %990 = vmatprep.subr.bf16.mxu0 0
        %991 = vmatpush1.bf16.xpose.msra.mxu0 0
        %992 = vmatprep.subr.bf16.mxu0 0
        %993 = vmatpush1.bf16.xpose.msra.mxu0 0
        %994 = vmatprep.subr.bf16.mxu0 0
        %995 = vmatpush1.bf16.xpose.msra.mxu0 0
        %996 = vmatprep.subr.bf16.mxu0 0
        %997 = vmatpush1.bf16.xpose.msra.mxu0 0
        %998 = vmatprep.subr.bf16.mxu0 0
        %999 = vmatpush1.bf16.xpose.msra.mxu0 0
        %1000 = vmatprep.subr.bf16.mxu0 0
        %1001 = vmatpush1.bf16.xpose.msra.mxu0 %v984
        %1002 = vmatprep.subr.bf16.mxu0 0
        %1003 = vmatpush2.bf16.xpose.msra.mxu0 0
        %1004 = vmatprep.subr.bf16.mxu0 0
        %1005 = vmatpush2.bf16.xpose.msra.mxu0 0
        %1006 = vmatprep.subr.bf16.mxu0 0
        %1007 = vmatpush2.bf16.xpose.msra.mxu0 0
        %1008 = vmatprep.subr.bf16.mxu0 0
        %1009 = vmatpush2.bf16.xpose.msra.mxu0 0
        %1010 = vmatprep.subr.bf16.mxu0 0
        %1011 = vmatpush2.bf16.xpose.msra.mxu0 0
        %1012 = vmatprep.subr.bf16.mxu0 0
        %1013 = vmatpush2.bf16.xpose.msra.mxu0 0
        %1014 = vmatprep.subr.bf16.mxu0 0
        %1015 = vmatpush2.bf16.xpose.msra.mxu0 0
        %1016 = vmatprep.subr.bf16.mxu0 0
        %1017 = vmatpush2.bf16.xpose.msra.mxu0 0
        %1018 = vmatprep.mubr.bf16.mxu0 0
        %1019 = vmatmul.mubr.bf16.gmra.mxu0 %v981
        %v1020 = vpop.f32.mrf.mxu0
        %v1021 = vadd.f32 0.0, %v1020
        %v1022 = vpop.f32.mrf.mxu0
        %v1023 = vpop.f32.mrf.mxu0
        %v1024 = vpop.f32.mrf.mxu0
        %1025 = vdwg.mxu0
        %1027 = vrot.lane.b32.xlu0 %v877, 96
        %v1028 = vpop.permute.xlu0 %1027
        %v1030 = vsel %vm881, %v877, 0
        %v1033 = vsel %vm881, %v1028, 0
        %1035 = vmatprep.subr.bf16.mxu0 0
        %1036 = vmatpush1.bf16.xpose.msra.mxu0 0
        %1037 = vmatprep.subr.bf16.mxu0 0
        %1038 = vmatpush1.bf16.xpose.msra.mxu0 0
        %1039 = vmatprep.subr.bf16.mxu0 0
        %1040 = vmatpush1.bf16.xpose.msra.mxu0 0
        %1041 = vmatprep.subr.bf16.mxu0 0
        %1042 = vmatpush1.bf16.xpose.msra.mxu0 0
        %1043 = vmatprep.subr.bf16.mxu0 0
        %1044 = vmatpush1.bf16.xpose.msra.mxu0 0
        %1045 = vmatprep.subr.bf16.mxu0 0
        %1046 = vmatpush1.bf16.xpose.msra.mxu0 0
        %1047 = vmatprep.subr.bf16.mxu0 0
        %1048 = vmatpush1.bf16.xpose.msra.mxu0 0
        %1049 = vmatprep.subr.bf16.mxu0 0
        %1050 = vmatpush1.bf16.xpose.msra.mxu0 %v1033
        %1051 = vmatprep.subr.bf16.mxu0 0
        %1052 = vmatpush2.bf16.xpose.msra.mxu0 0
        %1053 = vmatprep.subr.bf16.mxu0 0
        %1054 = vmatpush2.bf16.xpose.msra.mxu0 0
        %1055 = vmatprep.subr.bf16.mxu0 0
        %1056 = vmatpush2.bf16.xpose.msra.mxu0 0
        %1057 = vmatprep.subr.bf16.mxu0 0
        %1058 = vmatpush2.bf16.xpose.msra.mxu0 0
        %1059 = vmatprep.subr.bf16.mxu0 0
        %1060 = vmatpush2.bf16.xpose.msra.mxu0 0
        %1061 = vmatprep.subr.bf16.mxu0 0
        %1062 = vmatpush2.bf16.xpose.msra.mxu0 0
        %1063 = vmatprep.subr.bf16.mxu0 0
        %1064 = vmatpush2.bf16.xpose.msra.mxu0 0
        %1065 = vmatprep.subr.bf16.mxu0 0
        %1066 = vmatpush2.bf16.xpose.msra.mxu0 0
        %1067 = vmatprep.mubr.bf16.mxu0 0
        %1068 = vmatmul.mubr.bf16.gmra.mxu0 %v1030
        %v1069 = vpop.f32.mrf.mxu0
        %v1070 = vadd.f32 0.0, %v1069
        %v1071 = vpop.f32.mrf.mxu0
        %v1072 = vpop.f32.mrf.mxu0
        %v1073 = vpop.f32.mrf.mxu0
        %1074 = vdwg.mxu0
        %v1075 = vlaneseq
        %v1076 = vshrl.u32 %v1075, 7
        %v1077 = vlaneseq
        %v1078 = vand.u32 %v1077, 127
        %vm1079 = vcmp.le.s32.totalorder %v1078, %v1076
        %v1080 = vsel %vm1079, 1, 0
        %vm1081 = vcmp.eq.s32.totalorder %v1080, 1
        %v1082 = vsel %vm1081, %v923, -1e+30
        %v1083 = vsel %vm1081, %v972, -1e+30
        %v1084 = vsel %vm1081, %v1021, -1e+30
        %v1085 = vsel %vm1081, %v1070, -1e+30
        %v1086 = vsel %vm881, %v1082, -inf
        %1087 = vmax.xlane.f32.xlu0 %v1086
        %v1088 = vpop.xlane.xlu0 %1087
        %v1089 = vsel %vm881, %v1083, -inf
        %1090 = vmax.xlane.f32.xlu0 %v1089
        %v1091 = vpop.xlane.xlu0 %1090
        %v1092 = vsel %vm881, %v1084, -inf
        %1093 = vmax.xlane.f32.xlu0 %v1092
        %v1094 = vpop.xlane.xlu0 %1093
        %v1095 = vsel %vm881, %v1085, -inf
        %1096 = vmax.xlane.f32.xlu0 %v1095
        %v1097 = vpop.xlane.xlu0 %1096
        %v1098 = vsub.f32 %v1082, %v1088
        %v1099 = vsub.f32 %v1083, %v1091
        %v1100 = vsub.f32 %v1084, %v1094
        %v1101 = vsub.f32 %v1085, %v1097
        %v1102 = vmul.f32 %v1098, 1.442695
        %v1103 = vpow.pop %v1102
        %v1104 = vmul.f32 %v1099, 1.442695
        %v1105 = vpow.pop %v1104
        %v1106 = vmul.f32 %v1100, 1.442695
        %v1107 = vpow.pop %v1106
        %v1108 = vmul.f32 %v1101, 1.442695
        %v1109 = vpow.pop %v1108
        %v1110 = vsel %vm881, %v1103, 0.0
        %1111 = vadd.xlane.f32.xlu0 %v1110
        %v1112 = vpop.xlane.xlu0 %1111
        %v1113 = vsel %vm881, %v1105, 0.0
        %1114 = vadd.xlane.f32.xlu0 %v1113
        %v1115 = vpop.xlane.xlu0 %1114
        %v1116 = vsel %vm881, %v1107, 0.0
        %1117 = vadd.xlane.f32.xlu0 %v1116
        %v1118 = vpop.xlane.xlu0 %1117
        %v1119 = vsel %vm881, %v1109, 0.0
        %1120 = vadd.xlane.f32.xlu0 %v1119
        %v1121 = vpop.xlane.xlu0 %1120
        %v1122 = vrcp.pop %v1112
        %v1123 = vrcp.pop %v1115
        %v1124 = vrcp.pop %v1118
        %v1125 = vrcp.pop %v1121
        %v1126 = vmul.f32 %v1103, %v1122
        %v1127 = vmul.f32 %v1105, %v1123
        %v1128 = vmul.f32 %v1107, %v1124
        %v1129 = vmul.f32 %v1109, %v1125
        %v1130 = vpack.c.bf16 %v1126, %v1126
        %v1131 = vpack.c.bf16 %v1127, %v1127
        %v1132 = vpack.c.bf16 %v1128, %v1128
        %v1133 = vpack.c.bf16 %v1129, %v1129
        %1134 = vrot.lane.b32.xlu0 %v874, 64
        %v1135 = vpop.permute.xlu0 %1134
        %v1137 = vsel %vm881, %v1130, 0
        %vm1139 = vcmask 1043456
        %v1141 = vsel %vm1139, %v1135, 0
        %1143 = vmatprep.subr.bf16.mxu0 0
        %1144 = vmatpush1.bf16.msra.mxu0 0
        %1145 = vmatprep.subr.bf16.mxu0 0
        %1146 = vmatpush1.bf16.msra.mxu0 0
        %1147 = vmatprep.subr.bf16.mxu0 0
        %1148 = vmatpush1.bf16.msra.mxu0 0
        %1149 = vmatprep.subr.bf16.mxu0 0
        %1150 = vmatpush1.bf16.msra.mxu0 0
        %1151 = vmatprep.subr.bf16.mxu0 0
        %1152 = vmatpush1.bf16.msra.mxu0 0
        %1153 = vmatprep.subr.bf16.mxu0 0
        %1154 = vmatpush1.bf16.msra.mxu0 0
        %1155 = vmatprep.subr.bf16.mxu0 0
        %1156 = vmatpush1.bf16.msra.mxu0 0
        %1157 = vmatprep.subr.bf16.mxu0 0
        %1158 = vmatpush1.bf16.msra.mxu0 %v1141
        %1159 = vmatprep.subr.bf16.mxu0 0
        %1160 = vmatpush2.bf16.msra.mxu0 0
        %1161 = vmatprep.subr.bf16.mxu0 0
        %1162 = vmatpush2.bf16.msra.mxu0 0
        %1163 = vmatprep.subr.bf16.mxu0 0
        %1164 = vmatpush2.bf16.msra.mxu0 0
        %1165 = vmatprep.subr.bf16.mxu0 0
        %1166 = vmatpush2.bf16.msra.mxu0 0
        %1167 = vmatprep.subr.bf16.mxu0 0
        %1168 = vmatpush2.bf16.msra.mxu0 0
        %1169 = vmatprep.subr.bf16.mxu0 0
        %1170 = vmatpush2.bf16.msra.mxu0 0
        %1171 = vmatprep.subr.bf16.mxu0 0
        %1172 = vmatpush2.bf16.msra.mxu0 0
        %1173 = vmatprep.subr.bf16.mxu0 0
        %1174 = vmatpush2.bf16.msra.mxu0 0
        %1175 = vmatprep.mubr.bf16.mxu0 0
        %1176 = vmatmul.mubr.bf16.gmra.mxu0 %v1137
        %v1177 = vpop.f32.mrf.mxu0
        %v1178 = vadd.f32 0.0, %v1177
        %v1179 = vpop.f32.mrf.mxu0
        %v1180 = vpop.f32.mrf.mxu0
        %v1181 = vpop.f32.mrf.mxu0
        %1182 = vdwg.mxu0
        %1183 = vrot.lane.b32.xlu0 %v875, 64
        %v1184 = vpop.permute.xlu0 %1183
        %v1186 = vsel %vm881, %v1131, 0
        %v1189 = vsel %vm1139, %v1184, 0
        %1191 = vmatprep.subr.bf16.mxu0 0
        %1192 = vmatpush1.bf16.msra.mxu0 0
        %1193 = vmatprep.subr.bf16.mxu0 0
        %1194 = vmatpush1.bf16.msra.mxu0 0
        %1195 = vmatprep.subr.bf16.mxu0 0
        %1196 = vmatpush1.bf16.msra.mxu0 0
        %1197 = vmatprep.subr.bf16.mxu0 0
        %1198 = vmatpush1.bf16.msra.mxu0 0
        %1199 = vmatprep.subr.bf16.mxu0 0
        %1200 = vmatpush1.bf16.msra.mxu0 0
        %1201 = vmatprep.subr.bf16.mxu0 0
        %1202 = vmatpush1.bf16.msra.mxu0 0
        %1203 = vmatprep.subr.bf16.mxu0 0
        %1204 = vmatpush1.bf16.msra.mxu0 0
        %1205 = vmatprep.subr.bf16.mxu0 0
        %1206 = vmatpush1.bf16.msra.mxu0 %v1189
        %1207 = vmatprep.subr.bf16.mxu0 0
        %1208 = vmatpush2.bf16.msra.mxu0 0
        %1209 = vmatprep.subr.bf16.mxu0 0
        %1210 = vmatpush2.bf16.msra.mxu0 0
        %1211 = vmatprep.subr.bf16.mxu0 0
        %1212 = vmatpush2.bf16.msra.mxu0 0
        %1213 = vmatprep.subr.bf16.mxu0 0
        %1214 = vmatpush2.bf16.msra.mxu0 0
        %1215 = vmatprep.subr.bf16.mxu0 0
        %1216 = vmatpush2.bf16.msra.mxu0 0
        %1217 = vmatprep.subr.bf16.mxu0 0
        %1218 = vmatpush2.bf16.msra.mxu0 0
        %1219 = vmatprep.subr.bf16.mxu0 0
        %1220 = vmatpush2.bf16.msra.mxu0 0
        %1221 = vmatprep.subr.bf16.mxu0 0
        %1222 = vmatpush2.bf16.msra.mxu0 0
        %1223 = vmatprep.mubr.bf16.mxu0 0
        %1224 = vmatmul.mubr.bf16.gmra.mxu0 %v1186
        %v1225 = vpop.f32.mrf.mxu0
        %v1226 = vadd.f32 0.0, %v1225
        %v1227 = vpop.f32.mrf.mxu0
        %v1228 = vpop.f32.mrf.mxu0
        %v1229 = vpop.f32.mrf.mxu0
        %1230 = vdwg.mxu0
        %1231 = vrot.lane.b32.xlu0 %v876, 64
        %v1232 = vpop.permute.xlu0 %1231
        %v1234 = vsel %vm881, %v1132, 0
        %v1237 = vsel %vm1139, %v1232, 0
        %1239 = vmatprep.subr.bf16.mxu0 0
        %1240 = vmatpush1.bf16.msra.mxu0 0
        %1241 = vmatprep.subr.bf16.mxu0 0
        %1242 = vmatpush1.bf16.msra.mxu0 0
        %1243 = vmatprep.subr.bf16.mxu0 0
        %1244 = vmatpush1.bf16.msra.mxu0 0
        %1245 = vmatprep.subr.bf16.mxu0 0
        %1246 = vmatpush1.bf16.msra.mxu0 0
        %1247 = vmatprep.subr.bf16.mxu0 0
        %1248 = vmatpush1.bf16.msra.mxu0 0
        %1249 = vmatprep.subr.bf16.mxu0 0
        %1250 = vmatpush1.bf16.msra.mxu0 0
        %1251 = vmatprep.subr.bf16.mxu0 0
        %1252 = vmatpush1.bf16.msra.mxu0 0
        %1253 = vmatprep.subr.bf16.mxu0 0
        %1254 = vmatpush1.bf16.msra.mxu0 %v1237
        %1255 = vmatprep.subr.bf16.mxu0 0
        %1256 = vmatpush2.bf16.msra.mxu0 0
        %1257 = vmatprep.subr.bf16.mxu0 0
        %1258 = vmatpush2.bf16.msra.mxu0 0
        %1259 = vmatprep.subr.bf16.mxu0 0
        %1260 = vmatpush2.bf16.msra.mxu0 0
        %1261 = vmatprep.subr.bf16.mxu0 0
        %1262 = vmatpush2.bf16.msra.mxu0 0
        %1263 = vmatprep.subr.bf16.mxu0 0
        %1264 = vmatpush2.bf16.msra.mxu0 0
        %1265 = vmatprep.subr.bf16.mxu0 0
        %1266 = vmatpush2.bf16.msra.mxu0 0
        %1267 = vmatprep.subr.bf16.mxu0 0
        %1268 = vmatpush2.bf16.msra.mxu0 0
        %1269 = vmatprep.subr.bf16.mxu0 0
        %1270 = vmatpush2.bf16.msra.mxu0 0
        %1271 = vmatprep.mubr.bf16.mxu0 0
        %1272 = vmatmul.mubr.bf16.gmra.mxu0 %v1234
        %v1273 = vpop.f32.mrf.mxu0
        %v1274 = vadd.f32 0.0, %v1273
        %v1275 = vpop.f32.mrf.mxu0
        %v1276 = vpop.f32.mrf.mxu0
        %v1277 = vpop.f32.mrf.mxu0
        %1278 = vdwg.mxu0
        %1279 = vrot.lane.b32.xlu0 %v877, 64
        %v1280 = vpop.permute.xlu0 %1279
        %v1282 = vsel %vm881, %v1133, 0
        %v1285 = vsel %vm1139, %v1280, 0
        %1287 = vmatprep.subr.bf16.mxu0 0
        %1288 = vmatpush1.bf16.msra.mxu0 0
        %1289 = vmatprep.subr.bf16.mxu0 0
        %1290 = vmatpush1.bf16.msra.mxu0 0
        %1291 = vmatprep.subr.bf16.mxu0 0
        %1292 = vmatpush1.bf16.msra.mxu0 0
        %1293 = vmatprep.subr.bf16.mxu0 0
        %1294 = vmatpush1.bf16.msra.mxu0 0
        %1295 = vmatprep.subr.bf16.mxu0 0
        %1296 = vmatpush1.bf16.msra.mxu0 0
        %1297 = vmatprep.subr.bf16.mxu0 0
        %1298 = vmatpush1.bf16.msra.mxu0 0
        %1299 = vmatprep.subr.bf16.mxu0 0
        %1300 = vmatpush1.bf16.msra.mxu0 0
        %1301 = vmatprep.subr.bf16.mxu0 0
        %1302 = vmatpush1.bf16.msra.mxu0 %v1285
        %1303 = vmatprep.subr.bf16.mxu0 0
        %1304 = vmatpush2.bf16.msra.mxu0 0
        %1305 = vmatprep.subr.bf16.mxu0 0
        %1306 = vmatpush2.bf16.msra.mxu0 0
        %1307 = vmatprep.subr.bf16.mxu0 0
        %1308 = vmatpush2.bf16.msra.mxu0 0
        %1309 = vmatprep.subr.bf16.mxu0 0
        %1310 = vmatpush2.bf16.msra.mxu0 0
        %1311 = vmatprep.subr.bf16.mxu0 0
        %1312 = vmatpush2.bf16.msra.mxu0 0
        %1313 = vmatprep.subr.bf16.mxu0 0
        %1314 = vmatpush2.bf16.msra.mxu0 0
        %1315 = vmatprep.subr.bf16.mxu0 0
        %1316 = vmatpush2.bf16.msra.mxu0 0
        %1317 = vmatprep.subr.bf16.mxu0 0
        %1318 = vmatpush2.bf16.msra.mxu0 0
        %1319 = vmatprep.mubr.bf16.mxu0 0
        %1320 = vmatmul.mubr.bf16.gmra.mxu0 %v1282
        %v1321 = vpop.f32.mrf.mxu0
        %v1322 = vadd.f32 0.0, %v1321
        %v1323 = vpop.f32.mrf.mxu0
        %v1324 = vpop.f32.mrf.mxu0
        %v1325 = vpop.f32.mrf.mxu0
        %1326 = vdwg.mxu0
        %1328 = vrot.lane.b32.xlu0 %v1226, 8
        %v1329 = vpop.permute.xlu0 %1328
        %1332 = vrot.lane.b32.xlu0 %v1274, 16
        %v1333 = vpop.permute.xlu0 %1332
        %1336 = vrot.lane.b32.xlu0 %v1322, 24
        %v1337 = vpop.permute.xlu0 %1336
        %v1339 = vsel %vm881, %v1178, %v1329
        %vm1340 = vcmask 130048
        %v1341 = vsel %vm1340, %v1339, %v1333
        %vm1342 = vcmask 195584
        %v1343 = vsel %vm1342, %v1341, %v1337
        %1345 = vrot.lane.b32.xlu0 %v861, 120
        %v1346 = vpop.permute.xlu0 %1345
        %1348 = vrot.lane.b32.xlu0 %v861, 112
        %v1349 = vpop.permute.xlu0 %1348
        %1351 = vrot.lane.b32.xlu0 %v861, 104
        %v1352 = vpop.permute.xlu0 %1351
        %v1354 = vpack.c.bf16 %v861, %v861
        %v1355 = vpack.c.bf16 %v1346, %v1346
        %v1356 = vpack.c.bf16 %v1349, %v1349
        %v1357 = vpack.c.bf16 %v1352, %v1352
        %1359 = vrot.lane.b32.xlu0 %v1354, 96
        %v1360 = vpop.permute.xlu0 %1359
        %v1362 = vsel %vm881, %v1354, 0
        %v1365 = vsel %vm881, %v1360, 0
        %1367 = vmatprep.subr.bf16.mxu0 0
        %1368 = vmatpush1.bf16.xpose.msra.mxu0 0
        %1369 = vmatprep.subr.bf16.mxu0 0
        %1370 = vmatpush1.bf16.xpose.msra.mxu0 0
        %1371 = vmatprep.subr.bf16.mxu0 0
        %1372 = vmatpush1.bf16.xpose.msra.mxu0 0
        %1373 = vmatprep.subr.bf16.mxu0 0
        %1374 = vmatpush1.bf16.xpose.msra.mxu0 0
        %1375 = vmatprep.subr.bf16.mxu0 0
        %1376 = vmatpush1.bf16.xpose.msra.mxu0 0
        %1377 = vmatprep.subr.bf16.mxu0 0
        %1378 = vmatpush1.bf16.xpose.msra.mxu0 0
        %1379 = vmatprep.subr.bf16.mxu0 0
        %1380 = vmatpush1.bf16.xpose.msra.mxu0 0
        %1381 = vmatprep.subr.bf16.mxu0 0
        %1382 = vmatpush1.bf16.xpose.msra.mxu0 %v1365
        %1383 = vmatprep.subr.bf16.mxu0 0
        %1384 = vmatpush2.bf16.xpose.msra.mxu0 0
        %1385 = vmatprep.subr.bf16.mxu0 0
        %1386 = vmatpush2.bf16.xpose.msra.mxu0 0
        %1387 = vmatprep.subr.bf16.mxu0 0
        %1388 = vmatpush2.bf16.xpose.msra.mxu0 0
        %1389 = vmatprep.subr.bf16.mxu0 0
        %1390 = vmatpush2.bf16.xpose.msra.mxu0 0
        %1391 = vmatprep.subr.bf16.mxu0 0
        %1392 = vmatpush2.bf16.xpose.msra.mxu0 0
        %1393 = vmatprep.subr.bf16.mxu0 0
        %1394 = vmatpush2.bf16.xpose.msra.mxu0 0
        %1395 = vmatprep.subr.bf16.mxu0 0
        %1396 = vmatpush2.bf16.xpose.msra.mxu0 0
        %1397 = vmatprep.subr.bf16.mxu0 0
        %1398 = vmatpush2.bf16.xpose.msra.mxu0 0
        %1399 = vmatprep.mubr.bf16.mxu0 0
        %1400 = vmatmul.mubr.bf16.gmra.mxu0 %v1362
        %v1401 = vpop.f32.mrf.mxu0
        %v1402 = vadd.f32 0.0, %v1401
        %v1403 = vpop.f32.mrf.mxu0
        %v1404 = vpop.f32.mrf.mxu0
        %v1405 = vpop.f32.mrf.mxu0
        %1406 = vdwg.mxu0
        %1408 = vrot.lane.b32.xlu0 %v1355, 96
        %v1409 = vpop.permute.xlu0 %1408
        %v1411 = vsel %vm881, %v1355, 0
        %v1414 = vsel %vm881, %v1409, 0
        %1416 = vmatprep.subr.bf16.mxu0 0
        %1417 = vmatpush1.bf16.xpose.msra.mxu0 0
        %1418 = vmatprep.subr.bf16.mxu0 0
        %1419 = vmatpush1.bf16.xpose.msra.mxu0 0
        %1420 = vmatprep.subr.bf16.mxu0 0
        %1421 = vmatpush1.bf16.xpose.msra.mxu0 0
        %1422 = vmatprep.subr.bf16.mxu0 0
        %1423 = vmatpush1.bf16.xpose.msra.mxu0 0
        %1424 = vmatprep.subr.bf16.mxu0 0
        %1425 = vmatpush1.bf16.xpose.msra.mxu0 0
        %1426 = vmatprep.subr.bf16.mxu0 0
        %1427 = vmatpush1.bf16.xpose.msra.mxu0 0
        %1428 = vmatprep.subr.bf16.mxu0 0
        %1429 = vmatpush1.bf16.xpose.msra.mxu0 0
        %1430 = vmatprep.subr.bf16.mxu0 0
        %1431 = vmatpush1.bf16.xpose.msra.mxu0 %v1414
        %1432 = vmatprep.subr.bf16.mxu0 0
        %1433 = vmatpush2.bf16.xpose.msra.mxu0 0
        %1434 = vmatprep.subr.bf16.mxu0 0
        %1435 = vmatpush2.bf16.xpose.msra.mxu0 0
        %1436 = vmatprep.subr.bf16.mxu0 0
        %1437 = vmatpush2.bf16.xpose.msra.mxu0 0
        %1438 = vmatprep.subr.bf16.mxu0 0
        %1439 = vmatpush2.bf16.xpose.msra.mxu0 0
        %1440 = vmatprep.subr.bf16.mxu0 0
        %1441 = vmatpush2.bf16.xpose.msra.mxu0 0
        %1442 = vmatprep.subr.bf16.mxu0 0
        %1443 = vmatpush2.bf16.xpose.msra.mxu0 0
        %1444 = vmatprep.subr.bf16.mxu0 0
        %1445 = vmatpush2.bf16.xpose.msra.mxu0 0
        %1446 = vmatprep.subr.bf16.mxu0 0
        %1447 = vmatpush2.bf16.xpose.msra.mxu0 0
        %1448 = vmatprep.mubr.bf16.mxu0 0
        %1449 = vmatmul.mubr.bf16.gmra.mxu0 %v1411
        %v1450 = vpop.f32.mrf.mxu0
        %v1451 = vadd.f32 0.0, %v1450
        %v1452 = vpop.f32.mrf.mxu0
        %v1453 = vpop.f32.mrf.mxu0
        %v1454 = vpop.f32.mrf.mxu0
        %1455 = vdwg.mxu0
        %1457 = vrot.lane.b32.xlu0 %v1356, 96
        %v1458 = vpop.permute.xlu0 %1457
        %v1460 = vsel %vm881, %v1356, 0
        %v1463 = vsel %vm881, %v1458, 0
        %1465 = vmatprep.subr.bf16.mxu0 0
        %1466 = vmatpush1.bf16.xpose.msra.mxu0 0
        %1467 = vmatprep.subr.bf16.mxu0 0
        %1468 = vmatpush1.bf16.xpose.msra.mxu0 0
        %1469 = vmatprep.subr.bf16.mxu0 0
        %1470 = vmatpush1.bf16.xpose.msra.mxu0 0
        %1471 = vmatprep.subr.bf16.mxu0 0
        %1472 = vmatpush1.bf16.xpose.msra.mxu0 0
        %1473 = vmatprep.subr.bf16.mxu0 0
        %1474 = vmatpush1.bf16.xpose.msra.mxu0 0
        %1475 = vmatprep.subr.bf16.mxu0 0
        %1476 = vmatpush1.bf16.xpose.msra.mxu0 0
        %1477 = vmatprep.subr.bf16.mxu0 0
        %1478 = vmatpush1.bf16.xpose.msra.mxu0 0
        %1479 = vmatprep.subr.bf16.mxu0 0
        %1480 = vmatpush1.bf16.xpose.msra.mxu0 %v1463
        %1481 = vmatprep.subr.bf16.mxu0 0
        %1482 = vmatpush2.bf16.xpose.msra.mxu0 0
        %1483 = vmatprep.subr.bf16.mxu0 0
        %1484 = vmatpush2.bf16.xpose.msra.mxu0 0
        %1485 = vmatprep.subr.bf16.mxu0 0
        %1486 = vmatpush2.bf16.xpose.msra.mxu0 0
        %1487 = vmatprep.subr.bf16.mxu0 0
        %1488 = vmatpush2.bf16.xpose.msra.mxu0 0
        %1489 = vmatprep.subr.bf16.mxu0 0
        %1490 = vmatpush2.bf16.xpose.msra.mxu0 0
        %1491 = vmatprep.subr.bf16.mxu0 0
        %1492 = vmatpush2.bf16.xpose.msra.mxu0 0
        %1493 = vmatprep.subr.bf16.mxu0 0
        %1494 = vmatpush2.bf16.xpose.msra.mxu0 0
        %1495 = vmatprep.subr.bf16.mxu0 0
        %1496 = vmatpush2.bf16.xpose.msra.mxu0 0
        %1497 = vmatprep.mubr.bf16.mxu0 0
        %1498 = vmatmul.mubr.bf16.gmra.mxu0 %v1460
        %v1499 = vpop.f32.mrf.mxu0
        %v1500 = vadd.f32 0.0, %v1499
        %v1501 = vpop.f32.mrf.mxu0
        %v1502 = vpop.f32.mrf.mxu0
        %v1503 = vpop.f32.mrf.mxu0
        %1504 = vdwg.mxu0
        %1506 = vrot.lane.b32.xlu0 %v1357, 96
        %v1507 = vpop.permute.xlu0 %1506
        %v1509 = vsel %vm881, %v1357, 0
        %v1512 = vsel %vm881, %v1507, 0
        %1514 = vmatprep.subr.bf16.mxu0 0
        %1515 = vmatpush1.bf16.xpose.msra.mxu0 0
        %1516 = vmatprep.subr.bf16.mxu0 0
        %1517 = vmatpush1.bf16.xpose.msra.mxu0 0
        %1518 = vmatprep.subr.bf16.mxu0 0
        %1519 = vmatpush1.bf16.xpose.msra.mxu0 0
        %1520 = vmatprep.subr.bf16.mxu0 0
        %1521 = vmatpush1.bf16.xpose.msra.mxu0 0
        %1522 = vmatprep.subr.bf16.mxu0 0
        %1523 = vmatpush1.bf16.xpose.msra.mxu0 0
        %1524 = vmatprep.subr.bf16.mxu0 0
        %1525 = vmatpush1.bf16.xpose.msra.mxu0 0
        %1526 = vmatprep.subr.bf16.mxu0 0
        %1527 = vmatpush1.bf16.xpose.msra.mxu0 0
        %1528 = vmatprep.subr.bf16.mxu0 0
        %1529 = vmatpush1.bf16.xpose.msra.mxu0 %v1512
        %1530 = vmatprep.subr.bf16.mxu0 0
        %1531 = vmatpush2.bf16.xpose.msra.mxu0 0
        %1532 = vmatprep.subr.bf16.mxu0 0
        %1533 = vmatpush2.bf16.xpose.msra.mxu0 0
        %1534 = vmatprep.subr.bf16.mxu0 0
        %1535 = vmatpush2.bf16.xpose.msra.mxu0 0
        %1536 = vmatprep.subr.bf16.mxu0 0
        %1537 = vmatpush2.bf16.xpose.msra.mxu0 0
        %1538 = vmatprep.subr.bf16.mxu0 0
        %1539 = vmatpush2.bf16.xpose.msra.mxu0 0
        %1540 = vmatprep.subr.bf16.mxu0 0
        %1541 = vmatpush2.bf16.xpose.msra.mxu0 0
        %1542 = vmatprep.subr.bf16.mxu0 0
        %1543 = vmatpush2.bf16.xpose.msra.mxu0 0
        %1544 = vmatprep.subr.bf16.mxu0 0
        %1545 = vmatpush2.bf16.xpose.msra.mxu0 0
        %1546 = vmatprep.mubr.bf16.mxu0 0
        %1547 = vmatmul.mubr.bf16.gmra.mxu0 %v1509
        %v1548 = vpop.f32.mrf.mxu0
        %v1549 = vadd.f32 0.0, %v1548
        %v1550 = vpop.f32.mrf.mxu0
        %v1551 = vpop.f32.mrf.mxu0
        %v1552 = vpop.f32.mrf.mxu0
        %1553 = vdwg.mxu0
        %v1554 = vsel %vm1081, %v1402, -1e+30
        %v1555 = vsel %vm1081, %v1451, -1e+30
        %v1556 = vsel %vm1081, %v1500, -1e+30
        %v1557 = vsel %vm1081, %v1549, -1e+30
        %v1558 = vsel %vm881, %v1554, -inf
        %1559 = vmax.xlane.f32.xlu0 %v1558
        %v1560 = vpop.xlane.xlu0 %1559
        %v1561 = vsel %vm881, %v1555, -inf
        %1562 = vmax.xlane.f32.xlu0 %v1561
        %v1563 = vpop.xlane.xlu0 %1562
        %v1564 = vsel %vm881, %v1556, -inf
        %1565 = vmax.xlane.f32.xlu0 %v1564
        %v1566 = vpop.xlane.xlu0 %1565
        %v1567 = vsel %vm881, %v1557, -inf
        %1568 = vmax.xlane.f32.xlu0 %v1567
        %v1569 = vpop.xlane.xlu0 %1568
        %v1570 = vsub.f32 %v1554, %v1560
        %v1571 = vsub.f32 %v1555, %v1563
        %v1572 = vsub.f32 %v1556, %v1566
        %v1573 = vsub.f32 %v1557, %v1569
        %v1574 = vmul.f32 %v1570, 1.442695
        %v1575 = vpow.pop %v1574
        %v1576 = vmul.f32 %v1571, 1.442695
        %v1577 = vpow.pop %v1576
        %v1578 = vmul.f32 %v1572, 1.442695
        %v1579 = vpow.pop %v1578
        %v1580 = vmul.f32 %v1573, 1.442695
        %v1581 = vpow.pop %v1580
        %v1582 = vsel %vm881, %v1575, 0.0
        %1583 = vadd.xlane.f32.xlu0 %v1582
        %v1584 = vpop.xlane.xlu0 %1583
        %v1585 = vsel %vm881, %v1577, 0.0
        %1586 = vadd.xlane.f32.xlu0 %v1585
        %v1587 = vpop.xlane.xlu0 %1586
        %v1588 = vsel %vm881, %v1579, 0.0
        %1589 = vadd.xlane.f32.xlu0 %v1588
        %v1590 = vpop.xlane.xlu0 %1589
        %v1591 = vsel %vm881, %v1581, 0.0
        %1592 = vadd.xlane.f32.xlu0 %v1591
        %v1593 = vpop.xlane.xlu0 %1592
        %v1594 = vrcp.pop %v1584
        %v1595 = vrcp.pop %v1587
        %v1596 = vrcp.pop %v1590
        %v1597 = vrcp.pop %v1593
        %v1598 = vmul.f32 %v1575, %v1594
        %v1599 = vmul.f32 %v1577, %v1595
        %v1600 = vmul.f32 %v1579, %v1596
        %v1601 = vmul.f32 %v1581, %v1597
        %v1602 = vpack.c.bf16 %v1598, %v1598
        %v1603 = vpack.c.bf16 %v1599, %v1599
        %v1604 = vpack.c.bf16 %v1600, %v1600
        %v1605 = vpack.c.bf16 %v1601, %v1601
        %1606 = vrot.lane.b32.xlu0 %v1354, 64
        %v1607 = vpop.permute.xlu0 %1606
        %v1609 = vsel %vm881, %v1602, 0
        %v1612 = vsel %vm1139, %v1607, 0
        %1614 = vmatprep.subr.bf16.mxu0 0
        %1615 = vmatpush1.bf16.msra.mxu0 0
        %1616 = vmatprep.subr.bf16.mxu0 0
        %1617 = vmatpush1.bf16.msra.mxu0 0
        %1618 = vmatprep.subr.bf16.mxu0 0
        %1619 = vmatpush1.bf16.msra.mxu0 0
        %1620 = vmatprep.subr.bf16.mxu0 0
        %1621 = vmatpush1.bf16.msra.mxu0 0
        %1622 = vmatprep.subr.bf16.mxu0 0
        %1623 = vmatpush1.bf16.msra.mxu0 0
        %1624 = vmatprep.subr.bf16.mxu0 0
        %1625 = vmatpush1.bf16.msra.mxu0 0
        %1626 = vmatprep.subr.bf16.mxu0 0
        %1627 = vmatpush1.bf16.msra.mxu0 0
        %1628 = vmatprep.subr.bf16.mxu0 0
        %1629 = vmatpush1.bf16.msra.mxu0 %v1612
        %1630 = vmatprep.subr.bf16.mxu0 0
        %1631 = vmatpush2.bf16.msra.mxu0 0
        %1632 = vmatprep.subr.bf16.mxu0 0
        %1633 = vmatpush2.bf16.msra.mxu0 0
        %1634 = vmatprep.subr.bf16.mxu0 0
        %1635 = vmatpush2.bf16.msra.mxu0 0
        %1636 = vmatprep.subr.bf16.mxu0 0
        %1637 = vmatpush2.bf16.msra.mxu0 0
        %1638 = vmatprep.subr.bf16.mxu0 0
        %1639 = vmatpush2.bf16.msra.mxu0 0
        %1640 = vmatprep.subr.bf16.mxu0 0
        %1641 = vmatpush2.bf16.msra.mxu0 0
        %1642 = vmatprep.subr.bf16.mxu0 0
        %1643 = vmatpush2.bf16.msra.mxu0 0
        %1644 = vmatprep.subr.bf16.mxu0 0
        %1645 = vmatpush2.bf16.msra.mxu0 0
        %1646 = vmatprep.mubr.bf16.mxu0 0
        %1647 = vmatmul.mubr.bf16.gmra.mxu0 %v1609
        %v1648 = vpop.f32.mrf.mxu0
        %v1649 = vadd.f32 0.0, %v1648
        %v1650 = vpop.f32.mrf.mxu0
        %v1651 = vpop.f32.mrf.mxu0
        %v1652 = vpop.f32.mrf.mxu0
        %1653 = vdwg.mxu0
        %1654 = vrot.lane.b32.xlu0 %v1355, 64
        %v1655 = vpop.permute.xlu0 %1654
        %v1657 = vsel %vm881, %v1603, 0
        %v1660 = vsel %vm1139, %v1655, 0
        %1662 = vmatprep.subr.bf16.mxu0 0
        %1663 = vmatpush1.bf16.msra.mxu0 0
        %1664 = vmatprep.subr.bf16.mxu0 0
        %1665 = vmatpush1.bf16.msra.mxu0 0
        %1666 = vmatprep.subr.bf16.mxu0 0
        %1667 = vmatpush1.bf16.msra.mxu0 0
        %1668 = vmatprep.subr.bf16.mxu0 0
        %1669 = vmatpush1.bf16.msra.mxu0 0
        %1670 = vmatprep.subr.bf16.mxu0 0
        %1671 = vmatpush1.bf16.msra.mxu0 0
        %1672 = vmatprep.subr.bf16.mxu0 0
        %1673 = vmatpush1.bf16.msra.mxu0 0
        %1674 = vmatprep.subr.bf16.mxu0 0
        %1675 = vmatpush1.bf16.msra.mxu0 0
        %1676 = vmatprep.subr.bf16.mxu0 0
        %1677 = vmatpush1.bf16.msra.mxu0 %v1660
        %1678 = vmatprep.subr.bf16.mxu0 0
        %1679 = vmatpush2.bf16.msra.mxu0 0
        %1680 = vmatprep.subr.bf16.mxu0 0
        %1681 = vmatpush2.bf16.msra.mxu0 0
        %1682 = vmatprep.subr.bf16.mxu0 0
        %1683 = vmatpush2.bf16.msra.mxu0 0
        %1684 = vmatprep.subr.bf16.mxu0 0
        %1685 = vmatpush2.bf16.msra.mxu0 0
        %1686 = vmatprep.subr.bf16.mxu0 0
        %1687 = vmatpush2.bf16.msra.mxu0 0
        %1688 = vmatprep.subr.bf16.mxu0 0
        %1689 = vmatpush2.bf16.msra.mxu0 0
        %1690 = vmatprep.subr.bf16.mxu0 0
        %1691 = vmatpush2.bf16.msra.mxu0 0
        %1692 = vmatprep.subr.bf16.mxu0 0
        %1693 = vmatpush2.bf16.msra.mxu0 0
        %1694 = vmatprep.mubr.bf16.mxu0 0
        %1695 = vmatmul.mubr.bf16.gmra.mxu0 %v1657
        %v1696 = vpop.f32.mrf.mxu0
        %v1697 = vadd.f32 0.0, %v1696
        %v1698 = vpop.f32.mrf.mxu0
        %v1699 = vpop.f32.mrf.mxu0
        %v1700 = vpop.f32.mrf.mxu0
        %1701 = vdwg.mxu0
        %1702 = vrot.lane.b32.xlu0 %v1356, 64
        %v1703 = vpop.permute.xlu0 %1702
        %v1705 = vsel %vm881, %v1604, 0
        %v1708 = vsel %vm1139, %v1703, 0
        %1710 = vmatprep.subr.bf16.mxu0 0
        %1711 = vmatpush1.bf16.msra.mxu0 0
        %1712 = vmatprep.subr.bf16.mxu0 0
        %1713 = vmatpush1.bf16.msra.mxu0 0
        %1714 = vmatprep.subr.bf16.mxu0 0
        %1715 = vmatpush1.bf16.msra.mxu0 0
        %1716 = vmatprep.subr.bf16.mxu0 0
        %1717 = vmatpush1.bf16.msra.mxu0 0
        %1718 = vmatprep.subr.bf16.mxu0 0
        %1719 = vmatpush1.bf16.msra.mxu0 0
        %1720 = vmatprep.subr.bf16.mxu0 0
        %1721 = vmatpush1.bf16.msra.mxu0 0
        %1722 = vmatprep.subr.bf16.mxu0 0
        %1723 = vmatpush1.bf16.msra.mxu0 0
        %1724 = vmatprep.subr.bf16.mxu0 0
        %1725 = vmatpush1.bf16.msra.mxu0 %v1708
        %1726 = vmatprep.subr.bf16.mxu0 0
        %1727 = vmatpush2.bf16.msra.mxu0 0
        %1728 = vmatprep.subr.bf16.mxu0 0
        %1729 = vmatpush2.bf16.msra.mxu0 0
        %1730 = vmatprep.subr.bf16.mxu0 0
        %1731 = vmatpush2.bf16.msra.mxu0 0
        %1732 = vmatprep.subr.bf16.mxu0 0
        %1733 = vmatpush2.bf16.msra.mxu0 0
        %1734 = vmatprep.subr.bf16.mxu0 0
        %1735 = vmatpush2.bf16.msra.mxu0 0
        %1736 = vmatprep.subr.bf16.mxu0 0
        %1737 = vmatpush2.bf16.msra.mxu0 0
        %1738 = vmatprep.subr.bf16.mxu0 0
        %1739 = vmatpush2.bf16.msra.mxu0 0
        %1740 = vmatprep.subr.bf16.mxu0 0
        %1741 = vmatpush2.bf16.msra.mxu0 0
        %1742 = vmatprep.mubr.bf16.mxu0 0
        %1743 = vmatmul.mubr.bf16.gmra.mxu0 %v1705
        %v1744 = vpop.f32.mrf.mxu0
        %v1745 = vadd.f32 0.0, %v1744
        %v1746 = vpop.f32.mrf.mxu0
        %v1747 = vpop.f32.mrf.mxu0
        %v1748 = vpop.f32.mrf.mxu0
        %1749 = vdwg.mxu0
        %1750 = vrot.lane.b32.xlu0 %v1357, 64
        %v1751 = vpop.permute.xlu0 %1750
        %v1753 = vsel %vm881, %v1605, 0
        %v1756 = vsel %vm1139, %v1751, 0
        %1758 = vmatprep.subr.bf16.mxu0 0
        %1759 = vmatpush1.bf16.msra.mxu0 0
        %1760 = vmatprep.subr.bf16.mxu0 0
        %1761 = vmatpush1.bf16.msra.mxu0 0
        %1762 = vmatprep.subr.bf16.mxu0 0
        %1763 = vmatpush1.bf16.msra.mxu0 0
        %1764 = vmatprep.subr.bf16.mxu0 0
        %1765 = vmatpush1.bf16.msra.mxu0 0
        %1766 = vmatprep.subr.bf16.mxu0 0
        %1767 = vmatpush1.bf16.msra.mxu0 0
        %1768 = vmatprep.subr.bf16.mxu0 0
        %1769 = vmatpush1.bf16.msra.mxu0 0
        %1770 = vmatprep.subr.bf16.mxu0 0
        %1771 = vmatpush1.bf16.msra.mxu0 0
        %1772 = vmatprep.subr.bf16.mxu0 0
        %1773 = vmatpush1.bf16.msra.mxu0 %v1756
        %1774 = vmatprep.subr.bf16.mxu0 0
        %1775 = vmatpush2.bf16.msra.mxu0 0
        %1776 = vmatprep.subr.bf16.mxu0 0
        %1777 = vmatpush2.bf16.msra.mxu0 0
        %1778 = vmatprep.subr.bf16.mxu0 0
        %1779 = vmatpush2.bf16.msra.mxu0 0
        %1780 = vmatprep.subr.bf16.mxu0 0
        %1781 = vmatpush2.bf16.msra.mxu0 0
        %1782 = vmatprep.subr.bf16.mxu0 0
        %1783 = vmatpush2.bf16.msra.mxu0 0
        %1784 = vmatprep.subr.bf16.mxu0 0
        %1785 = vmatpush2.bf16.msra.mxu0 0
        %1786 = vmatprep.subr.bf16.mxu0 0
        %1787 = vmatpush2.bf16.msra.mxu0 0
        %1788 = vmatprep.subr.bf16.mxu0 0
        %1789 = vmatpush2.bf16.msra.mxu0 0
        %1790 = vmatprep.mubr.bf16.mxu0 0
        %1791 = vmatmul.mubr.bf16.gmra.mxu0 %v1753
        %v1792 = vpop.f32.mrf.mxu0
        %v1793 = vadd.f32 0.0, %v1792
        %v1794 = vpop.f32.mrf.mxu0
        %v1795 = vpop.f32.mrf.mxu0
        %v1796 = vpop.f32.mrf.mxu0
        %1797 = vdwg.mxu0
        %1799 = vrot.lane.b32.xlu0 %v1697, 8
        %v1800 = vpop.permute.xlu0 %1799
        %1803 = vrot.lane.b32.xlu0 %v1745, 16
        %v1804 = vpop.permute.xlu0 %1803
        %1807 = vrot.lane.b32.xlu0 %v1793, 24
        %v1808 = vpop.permute.xlu0 %1807
        %v1810 = vsel %vm881, %v1649, %v1800
        %v1811 = vsel %vm1340, %v1810, %v1804
        %v1812 = vsel %vm1342, %v1811, %v1808
        %v1813 = vld [vmem:[#allocation10] sm:$0xf]
        %v1814 = vld [vmem:[#allocation10 + $0x4] sm:$0xf]
        %v1815 = vld [vmem:[#allocation10 + $0x8] sm:$0xf]
        %v1816 = vld [vmem:[#allocation10 + $0xc] sm:$0xf]
        %v1817 = vld [vmem:[#allocation11] sm:$0x1]
        %v1818 = vpack.c.bf16 %v1812, %v1343
        %v1820 = vlaneseq
        %v1821 = vshrl.u32 %v1820, 7
        %v1822 = vsub.s32 0, %v1821
        %v1823 = vrot.slane %v1817, %v1822
        %v1829 = vunpack.c.l.b16 %v1813
        %v1830 = vunpack.c.l.b16 %v1814
        %v1831 = vunpack.c.l.b16 %v1815
        %v1832 = vunpack.c.l.b16 %v1816
        %v1833 = vpack.c.b16 %v1830, %v1829
        %v1834 = vpack.c.b16 %v1832, %v1831
        %v1838 = vsel %vm768, %v1818, 0
        %1840 = vmatprep.subr.bf16.mxu0 0
        %1841 = vmatpush1.bf16.msra.mxu0 0
        %1842 = vmatprep.subr.bf16.mxu0 0
        %1843 = vmatpush1.bf16.msra.mxu0 0
        %1844 = vmatprep.subr.bf16.mxu0 0
        %1845 = vmatpush1.bf16.msra.mxu0 0
        %1846 = vmatprep.subr.bf16.mxu0 0
        %1847 = vmatpush1.bf16.msra.mxu0 0
        %1848 = vmatprep.subr.bf16.mxu0 0
        %1849 = vmatpush1.bf16.msra.mxu0 0
        %1850 = vmatprep.subr.bf16.mxu0 0
        %1851 = vmatpush1.bf16.msra.mxu0 0
        %1852 = vmatprep.subr.bf16.mxu0 0
        %1853 = vmatpush1.bf16.msra.mxu0 %v1834
        %1854 = vmatprep.subr.bf16.mxu0 0
        %1855 = vmatpush1.bf16.msra.mxu0 %v1833
        %1856 = vmatprep.subr.bf16.mxu0 0
        %1857 = vmatpush2.bf16.msra.mxu0 0
        %1858 = vmatprep.subr.bf16.mxu0 0
        %1859 = vmatpush2.bf16.msra.mxu0 0
        %1860 = vmatprep.subr.bf16.mxu0 0
        %1861 = vmatpush2.bf16.msra.mxu0 0
        %1862 = vmatprep.subr.bf16.mxu0 0
        %1863 = vmatpush2.bf16.msra.mxu0 0
        %1864 = vmatprep.subr.bf16.mxu0 0
        %1865 = vmatpush2.bf16.msra.mxu0 0
        %1866 = vmatprep.subr.bf16.mxu0 0
        %1867 = vmatpush2.bf16.msra.mxu0 0
        %1868 = vmatprep.subr.bf16.mxu0 0
        %1869 = vmatpush2.bf16.msra.mxu0 0
        %1870 = vmatprep.subr.bf16.mxu0 0
        %1871 = vmatpush2.bf16.msra.mxu0 0
        %1872 = vmatprep.mubr.bf16.mxu0 0
        %1873 = vmatmul.mubr.bf16.gmra.mxu0 %v1838
        %v1874 = vpop.f32.mrf.mxu0
        %v1875 = vadd.f32 %v1823, %v1874
        %v1876 = vpop.f32.mrf.mxu0
        %v1877 = vpop.f32.mrf.mxu0
        %v1878 = vadd.f32 %v1823, %v1877
        %v1879 = vpop.f32.mrf.mxu0
        %1880 = vdwg.mxu0
        %v1881 = vadd.f32 %v762, %v1875
        %v1882 = vadd.f32 %v764, %v1878
        %v1883 = vsel %vm768, %v1881, 0.0
        %1884 = vadd.xlane.f32.xlu0 %v1883
        %v1885 = vpop.xlane.xlu0 %1884
        %v1886 = vsel %vm768, %v1882, 0.0
        %1887 = vadd.xlane.f32.xlu0 %v1886
        %v1888 = vpop.xlane.xlu0 %1887
        %v1889 = vmul.f32 %v1885, %v775
        %v1890 = vmul.f32 %v1888, %v775
        %v1891 = vsub.f32 %v1881, %v1889
        %v1892 = vsub.f32 %v1882, %v1890
        %v1893 = vmul.f32 %v1891, %v1891
        %v1894 = vmul.f32 %v1892, %v1892
        %v1895 = vsel %vm768, %v1893, 0.0
        %1896 = vadd.xlane.f32.xlu0 %v1895
        %v1897 = vpop.xlane.xlu0 %1896
        %v1898 = vsel %vm768, %v1894, 0.0
        %1899 = vadd.xlane.f32.xlu0 %v1898
        %v1900 = vpop.xlane.xlu0 %1899
        %v1901 = vmul.f32 %v1897, %v775
        %v1902 = vmul.f32 %v1900, %v775
        %v1903 = vadd.f32 %v1901, 1e-05
        %v1904 = vadd.f32 %v1902, 1e-05
        %v1905 = vrsqrt.pop %v1903
        %v1906 = vrsqrt.pop %v1904
        %v1907 = vmul.f32 %v1891, %v1905
        %v1908 = vmul.f32 %v1892, %v1906
        %v1909 = vld [vmem:[#allocation13] sm:$0xf]
        %v1910 = vld [vmem:[#allocation13 + $0x4] sm:$0xf]
        %v1911 = vld [vmem:[#allocation13 + $0x8] sm:$0xf]
        %v1912 = vld [vmem:[#allocation13 + $0xc] sm:$0xf]
        %v1913 = vld [vmem:[#allocation14] sm:$0x1]
        %v1914 = vpack.c.bf16 %v1908, %v1907
        %v1916 = vlaneseq
        %v1917 = vshrl.u32 %v1916, 7
        %v1918 = vsub.s32 0, %v1917
        %v1919 = vrot.slane %v1913, %v1918
        %v1925 = vunpack.c.l.b16 %v1909
        %v1926 = vunpack.c.l.b16 %v1910
        %v1927 = vunpack.c.l.b16 %v1911
        %v1928 = vunpack.c.l.b16 %v1912
        %v1929 = vpack.c.b16 %v1926, %v1925
        %v1930 = vpack.c.b16 %v1928, %v1927
        %v1934 = vsel %vm768, %v1914, 0
        %1936 = vmatprep.subr.bf16.mxu0 0
        %1937 = vmatpush1.bf16.msra.mxu0 0
        %1938 = vmatprep.subr.bf16.mxu0 0
        %1939 = vmatpush1.bf16.msra.mxu0 0
        %1940 = vmatprep.subr.bf16.mxu0 0
        %1941 = vmatpush1.bf16.msra.mxu0 0
        %1942 = vmatprep.subr.bf16.mxu0 0
        %1943 = vmatpush1.bf16.msra.mxu0 0
        %1944 = vmatprep.subr.bf16.mxu0 0
        %1945 = vmatpush1.bf16.msra.mxu0 0
        %1946 = vmatprep.subr.bf16.mxu0 0
        %1947 = vmatpush1.bf16.msra.mxu0 0
        %1948 = vmatprep.subr.bf16.mxu0 0
        %1949 = vmatpush1.bf16.msra.mxu0 %v1930
        %1950 = vmatprep.subr.bf16.mxu0 0
        %1951 = vmatpush1.bf16.msra.mxu0 %v1929
        %1952 = vmatprep.subr.bf16.mxu0 0
        %1953 = vmatpush2.bf16.msra.mxu0 0
        %1954 = vmatprep.subr.bf16.mxu0 0
        %1955 = vmatpush2.bf16.msra.mxu0 0
        %1956 = vmatprep.subr.bf16.mxu0 0
        %1957 = vmatpush2.bf16.msra.mxu0 0
        %1958 = vmatprep.subr.bf16.mxu0 0
        %1959 = vmatpush2.bf16.msra.mxu0 0
        %1960 = vmatprep.subr.bf16.mxu0 0
        %1961 = vmatpush2.bf16.msra.mxu0 0
        %1962 = vmatprep.subr.bf16.mxu0 0
        %1963 = vmatpush2.bf16.msra.mxu0 0
        %1964 = vmatprep.subr.bf16.mxu0 0
        %1965 = vmatpush2.bf16.msra.mxu0 0
        %1966 = vmatprep.subr.bf16.mxu0 0
        %1967 = vmatpush2.bf16.msra.mxu0 0
        %1968 = vmatprep.mubr.bf16.mxu0 0
        %1969 = vmatmul.mubr.bf16.gmra.mxu0 %v1934
        %v1970 = vpop.f32.mrf.mxu0
        %v1971 = vadd.f32 %v1919, %v1970
        %v1972 = vpop.f32.mrf.mxu0
        %v1973 = vpop.f32.mrf.mxu0
        %v1974 = vadd.f32 %v1919, %v1973
        %v1975 = vpop.f32.mrf.mxu0
        %1976 = vdwg.mxu0
        %v1977 = vld [vmem:[%s10] sm:$0xf]
        %v1978 = vld [vmem:[%s10 + $0x4] sm:$0xf]
        %v1979 = vld [vmem:[%s10 + $0x8] sm:$0xf]
        %v1980 = vld [vmem:[%s10 + $0xc] sm:$0xf]
        %v1981 = vld [vmem:[%s11] sm:$0x1]
        %v1982 = vpack.c.bf16 %v767, %v765
        %v1984 = vlaneseq
        %v1985 = vshrl.u32 %v1984, 7
        %v1986 = vsub.s32 0, %v1985
        %v1987 = vrot.slane %v1981, %v1986
        %v1993 = vunpack.c.l.b16 %v1977
        %v1994 = vunpack.c.l.b16 %v1978
        %v1995 = vunpack.c.l.b16 %v1979
        %v1996 = vunpack.c.l.b16 %v1980
        %v1997 = vpack.c.b16 %v1994, %v1993
        %v1998 = vpack.c.b16 %v1996, %v1995
        %v2002 = vsel %vm768, %v1982, 0
        %2004 = vmatprep.subr.bf16.mxu0 0
        %2005 = vmatpush1.bf16.msra.mxu0 0
        %2006 = vmatprep.subr.bf16.mxu0 0
        %2007 = vmatpush1.bf16.msra.mxu0 0
        %2008 = vmatprep.subr.bf16.mxu0 0
        %2009 = vmatpush1.bf16.msra.mxu0 0
        %2010 = vmatprep.subr.bf16.mxu0 0
        %2011 = vmatpush1.bf16.msra.mxu0 0
        %2012 = vmatprep.subr.bf16.mxu0 0
        %2013 = vmatpush1.bf16.msra.mxu0 0
        %2014 = vmatprep.subr.bf16.mxu0 0
        %2015 = vmatpush1.bf16.msra.mxu0 0
        %2016 = vmatprep.subr.bf16.mxu0 0
        %2017 = vmatpush1.bf16.msra.mxu0 %v1998
        %2018 = vmatprep.subr.bf16.mxu0 0
        %2019 = vmatpush1.bf16.msra.mxu0 %v1997
        %2020 = vmatprep.subr.bf16.mxu0 0
        %2021 = vmatpush2.bf16.msra.mxu0 0
        %2022 = vmatprep.subr.bf16.mxu0 0
        %2023 = vmatpush2.bf16.msra.mxu0 0
        %2024 = vmatprep.subr.bf16.mxu0 0
        %2025 = vmatpush2.bf16.msra.mxu0 0
        %2026 = vmatprep.subr.bf16.mxu0 0
        %2027 = vmatpush2.bf16.msra.mxu0 0
        %2028 = vmatprep.subr.bf16.mxu0 0
        %2029 = vmatpush2.bf16.msra.mxu0 0
        %2030 = vmatprep.subr.bf16.mxu0 0
        %2031 = vmatpush2.bf16.msra.mxu0 0
        %2032 = vmatprep.subr.bf16.mxu0 0
        %2033 = vmatpush2.bf16.msra.mxu0 0
        %2034 = vmatprep.subr.bf16.mxu0 0
        %2035 = vmatpush2.bf16.msra.mxu0 0
        %2036 = vmatprep.mubr.bf16.mxu0 0
        %2037 = vmatmul.mubr.bf16.gmra.mxu0 %v2002
        %v2038 = vpop.f32.mrf.mxu0
        %v2039 = vadd.f32 %v1987, %v2038
        %v2040 = vpop.f32.mrf.mxu0
        %v2041 = vpop.f32.mrf.mxu0
        %v2042 = vadd.f32 %v1987, %v2041
        %v2043 = vpop.f32.mrf.mxu0
        %2044 = vdwg.mxu0
        %2046 = vrot.lane.b32.xlu0 %v1971, 120
        %v2047 = vpop.permute.xlu0 %2046
        %2049 = vrot.lane.b32.xlu0 %v1971, 112
        %v2050 = vpop.permute.xlu0 %2049
        %2052 = vrot.lane.b32.xlu0 %v1971, 104
        %v2053 = vpop.permute.xlu0 %2052
        %v2055 = vpack.c.bf16 %v1971, %v1971
        %v2056 = vpack.c.bf16 %v2047, %v2047
        %v2057 = vpack.c.bf16 %v2050, %v2050
        %v2058 = vpack.c.bf16 %v2053, %v2053
        %2060 = vrot.lane.b32.xlu0 %v2039, 120
        %v2061 = vpop.permute.xlu0 %2060
        %2063 = vrot.lane.b32.xlu0 %v2039, 112
        %v2064 = vpop.permute.xlu0 %2063
        %2066 = vrot.lane.b32.xlu0 %v2039, 104
        %v2067 = vpop.permute.xlu0 %2066
        %v2069 = vpack.c.bf16 %v2039, %v2039
        %v2070 = vpack.c.bf16 %v2061, %v2061
        %v2071 = vpack.c.bf16 %v2064, %v2064
        %v2072 = vpack.c.bf16 %v2067, %v2067
        %v2074 = vsel %vm881, %v2055, 0
        %v2077 = vsel %vm881, %v2069, 0
        %2079 = vmatprep.subr.bf16.mxu0 0
        %2080 = vmatpush1.bf16.xpose.msra.mxu0 0
        %2081 = vmatprep.subr.bf16.mxu0 0
        %2082 = vmatpush1.bf16.xpose.msra.mxu0 0
        %2083 = vmatprep.subr.bf16.mxu0 0
        %2084 = vmatpush1.bf16.xpose.msra.mxu0 0
        %2085 = vmatprep.subr.bf16.mxu0 0
        %2086 = vmatpush1.bf16.xpose.msra.mxu0 0
        %2087 = vmatprep.subr.bf16.mxu0 0
        %2088 = vmatpush1.bf16.xpose.msra.mxu0 0
        %2089 = vmatprep.subr.bf16.mxu0 0
        %2090 = vmatpush1.bf16.xpose.msra.mxu0 0
        %2091 = vmatprep.subr.bf16.mxu0 0
        %2092 = vmatpush1.bf16.xpose.msra.mxu0 0
        %2093 = vmatprep.subr.bf16.mxu0 0
        %2094 = vmatpush1.bf16.xpose.msra.mxu0 %v2077
        %2095 = vmatprep.subr.bf16.mxu0 0
        %2096 = vmatpush2.bf16.xpose.msra.mxu0 0
        %2097 = vmatprep.subr.bf16.mxu0 0
        %2098 = vmatpush2.bf16.xpose.msra.mxu0 0
        %2099 = vmatprep.subr.bf16.mxu0 0
        %2100 = vmatpush2.bf16.xpose.msra.mxu0 0
        %2101 = vmatprep.subr.bf16.mxu0 0
        %2102 = vmatpush2.bf16.xpose.msra.mxu0 0
        %2103 = vmatprep.subr.bf16.mxu0 0
        %2104 = vmatpush2.bf16.xpose.msra.mxu0 0
        %2105 = vmatprep.subr.bf16.mxu0 0
        %2106 = vmatpush2.bf16.xpose.msra.mxu0 0
        %2107 = vmatprep.subr.bf16.mxu0 0
        %2108 = vmatpush2.bf16.xpose.msra.mxu0 0
        %2109 = vmatprep.subr.bf16.mxu0 0
        %2110 = vmatpush2.bf16.xpose.msra.mxu0 0
        %2111 = vmatprep.mubr.bf16.mxu0 0
        %2112 = vmatmul.mubr.bf16.gmra.mxu0 %v2074
        %v2113 = vpop.f32.mrf.mxu0
        %v2114 = vadd.f32 0.0, %v2113
        %v2115 = vpop.f32.mrf.mxu0
        %v2116 = vpop.f32.mrf.mxu0
        %v2117 = vpop.f32.mrf.mxu0
        %2118 = vdwg.mxu0
        %v2120 = vsel %vm881, %v2056, 0
        %v2123 = vsel %vm881, %v2070, 0
        %2125 = vmatprep.subr.bf16.mxu0 0
        %2126 = vmatpush1.bf16.xpose.msra.mxu0 0
        %2127 = vmatprep.subr.bf16.mxu0 0
        %2128 = vmatpush1.bf16.xpose.msra.mxu0 0
        %2129 = vmatprep.subr.bf16.mxu0 0
        %2130 = vmatpush1.bf16.xpose.msra.mxu0 0
        %2131 = vmatprep.subr.bf16.mxu0 0
        %2132 = vmatpush1.bf16.xpose.msra.mxu0 0
        %2133 = vmatprep.subr.bf16.mxu0 0
        %2134 = vmatpush1.bf16.xpose.msra.mxu0 0
        %2135 = vmatprep.subr.bf16.mxu0 0
        %2136 = vmatpush1.bf16.xpose.msra.mxu0 0
        %2137 = vmatprep.subr.bf16.mxu0 0
        %2138 = vmatpush1.bf16.xpose.msra.mxu0 0
        %2139 = vmatprep.subr.bf16.mxu0 0
        %2140 = vmatpush1.bf16.xpose.msra.mxu0 %v2123
        %2141 = vmatprep.subr.bf16.mxu0 0
        %2142 = vmatpush2.bf16.xpose.msra.mxu0 0
        %2143 = vmatprep.subr.bf16.mxu0 0
        %2144 = vmatpush2.bf16.xpose.msra.mxu0 0
        %2145 = vmatprep.subr.bf16.mxu0 0
        %2146 = vmatpush2.bf16.xpose.msra.mxu0 0
        %2147 = vmatprep.subr.bf16.mxu0 0
        %2148 = vmatpush2.bf16.xpose.msra.mxu0 0
        %2149 = vmatprep.subr.bf16.mxu0 0
        %2150 = vmatpush2.bf16.xpose.msra.mxu0 0
        %2151 = vmatprep.subr.bf16.mxu0 0
        %2152 = vmatpush2.bf16.xpose.msra.mxu0 0
        %2153 = vmatprep.subr.bf16.mxu0 0
        %2154 = vmatpush2.bf16.xpose.msra.mxu0 0
        %2155 = vmatprep.subr.bf16.mxu0 0
        %2156 = vmatpush2.bf16.xpose.msra.mxu0 0
        %2157 = vmatprep.mubr.bf16.mxu0 0
        %2158 = vmatmul.mubr.bf16.gmra.mxu0 %v2120
        %v2159 = vpop.f32.mrf.mxu0
        %v2160 = vadd.f32 0.0, %v2159
        %v2161 = vpop.f32.mrf.mxu0
        %v2162 = vpop.f32.mrf.mxu0
        %v2163 = vpop.f32.mrf.mxu0
        %2164 = vdwg.mxu0
        %v2166 = vsel %vm881, %v2057, 0
        %v2169 = vsel %vm881, %v2071, 0
        %2171 = vmatprep.subr.bf16.mxu0 0
        %2172 = vmatpush1.bf16.xpose.msra.mxu0 0
        %2173 = vmatprep.subr.bf16.mxu0 0
        %2174 = vmatpush1.bf16.xpose.msra.mxu0 0
        %2175 = vmatprep.subr.bf16.mxu0 0
        %2176 = vmatpush1.bf16.xpose.msra.mxu0 0
        %2177 = vmatprep.subr.bf16.mxu0 0
        %2178 = vmatpush1.bf16.xpose.msra.mxu0 0
        %2179 = vmatprep.subr.bf16.mxu0 0
        %2180 = vmatpush1.bf16.xpose.msra.mxu0 0
        %2181 = vmatprep.subr.bf16.mxu0 0
        %2182 = vmatpush1.bf16.xpose.msra.mxu0 0
        %2183 = vmatprep.subr.bf16.mxu0 0
        %2184 = vmatpush1.bf16.xpose.msra.mxu0 0
        %2185 = vmatprep.subr.bf16.mxu0 0
        %2186 = vmatpush1.bf16.xpose.msra.mxu0 %v2169
        %2187 = vmatprep.subr.bf16.mxu0 0
        %2188 = vmatpush2.bf16.xpose.msra.mxu0 0
        %2189 = vmatprep.subr.bf16.mxu0 0
        %2190 = vmatpush2.bf16.xpose.msra.mxu0 0
        %2191 = vmatprep.subr.bf16.mxu0 0
        %2192 = vmatpush2.bf16.xpose.msra.mxu0 0
        %2193 = vmatprep.subr.bf16.mxu0 0
        %2194 = vmatpush2.bf16.xpose.msra.mxu0 0
        %2195 = vmatprep.subr.bf16.mxu0 0
        %2196 = vmatpush2.bf16.xpose.msra.mxu0 0
        %2197 = vmatprep.subr.bf16.mxu0 0
        %2198 = vmatpush2.bf16.xpose.msra.mxu0 0
        %2199 = vmatprep.subr.bf16.mxu0 0
        %2200 = vmatpush2.bf16.xpose.msra.mxu0 0
        %2201 = vmatprep.subr.bf16.mxu0 0
        %2202 = vmatpush2.bf16.xpose.msra.mxu0 0
        %2203 = vmatprep.mubr.bf16.mxu0 0
        %2204 = vmatmul.mubr.bf16.gmra.mxu0 %v2166
        %v2205 = vpop.f32.mrf.mxu0
        %v2206 = vadd.f32 0.0, %v2205
        %v2207 = vpop.f32.mrf.mxu0
        %v2208 = vpop.f32.mrf.mxu0
        %v2209 = vpop.f32.mrf.mxu0
        %2210 = vdwg.mxu0
        %v2212 = vsel %vm881, %v2058, 0
        %v2215 = vsel %vm881, %v2072, 0
        %2217 = vmatprep.subr.bf16.mxu0 0
        %2218 = vmatpush1.bf16.xpose.msra.mxu0 0
        %2219 = vmatprep.subr.bf16.mxu0 0
        %2220 = vmatpush1.bf16.xpose.msra.mxu0 0
        %2221 = vmatprep.subr.bf16.mxu0 0
        %2222 = vmatpush1.bf16.xpose.msra.mxu0 0
        %2223 = vmatprep.subr.bf16.mxu0 0
        %2224 = vmatpush1.bf16.xpose.msra.mxu0 0
        %2225 = vmatprep.subr.bf16.mxu0 0
        %2226 = vmatpush1.bf16.xpose.msra.mxu0 0
        %2227 = vmatprep.subr.bf16.mxu0 0
        %2228 = vmatpush1.bf16.xpose.msra.mxu0 0
        %2229 = vmatprep.subr.bf16.mxu0 0
        %2230 = vmatpush1.bf16.xpose.msra.mxu0 0
        %2231 = vmatprep.subr.bf16.mxu0 0
        %2232 = vmatpush1.bf16.xpose.msra.mxu0 %v2215
        %2233 = vmatprep.subr.bf16.mxu0 0
        %2234 = vmatpush2.bf16.xpose.msra.mxu0 0
        %2235 = vmatprep.subr.bf16.mxu0 0
        %2236 = vmatpush2.bf16.xpose.msra.mxu0 0
        %2237 = vmatprep.subr.bf16.mxu0 0
        %2238 = vmatpush2.bf16.xpose.msra.mxu0 0
        %2239 = vmatprep.subr.bf16.mxu0 0
        %2240 = vmatpush2.bf16.xpose.msra.mxu0 0
        %2241 = vmatprep.subr.bf16.mxu0 0
        %2242 = vmatpush2.bf16.xpose.msra.mxu0 0
        %2243 = vmatprep.subr.bf16.mxu0 0
        %2244 = vmatpush2.bf16.xpose.msra.mxu0 0
        %2245 = vmatprep.subr.bf16.mxu0 0
        %2246 = vmatpush2.bf16.xpose.msra.mxu0 0
        %2247 = vmatprep.subr.bf16.mxu0 0
        %2248 = vmatpush2.bf16.xpose.msra.mxu0 0
        %2249 = vmatprep.mubr.bf16.mxu0 0
        %2250 = vmatmul.mubr.bf16.gmra.mxu0 %v2212
        %v2251 = vpop.f32.mrf.mxu0
        %v2252 = vadd.f32 0.0, %v2251
        %v2253 = vpop.f32.mrf.mxu0
        %v2254 = vpop.f32.mrf.mxu0
        %v2255 = vpop.f32.mrf.mxu0
        %2256 = vdwg.mxu0
        %v2257 = vsel %vm881, %v2114, -inf
        %2258 = vmax.xlane.f32.xlu0 %v2257
        %v2259 = vpop.xlane.xlu0 %2258
        %v2260 = vsel %vm881, %v2160, -inf
        %2261 = vmax.xlane.f32.xlu0 %v2260
        %v2262 = vpop.xlane.xlu0 %2261
        %v2263 = vsel %vm881, %v2206, -inf
        %2264 = vmax.xlane.f32.xlu0 %v2263
        %v2265 = vpop.xlane.xlu0 %2264
        %v2266 = vsel %vm881, %v2252, -inf
        %2267 = vmax.xlane.f32.xlu0 %v2266
        %v2268 = vpop.xlane.xlu0 %2267
        %v2269 = vsub.f32 %v2114, %v2259
        %v2270 = vsub.f32 %v2160, %v2262
        %v2271 = vsub.f32 %v2206, %v2265
        %v2272 = vsub.f32 %v2252, %v2268
        %v2273 = vmul.f32 %v2269, 1.442695
        %v2274 = vpow.pop %v2273
        %v2275 = vmul.f32 %v2270, 1.442695
        %v2276 = vpow.pop %v2275
        %v2277 = vmul.f32 %v2271, 1.442695
        %v2278 = vpow.pop %v2277
        %v2279 = vmul.f32 %v2272, 1.442695
        %v2280 = vpow.pop %v2279
        %v2281 = vsel %vm881, %v2274, 0.0
        %2282 = vadd.xlane.f32.xlu0 %v2281
        %v2283 = vpop.xlane.xlu0 %2282
        %v2284 = vsel %vm881, %v2276, 0.0
        %2285 = vadd.xlane.f32.xlu0 %v2284
        %v2286 = vpop.xlane.xlu0 %2285
        %v2287 = vsel %vm881, %v2278, 0.0
        %2288 = vadd.xlane.f32.xlu0 %v2287
        %v2289 = vpop.xlane.xlu0 %2288
        %v2290 = vsel %vm881, %v2280, 0.0
        %2291 = vadd.xlane.f32.xlu0 %v2290
        %v2292 = vpop.xlane.xlu0 %2291
        %v2293 = vrcp.pop %v2283
        %v2294 = vrcp.pop %v2286
        %v2295 = vrcp.pop %v2289
        %v2296 = vrcp.pop %v2292
        %v2297 = vmul.f32 %v2274, %v2293
        %v2298 = vmul.f32 %v2276, %v2294
        %v2299 = vmul.f32 %v2278, %v2295
        %v2300 = vmul.f32 %v2280, %v2296
        %v2301 = vpack.c.bf16 %v2297, %v2297
        %v2302 = vpack.c.bf16 %v2298, %v2298
        %v2303 = vpack.c.bf16 %v2299, %v2299
        %v2304 = vpack.c.bf16 %v2300, %v2300
        %2306 = vrot.lane.b32.xlu0 %v2069, 96
        %v2307 = vpop.permute.xlu0 %2306
        %v2309 = vsel %vm881, %v2301, 0
        %v2312 = vsel %vm1139, %v2307, 0
        %2314 = vmatprep.subr.bf16.mxu0 0
        %2315 = vmatpush1.bf16.msra.mxu0 0
        %2316 = vmatprep.subr.bf16.mxu0 0
        %2317 = vmatpush1.bf16.msra.mxu0 0
        %2318 = vmatprep.subr.bf16.mxu0 0
        %2319 = vmatpush1.bf16.msra.mxu0 0
        %2320 = vmatprep.subr.bf16.mxu0 0
        %2321 = vmatpush1.bf16.msra.mxu0 0
        %2322 = vmatprep.subr.bf16.mxu0 0
        %2323 = vmatpush1.bf16.msra.mxu0 0
        %2324 = vmatprep.subr.bf16.mxu0 0
        %2325 = vmatpush1.bf16.msra.mxu0 0
        %2326 = vmatprep.subr.bf16.mxu0 0
        %2327 = vmatpush1.bf16.msra.mxu0 0
        %2328 = vmatprep.subr.bf16.mxu0 0
        %2329 = vmatpush1.bf16.msra.mxu0 %v2312
        %2330 = vmatprep.subr.bf16.mxu0 0
        %2331 = vmatpush2.bf16.msra.mxu0 0
        %2332 = vmatprep.subr.bf16.mxu0 0
        %2333 = vmatpush2.bf16.msra.mxu0 0
        %2334 = vmatprep.subr.bf16.mxu0 0
        %2335 = vmatpush2.bf16.msra.mxu0 0
        %2336 = vmatprep.subr.bf16.mxu0 0
        %2337 = vmatpush2.bf16.msra.mxu0 0
        %2338 = vmatprep.subr.bf16.mxu0 0
        %2339 = vmatpush2.bf16.msra.mxu0 0
        %2340 = vmatprep.subr.bf16.mxu0 0
        %2341 = vmatpush2.bf16.msra.mxu0 0
        %2342 = vmatprep.subr.bf16.mxu0 0
        %2343 = vmatpush2.bf16.msra.mxu0 0
        %2344 = vmatprep.subr.bf16.mxu0 0
        %2345 = vmatpush2.bf16.msra.mxu0 0
        %2346 = vmatprep.mubr.bf16.mxu0 0
        %2347 = vmatmul.mubr.bf16.gmra.mxu0 %v2309
        %v2348 = vpop.f32.mrf.mxu0
        %v2349 = vadd.f32 0.0, %v2348
        %v2350 = vpop.f32.mrf.mxu0
        %v2351 = vpop.f32.mrf.mxu0
        %v2352 = vpop.f32.mrf.mxu0
        %2353 = vdwg.mxu0
        %2355 = vrot.lane.b32.xlu0 %v2070, 96
        %v2356 = vpop.permute.xlu0 %2355
        %v2358 = vsel %vm881, %v2302, 0
        %v2361 = vsel %vm1139, %v2356, 0
        %2363 = vmatprep.subr.bf16.mxu0 0
        %2364 = vmatpush1.bf16.msra.mxu0 0
        %2365 = vmatprep.subr.bf16.mxu0 0
        %2366 = vmatpush1.bf16.msra.mxu0 0
        %2367 = vmatprep.subr.bf16.mxu0 0
        %2368 = vmatpush1.bf16.msra.mxu0 0
        %2369 = vmatprep.subr.bf16.mxu0 0
        %2370 = vmatpush1.bf16.msra.mxu0 0
        %2371 = vmatprep.subr.bf16.mxu0 0
        %2372 = vmatpush1.bf16.msra.mxu0 0
        %2373 = vmatprep.subr.bf16.mxu0 0
        %2374 = vmatpush1.bf16.msra.mxu0 0
        %2375 = vmatprep.subr.bf16.mxu0 0
        %2376 = vmatpush1.bf16.msra.mxu0 0
        %2377 = vmatprep.subr.bf16.mxu0 0
        %2378 = vmatpush1.bf16.msra.mxu0 %v2361
        %2379 = vmatprep.subr.bf16.mxu0 0
        %2380 = vmatpush2.bf16.msra.mxu0 0
        %2381 = vmatprep.subr.bf16.mxu0 0
        %2382 = vmatpush2.bf16.msra.mxu0 0
        %2383 = vmatprep.subr.bf16.mxu0 0
        %2384 = vmatpush2.bf16.msra.mxu0 0
        %2385 = vmatprep.subr.bf16.mxu0 0
        %2386 = vmatpush2.bf16.msra.mxu0 0
        %2387 = vmatprep.subr.bf16.mxu0 0
        %2388 = vmatpush2.bf16.msra.mxu0 0
        %2389 = vmatprep.subr.bf16.mxu0 0
        %2390 = vmatpush2.bf16.msra.mxu0 0
        %2391 = vmatprep.subr.bf16.mxu0 0
        %2392 = vmatpush2.bf16.msra.mxu0 0
        %2393 = vmatprep.subr.bf16.mxu0 0
        %2394 = vmatpush2.bf16.msra.mxu0 0
        %2395 = vmatprep.mubr.bf16.mxu0 0
        %2396 = vmatmul.mubr.bf16.gmra.mxu0 %v2358
        %v2397 = vpop.f32.mrf.mxu0
        %v2398 = vadd.f32 0.0, %v2397
        %v2399 = vpop.f32.mrf.mxu0
        %v2400 = vpop.f32.mrf.mxu0
        %v2401 = vpop.f32.mrf.mxu0
        %2402 = vdwg.mxu0
        %2404 = vrot.lane.b32.xlu0 %v2071, 96
        %v2405 = vpop.permute.xlu0 %2404
        %v2407 = vsel %vm881, %v2303, 0
        %v2410 = vsel %vm1139, %v2405, 0
        %2412 = vmatprep.subr.bf16.mxu0 0
        %2413 = vmatpush1.bf16.msra.mxu0 0
        %2414 = vmatprep.subr.bf16.mxu0 0
        %2415 = vmatpush1.bf16.msra.mxu0 0
        %2416 = vmatprep.subr.bf16.mxu0 0
        %2417 = vmatpush1.bf16.msra.mxu0 0
        %2418 = vmatprep.subr.bf16.mxu0 0
        %2419 = vmatpush1.bf16.msra.mxu0 0
        %2420 = vmatprep.subr.bf16.mxu0 0
        %2421 = vmatpush1.bf16.msra.mxu0 0
        %2422 = vmatprep.subr.bf16.mxu0 0
        %2423 = vmatpush1.bf16.msra.mxu0 0
        %2424 = vmatprep.subr.bf16.mxu0 0
        %2425 = vmatpush1.bf16.msra.mxu0 0
        %2426 = vmatprep.subr.bf16.mxu0 0
        %2427 = vmatpush1.bf16.msra.mxu0 %v2410
        %2428 = vmatprep.subr.bf16.mxu0 0
        %2429 = vmatpush2.bf16.msra.mxu0 0
        %2430 = vmatprep.subr.bf16.mxu0 0
        %2431 = vmatpush2.bf16.msra.mxu0 0
        %2432 = vmatprep.subr.bf16.mxu0 0
        %2433 = vmatpush2.bf16.msra.mxu0 0
        %2434 = vmatprep.subr.bf16.mxu0 0
        %2435 = vmatpush2.bf16.msra.mxu0 0
        %2436 = vmatprep.subr.bf16.mxu0 0
        %2437 = vmatpush2.bf16.msra.mxu0 0
        %2438 = vmatprep.subr.bf16.mxu0 0
        %2439 = vmatpush2.bf16.msra.mxu0 0
        %2440 = vmatprep.subr.bf16.mxu0 0
        %2441 = vmatpush2.bf16.msra.mxu0 0
        %2442 = vmatprep.subr.bf16.mxu0 0
        %2443 = vmatpush2.bf16.msra.mxu0 0
        %2444 = vmatprep.mubr.bf16.mxu0 0
        %2445 = vmatmul.mubr.bf16.gmra.mxu0 %v2407
        %v2446 = vpop.f32.mrf.mxu0
        %v2447 = vadd.f32 0.0, %v2446
        %v2448 = vpop.f32.mrf.mxu0
        %v2449 = vpop.f32.mrf.mxu0
        %v2450 = vpop.f32.mrf.mxu0
        %2451 = vdwg.mxu0
        %2453 = vrot.lane.b32.xlu0 %v2072, 96
        %v2454 = vpop.permute.xlu0 %2453
        %v2456 = vsel %vm881, %v2304, 0
        %v2459 = vsel %vm1139, %v2454, 0
        %2461 = vmatprep.subr.bf16.mxu0 0
        %2462 = vmatpush1.bf16.msra.mxu0 0
        %2463 = vmatprep.subr.bf16.mxu0 0
        %2464 = vmatpush1.bf16.msra.mxu0 0
        %2465 = vmatprep.subr.bf16.mxu0 0
        %2466 = vmatpush1.bf16.msra.mxu0 0
        %2467 = vmatprep.subr.bf16.mxu0 0
        %2468 = vmatpush1.bf16.msra.mxu0 0
        %2469 = vmatprep.subr.bf16.mxu0 0
        %2470 = vmatpush1.bf16.msra.mxu0 0
        %2471 = vmatprep.subr.bf16.mxu0 0
        %2472 = vmatpush1.bf16.msra.mxu0 0
        %2473 = vmatprep.subr.bf16.mxu0 0
        %2474 = vmatpush1.bf16.msra.mxu0 0
        %2475 = vmatprep.subr.bf16.mxu0 0
        %2476 = vmatpush1.bf16.msra.mxu0 %v2459
        %2477 = vmatprep.subr.bf16.mxu0 0
        %2478 = vmatpush2.bf16.msra.mxu0 0
        %2479 = vmatprep.subr.bf16.mxu0 0
        %2480 = vmatpush2.bf16.msra.mxu0 0
        %2481 = vmatprep.subr.bf16.mxu0 0
        %2482 = vmatpush2.bf16.msra.mxu0 0
        %2483 = vmatprep.subr.bf16.mxu0 0
        %2484 = vmatpush2.bf16.msra.mxu0 0
        %2485 = vmatprep.subr.bf16.mxu0 0
        %2486 = vmatpush2.bf16.msra.mxu0 0
        %2487 = vmatprep.subr.bf16.mxu0 0
        %2488 = vmatpush2.bf16.msra.mxu0 0
        %2489 = vmatprep.subr.bf16.mxu0 0
        %2490 = vmatpush2.bf16.msra.mxu0 0
        %2491 = vmatprep.subr.bf16.mxu0 0
        %2492 = vmatpush2.bf16.msra.mxu0 0
        %2493 = vmatprep.mubr.bf16.mxu0 0
        %2494 = vmatmul.mubr.bf16.gmra.mxu0 %v2456
        %v2495 = vpop.f32.mrf.mxu0
        %v2496 = vadd.f32 0.0, %v2495
        %v2497 = vpop.f32.mrf.mxu0
        %v2498 = vpop.f32.mrf.mxu0
        %v2499 = vpop.f32.mrf.mxu0
        %2500 = vdwg.mxu0
        %2502 = vrot.lane.b32.xlu0 %v2398, 8
        %v2503 = vpop.permute.xlu0 %2502
        %2506 = vrot.lane.b32.xlu0 %v2447, 16
        %v2507 = vpop.permute.xlu0 %2506
        %2510 = vrot.lane.b32.xlu0 %v2496, 24
        %v2511 = vpop.permute.xlu0 %2510
        %v2513 = vsel %vm881, %v2349, %v2503
        %v2514 = vsel %vm1340, %v2513, %v2507
        %v2515 = vsel %vm1342, %v2514, %v2511
        %2517 = vrot.lane.b32.xlu0 %v1974, 120
        %v2518 = vpop.permute.xlu0 %2517
        %2520 = vrot.lane.b32.xlu0 %v1974, 112
        %v2521 = vpop.permute.xlu0 %2520
        %2523 = vrot.lane.b32.xlu0 %v1974, 104
        %v2524 = vpop.permute.xlu0 %2523
        %v2526 = vpack.c.bf16 %v1974, %v1974
        %v2527 = vpack.c.bf16 %v2518, %v2518
        %v2528 = vpack.c.bf16 %v2521, %v2521
        %v2529 = vpack.c.bf16 %v2524, %v2524
        %2531 = vrot.lane.b32.xlu0 %v2042, 120
        %v2532 = vpop.permute.xlu0 %2531
        %2534 = vrot.lane.b32.xlu0 %v2042, 112
        %v2535 = vpop.permute.xlu0 %2534
        %2537 = vrot.lane.b32.xlu0 %v2042, 104
        %v2538 = vpop.permute.xlu0 %2537
        %v2540 = vpack.c.bf16 %v2042, %v2042
        %v2541 = vpack.c.bf16 %v2532, %v2532
        %v2542 = vpack.c.bf16 %v2535, %v2535
        %v2543 = vpack.c.bf16 %v2538, %v2538
        %v2545 = vsel %vm881, %v2526, 0
        %v2548 = vsel %vm881, %v2540, 0
        %2550 = vmatprep.subr.bf16.mxu0 0
        %2551 = vmatpush1.bf16.xpose.msra.mxu0 0
        %2552 = vmatprep.subr.bf16.mxu0 0
        %2553 = vmatpush1.bf16.xpose.msra.mxu0 0
        %2554 = vmatprep.subr.bf16.mxu0 0
        %2555 = vmatpush1.bf16.xpose.msra.mxu0 0
        %2556 = vmatprep.subr.bf16.mxu0 0
        %2557 = vmatpush1.bf16.xpose.msra.mxu0 0
        %2558 = vmatprep.subr.bf16.mxu0 0
        %2559 = vmatpush1.bf16.xpose.msra.mxu0 0
        %2560 = vmatprep.subr.bf16.mxu0 0
        %2561 = vmatpush1.bf16.xpose.msra.mxu0 0
        %2562 = vmatprep.subr.bf16.mxu0 0
        %2563 = vmatpush1.bf16.xpose.msra.mxu0 0
        %2564 = vmatprep.subr.bf16.mxu0 0
        %2565 = vmatpush1.bf16.xpose.msra.mxu0 %v2548
        %2566 = vmatprep.subr.bf16.mxu0 0
        %2567 = vmatpush2.bf16.xpose.msra.mxu0 0
        %2568 = vmatprep.subr.bf16.mxu0 0
        %2569 = vmatpush2.bf16.xpose.msra.mxu0 0
        %2570 = vmatprep.subr.bf16.mxu0 0
        %2571 = vmatpush2.bf16.xpose.msra.mxu0 0
        %2572 = vmatprep.subr.bf16.mxu0 0
        %2573 = vmatpush2.bf16.xpose.msra.mxu0 0
        %2574 = vmatprep.subr.bf16.mxu0 0
        %2575 = vmatpush2.bf16.xpose.msra.mxu0 0
        %2576 = vmatprep.subr.bf16.mxu0 0
        %2577 = vmatpush2.bf16.xpose.msra.mxu0 0
        %2578 = vmatprep.subr.bf16.mxu0 0
        %2579 = vmatpush2.bf16.xpose.msra.mxu0 0
        %2580 = vmatprep.subr.bf16.mxu0 0
        %2581 = vmatpush2.bf16.xpose.msra.mxu0 0
        %2582 = vmatprep.mubr.bf16.mxu0 0
        %2583 = vmatmul.mubr.bf16.gmra.mxu0 %v2545
        %v2584 = vpop.f32.mrf.mxu0
        %v2585 = vadd.f32 0.0, %v2584
        %v2586 = vpop.f32.mrf.mxu0
        %v2587 = vpop.f32.mrf.mxu0
        %v2588 = vpop.f32.mrf.mxu0
        %2589 = vdwg.mxu0
        %v2591 = vsel %vm881, %v2527, 0
        %v2594 = vsel %vm881, %v2541, 0
        %2596 = vmatprep.subr.bf16.mxu0 0
        %2597 = vmatpush1.bf16.xpose.msra.mxu0 0
        %2598 = vmatprep.subr.bf16.mxu0 0
        %2599 = vmatpush1.bf16.xpose.msra.mxu0 0
        %2600 = vmatprep.subr.bf16.mxu0 0
        %2601 = vmatpush1.bf16.xpose.msra.mxu0 0
        %2602 = vmatprep.subr.bf16.mxu0 0
        %2603 = vmatpush1.bf16.xpose.msra.mxu0 0
        %2604 = vmatprep.subr.bf16.mxu0 0
        %2605 = vmatpush1.bf16.xpose.msra.mxu0 0
        %2606 = vmatprep.subr.bf16.mxu0 0
        %2607 = vmatpush1.bf16.xpose.msra.mxu0 0
        %2608 = vmatprep.subr.bf16.mxu0 0
        %2609 = vmatpush1.bf16.xpose.msra.mxu0 0
        %2610 = vmatprep.subr.bf16.mxu0 0
        %2611 = vmatpush1.bf16.xpose.msra.mxu0 %v2594
        %2612 = vmatprep.subr.bf16.mxu0 0
        %2613 = vmatpush2.bf16.xpose.msra.mxu0 0
        %2614 = vmatprep.subr.bf16.mxu0 0
        %2615 = vmatpush2.bf16.xpose.msra.mxu0 0
        %2616 = vmatprep.subr.bf16.mxu0 0
        %2617 = vmatpush2.bf16.xpose.msra.mxu0 0
        %2618 = vmatprep.subr.bf16.mxu0 0
        %2619 = vmatpush2.bf16.xpose.msra.mxu0 0
        %2620 = vmatprep.subr.bf16.mxu0 0
        %2621 = vmatpush2.bf16.xpose.msra.mxu0 0
        %2622 = vmatprep.subr.bf16.mxu0 0
        %2623 = vmatpush2.bf16.xpose.msra.mxu0 0
        %2624 = vmatprep.subr.bf16.mxu0 0
        %2625 = vmatpush2.bf16.xpose.msra.mxu0 0
        %2626 = vmatprep.subr.bf16.mxu0 0
        %2627 = vmatpush2.bf16.xpose.msra.mxu0 0
        %2628 = vmatprep.mubr.bf16.mxu0 0
        %2629 = vmatmul.mubr.bf16.gmra.mxu0 %v2591
        %v2630 = vpop.f32.mrf.mxu0
        %v2631 = vadd.f32 0.0, %v2630
        %v2632 = vpop.f32.mrf.mxu0
        %v2633 = vpop.f32.mrf.mxu0
        %v2634 = vpop.f32.mrf.mxu0
        %2635 = vdwg.mxu0
        %v2637 = vsel %vm881, %v2528, 0
        %v2640 = vsel %vm881, %v2542, 0
        %2642 = vmatprep.subr.bf16.mxu0 0
        %2643 = vmatpush1.bf16.xpose.msra.mxu0 0
        %2644 = vmatprep.subr.bf16.mxu0 0
        %2645 = vmatpush1.bf16.xpose.msra.mxu0 0
        %2646 = vmatprep.subr.bf16.mxu0 0
        %2647 = vmatpush1.bf16.xpose.msra.mxu0 0
        %2648 = vmatprep.subr.bf16.mxu0 0
        %2649 = vmatpush1.bf16.xpose.msra.mxu0 0
        %2650 = vmatprep.subr.bf16.mxu0 0
        %2651 = vmatpush1.bf16.xpose.msra.mxu0 0
        %2652 = vmatprep.subr.bf16.mxu0 0
        %2653 = vmatpush1.bf16.xpose.msra.mxu0 0
        %2654 = vmatprep.subr.bf16.mxu0 0
        %2655 = vmatpush1.bf16.xpose.msra.mxu0 0
        %2656 = vmatprep.subr.bf16.mxu0 0
        %2657 = vmatpush1.bf16.xpose.msra.mxu0 %v2640
        %2658 = vmatprep.subr.bf16.mxu0 0
        %2659 = vmatpush2.bf16.xpose.msra.mxu0 0
        %2660 = vmatprep.subr.bf16.mxu0 0
        %2661 = vmatpush2.bf16.xpose.msra.mxu0 0
        %2662 = vmatprep.subr.bf16.mxu0 0
        %2663 = vmatpush2.bf16.xpose.msra.mxu0 0
        %2664 = vmatprep.subr.bf16.mxu0 0
        %2665 = vmatpush2.bf16.xpose.msra.mxu0 0
        %2666 = vmatprep.subr.bf16.mxu0 0
        %2667 = vmatpush2.bf16.xpose.msra.mxu0 0
        %2668 = vmatprep.subr.bf16.mxu0 0
        %2669 = vmatpush2.bf16.xpose.msra.mxu0 0
        %2670 = vmatprep.subr.bf16.mxu0 0
        %2671 = vmatpush2.bf16.xpose.msra.mxu0 0
        %2672 = vmatprep.subr.bf16.mxu0 0
        %2673 = vmatpush2.bf16.xpose.msra.mxu0 0
        %2674 = vmatprep.mubr.bf16.mxu0 0
        %2675 = vmatmul.mubr.bf16.gmra.mxu0 %v2637
        %v2676 = vpop.f32.mrf.mxu0
        %v2677 = vadd.f32 0.0, %v2676
        %v2678 = vpop.f32.mrf.mxu0
        %v2679 = vpop.f32.mrf.mxu0
        %v2680 = vpop.f32.mrf.mxu0
        %2681 = vdwg.mxu0
        %v2683 = vsel %vm881, %v2529, 0
        %v2686 = vsel %vm881, %v2543, 0
        %2688 = vmatprep.subr.bf16.mxu0 0
        %2689 = vmatpush1.bf16.xpose.msra.mxu0 0
        %2690 = vmatprep.subr.bf16.mxu0 0
        %2691 = vmatpush1.bf16.xpose.msra.mxu0 0
        %2692 = vmatprep.subr.bf16.mxu0 0
        %2693 = vmatpush1.bf16.xpose.msra.mxu0 0
        %2694 = vmatprep.subr.bf16.mxu0 0
        %2695 = vmatpush1.bf16.xpose.msra.mxu0 0
        %2696 = vmatprep.subr.bf16.mxu0 0
        %2697 = vmatpush1.bf16.xpose.msra.mxu0 0
        %2698 = vmatprep.subr.bf16.mxu0 0
        %2699 = vmatpush1.bf16.xpose.msra.mxu0 0
        %2700 = vmatprep.subr.bf16.mxu0 0
        %2701 = vmatpush1.bf16.xpose.msra.mxu0 0
        %2702 = vmatprep.subr.bf16.mxu0 0
        %2703 = vmatpush1.bf16.xpose.msra.mxu0 %v2686
        %2704 = vmatprep.subr.bf16.mxu0 0
        %2705 = vmatpush2.bf16.xpose.msra.mxu0 0
        %2706 = vmatprep.subr.bf16.mxu0 0
        %2707 = vmatpush2.bf16.xpose.msra.mxu0 0
        %2708 = vmatprep.subr.bf16.mxu0 0
        %2709 = vmatpush2.bf16.xpose.msra.mxu0 0
        %2710 = vmatprep.subr.bf16.mxu0 0
        %2711 = vmatpush2.bf16.xpose.msra.mxu0 0
        %2712 = vmatprep.subr.bf16.mxu0 0
        %2713 = vmatpush2.bf16.xpose.msra.mxu0 0
        %2714 = vmatprep.subr.bf16.mxu0 0
        %2715 = vmatpush2.bf16.xpose.msra.mxu0 0
        %2716 = vmatprep.subr.bf16.mxu0 0
        %2717 = vmatpush2.bf16.xpose.msra.mxu0 0
        %2718 = vmatprep.subr.bf16.mxu0 0
        %2719 = vmatpush2.bf16.xpose.msra.mxu0 0
        %2720 = vmatprep.mubr.bf16.mxu0 0
        %2721 = vmatmul.mubr.bf16.gmra.mxu0 %v2683
        %v2722 = vpop.f32.mrf.mxu0
        %v2723 = vadd.f32 0.0, %v2722
        %v2724 = vpop.f32.mrf.mxu0
        %v2725 = vpop.f32.mrf.mxu0
        %v2726 = vpop.f32.mrf.mxu0
        %2727 = vdwg.mxu0
        %v2728 = vsel %vm881, %v2585, -inf
        %2729 = vmax.xlane.f32.xlu0 %v2728
        %v2730 = vpop.xlane.xlu0 %2729
        %v2731 = vsel %vm881, %v2631, -inf
        %2732 = vmax.xlane.f32.xlu0 %v2731
        %v2733 = vpop.xlane.xlu0 %2732
        %v2734 = vsel %vm881, %v2677, -inf
        %2735 = vmax.xlane.f32.xlu0 %v2734
        %v2736 = vpop.xlane.xlu0 %2735
        %v2737 = vsel %vm881, %v2723, -inf
        %2738 = vmax.xlane.f32.xlu0 %v2737
        %v2739 = vpop.xlane.xlu0 %2738
        %v2740 = vsub.f32 %v2585, %v2730
        %v2741 = vsub.f32 %v2631, %v2733
        %v2742 = vsub.f32 %v2677, %v2736
        %v2743 = vsub.f32 %v2723, %v2739
        %v2744 = vmul.f32 %v2740, 1.442695
        %v2745 = vpow.pop %v2744
        %v2746 = vmul.f32 %v2741, 1.442695
        %v2747 = vpow.pop %v2746
        %v2748 = vmul.f32 %v2742, 1.442695
        %v2749 = vpow.pop %v2748
        %v2750 = vmul.f32 %v2743, 1.442695
        %v2751 = vpow.pop %v2750
        %v2752 = vsel %vm881, %v2745, 0.0
        %2753 = vadd.xlane.f32.xlu0 %v2752
        %v2754 = vpop.xlane.xlu0 %2753
        %v2755 = vsel %vm881, %v2747, 0.0
        %2756 = vadd.xlane.f32.xlu0 %v2755
        %v2757 = vpop.xlane.xlu0 %2756
        %v2758 = vsel %vm881, %v2749, 0.0
        %2759 = vadd.xlane.f32.xlu0 %v2758
        %v2760 = vpop.xlane.xlu0 %2759
        %v2761 = vsel %vm881, %v2751, 0.0
        %2762 = vadd.xlane.f32.xlu0 %v2761
        %v2763 = vpop.xlane.xlu0 %2762
        %v2764 = vrcp.pop %v2754
        %v2765 = vrcp.pop %v2757
        %v2766 = vrcp.pop %v2760
        %v2767 = vrcp.pop %v2763
        %v2768 = vmul.f32 %v2745, %v2764
        %v2769 = vmul.f32 %v2747, %v2765
        %v2770 = vmul.f32 %v2749, %v2766
        %v2771 = vmul.f32 %v2751, %v2767
        %v2772 = vpack.c.bf16 %v2768, %v2768
        %v2773 = vpack.c.bf16 %v2769, %v2769
        %v2774 = vpack.c.bf16 %v2770, %v2770
        %v2775 = vpack.c.bf16 %v2771, %v2771
        %2777 = vrot.lane.b32.xlu0 %v2540, 96
        %v2778 = vpop.permute.xlu0 %2777
        %v2780 = vsel %vm881, %v2772, 0
        %v2783 = vsel %vm1139, %v2778, 0
        %2785 = vmatprep.subr.bf16.mxu0 0
        %2786 = vmatpush1.bf16.msra.mxu0 0
        %2787 = vmatprep.subr.bf16.mxu0 0
        %2788 = vmatpush1.bf16.msra.mxu0 0
        %2789 = vmatprep.subr.bf16.mxu0 0
        %2790 = vmatpush1.bf16.msra.mxu0 0
        %2791 = vmatprep.subr.bf16.mxu0 0
        %2792 = vmatpush1.bf16.msra.mxu0 0
        %2793 = vmatprep.subr.bf16.mxu0 0
        %2794 = vmatpush1.bf16.msra.mxu0 0
        %2795 = vmatprep.subr.bf16.mxu0 0
        %2796 = vmatpush1.bf16.msra.mxu0 0
        %2797 = vmatprep.subr.bf16.mxu0 0
        %2798 = vmatpush1.bf16.msra.mxu0 0
        %2799 = vmatprep.subr.bf16.mxu0 0
        %2800 = vmatpush1.bf16.msra.mxu0 %v2783
        %2801 = vmatprep.subr.bf16.mxu0 0
        %2802 = vmatpush2.bf16.msra.mxu0 0
        %2803 = vmatprep.subr.bf16.mxu0 0
        %2804 = vmatpush2.bf16.msra.mxu0 0
        %2805 = vmatprep.subr.bf16.mxu0 0
        %2806 = vmatpush2.bf16.msra.mxu0 0
        %2807 = vmatprep.subr.bf16.mxu0 0
        %2808 = vmatpush2.bf16.msra.mxu0 0
        %2809 = vmatprep.subr.bf16.mxu0 0
        %2810 = vmatpush2.bf16.msra.mxu0 0
        %2811 = vmatprep.subr.bf16.mxu0 0
        %2812 = vmatpush2.bf16.msra.mxu0 0
        %2813 = vmatprep.subr.bf16.mxu0 0
        %2814 = vmatpush2.bf16.msra.mxu0 0
        %2815 = vmatprep.subr.bf16.mxu0 0
        %2816 = vmatpush2.bf16.msra.mxu0 0
        %2817 = vmatprep.mubr.bf16.mxu0 0
        %2818 = vmatmul.mubr.bf16.gmra.mxu0 %v2780
        %v2819 = vpop.f32.mrf.mxu0
        %v2820 = vadd.f32 0.0, %v2819
        %v2821 = vpop.f32.mrf.mxu0
        %v2822 = vpop.f32.mrf.mxu0
        %v2823 = vpop.f32.mrf.mxu0
        %2824 = vdwg.mxu0
        %2826 = vrot.lane.b32.xlu0 %v2541, 96
        %v2827 = vpop.permute.xlu0 %2826
        %v2829 = vsel %vm881, %v2773, 0
        %v2832 = vsel %vm1139, %v2827, 0
        %2834 = vmatprep.subr.bf16.mxu0 0
        %2835 = vmatpush1.bf16.msra.mxu0 0
        %2836 = vmatprep.subr.bf16.mxu0 0
        %2837 = vmatpush1.bf16.msra.mxu0 0
        %2838 = vmatprep.subr.bf16.mxu0 0
        %2839 = vmatpush1.bf16.msra.mxu0 0
        %2840 = vmatprep.subr.bf16.mxu0 0
        %2841 = vmatpush1.bf16.msra.mxu0 0
        %2842 = vmatprep.subr.bf16.mxu0 0
        %2843 = vmatpush1.bf16.msra.mxu0 0
        %2844 = vmatprep.subr.bf16.mxu0 0
        %2845 = vmatpush1.bf16.msra.mxu0 0
        %2846 = vmatprep.subr.bf16.mxu0 0
        %2847 = vmatpush1.bf16.msra.mxu0 0
        %2848 = vmatprep.subr.bf16.mxu0 0
        %2849 = vmatpush1.bf16.msra.mxu0 %v2832
        %2850 = vmatprep.subr.bf16.mxu0 0
        %2851 = vmatpush2.bf16.msra.mxu0 0
        %2852 = vmatprep.subr.bf16.mxu0 0
        %2853 = vmatpush2.bf16.msra.mxu0 0
        %2854 = vmatprep.subr.bf16.mxu0 0
        %2855 = vmatpush2.bf16.msra.mxu0 0
        %2856 = vmatprep.subr.bf16.mxu0 0
        %2857 = vmatpush2.bf16.msra.mxu0 0
        %2858 = vmatprep.subr.bf16.mxu0 0
        %2859 = vmatpush2.bf16.msra.mxu0 0
        %2860 = vmatprep.subr.bf16.mxu0 0
        %2861 = vmatpush2.bf16.msra.mxu0 0
        %2862 = vmatprep.subr.bf16.mxu0 0
        %2863 = vmatpush2.bf16.msra.mxu0 0
        %2864 = vmatprep.subr.bf16.mxu0 0
        %2865 = vmatpush2.bf16.msra.mxu0 0
        %2866 = vmatprep.mubr.bf16.mxu0 0
        %2867 = vmatmul.mubr.bf16.gmra.mxu0 %v2829
        %v2868 = vpop.f32.mrf.mxu0
        %v2869 = vadd.f32 0.0, %v2868
        %v2870 = vpop.f32.mrf.mxu0
        %v2871 = vpop.f32.mrf.mxu0
        %v2872 = vpop.f32.mrf.mxu0
        %2873 = vdwg.mxu0
        %2875 = vrot.lane.b32.xlu0 %v2542, 96
        %v2876 = vpop.permute.xlu0 %2875
        %v2878 = vsel %vm881, %v2774, 0
        %v2881 = vsel %vm1139, %v2876, 0
        %2883 = vmatprep.subr.bf16.mxu0 0
        %2884 = vmatpush1.bf16.msra.mxu0 0
        %2885 = vmatprep.subr.bf16.mxu0 0
        %2886 = vmatpush1.bf16.msra.mxu0 0
        %2887 = vmatprep.subr.bf16.mxu0 0
        %2888 = vmatpush1.bf16.msra.mxu0 0
        %2889 = vmatprep.subr.bf16.mxu0 0
        %2890 = vmatpush1.bf16.msra.mxu0 0
        %2891 = vmatprep.subr.bf16.mxu0 0
        %2892 = vmatpush1.bf16.msra.mxu0 0
        %2893 = vmatprep.subr.bf16.mxu0 0
        %2894 = vmatpush1.bf16.msra.mxu0 0
        %2895 = vmatprep.subr.bf16.mxu0 0
        %2896 = vmatpush1.bf16.msra.mxu0 0
        %2897 = vmatprep.subr.bf16.mxu0 0
        %2898 = vmatpush1.bf16.msra.mxu0 %v2881
        %2899 = vmatprep.subr.bf16.mxu0 0
        %2900 = vmatpush2.bf16.msra.mxu0 0
        %2901 = vmatprep.subr.bf16.mxu0 0
        %2902 = vmatpush2.bf16.msra.mxu0 0
        %2903 = vmatprep.subr.bf16.mxu0 0
        %2904 = vmatpush2.bf16.msra.mxu0 0
        %2905 = vmatprep.subr.bf16.mxu0 0
        %2906 = vmatpush2.bf16.msra.mxu0 0
        %2907 = vmatprep.subr.bf16.mxu0 0
        %2908 = vmatpush2.bf16.msra.mxu0 0
        %2909 = vmatprep.subr.bf16.mxu0 0
        %2910 = vmatpush2.bf16.msra.mxu0 0
        %2911 = vmatprep.subr.bf16.mxu0 0
        %2912 = vmatpush2.bf16.msra.mxu0 0
        %2913 = vmatprep.subr.bf16.mxu0 0
        %2914 = vmatpush2.bf16.msra.mxu0 0
        %2915 = vmatprep.mubr.bf16.mxu0 0
        %2916 = vmatmul.mubr.bf16.gmra.mxu0 %v2878
        %v2917 = vpop.f32.mrf.mxu0
        %v2918 = vadd.f32 0.0, %v2917
        %v2919 = vpop.f32.mrf.mxu0
        %v2920 = vpop.f32.mrf.mxu0
        %v2921 = vpop.f32.mrf.mxu0
        %2922 = vdwg.mxu0
        %2924 = vrot.lane.b32.xlu0 %v2543, 96
        %v2925 = vpop.permute.xlu0 %2924
        %v2927 = vsel %vm881, %v2775, 0
        %v2930 = vsel %vm1139, %v2925, 0
        %2932 = vmatprep.subr.bf16.mxu0 0
        %2933 = vmatpush1.bf16.msra.mxu0 0
        %2934 = vmatprep.subr.bf16.mxu0 0
        %2935 = vmatpush1.bf16.msra.mxu0 0
        %2936 = vmatprep.subr.bf16.mxu0 0
        %2937 = vmatpush1.bf16.msra.mxu0 0
        %2938 = vmatprep.subr.bf16.mxu0 0
        %2939 = vmatpush1.bf16.msra.mxu0 0
        %2940 = vmatprep.subr.bf16.mxu0 0
        %2941 = vmatpush1.bf16.msra.mxu0 0
        %2942 = vmatprep.subr.bf16.mxu0 0
        %2943 = vmatpush1.bf16.msra.mxu0 0
        %2944 = vmatprep.subr.bf16.mxu0 0
        %2945 = vmatpush1.bf16.msra.mxu0 0
        %2946 = vmatprep.subr.bf16.mxu0 0
        %2947 = vmatpush1.bf16.msra.mxu0 %v2930
        %2948 = vmatprep.subr.bf16.mxu0 0
        %2949 = vmatpush2.bf16.msra.mxu0 0
        %2950 = vmatprep.subr.bf16.mxu0 0
        %2951 = vmatpush2.bf16.msra.mxu0 0
        %2952 = vmatprep.subr.bf16.mxu0 0
        %2953 = vmatpush2.bf16.msra.mxu0 0
        %2954 = vmatprep.subr.bf16.mxu0 0
        %2955 = vmatpush2.bf16.msra.mxu0 0
        %2956 = vmatprep.subr.bf16.mxu0 0
        %2957 = vmatpush2.bf16.msra.mxu0 0
        %2958 = vmatprep.subr.bf16.mxu0 0
        %2959 = vmatpush2.bf16.msra.mxu0 0
        %2960 = vmatprep.subr.bf16.mxu0 0
        %2961 = vmatpush2.bf16.msra.mxu0 0
        %2962 = vmatprep.subr.bf16.mxu0 0
        %2963 = vmatpush2.bf16.msra.mxu0 0
        %2964 = vmatprep.mubr.bf16.mxu0 0
        %2965 = vmatmul.mubr.bf16.gmra.mxu0 %v2927
        %v2966 = vpop.f32.mrf.mxu0
        %v2967 = vadd.f32 0.0, %v2966
        %v2968 = vpop.f32.mrf.mxu0
        %v2969 = vpop.f32.mrf.mxu0
        %v2970 = vpop.f32.mrf.mxu0
        %2971 = vdwg.mxu0
        %2973 = vrot.lane.b32.xlu0 %v2869, 8
        %v2974 = vpop.permute.xlu0 %2973
        %2977 = vrot.lane.b32.xlu0 %v2918, 16
        %v2978 = vpop.permute.xlu0 %2977
        %2981 = vrot.lane.b32.xlu0 %v2967, 24
        %v2982 = vpop.permute.xlu0 %2981
        %v2984 = vsel %vm881, %v2820, %v2974
        %v2985 = vsel %vm1340, %v2984, %v2978
        %v2986 = vsel %vm1342, %v2985, %v2982
        %v2987 = vld [vmem:[#allocation16] sm:$0xf]
        %v2988 = vld [vmem:[#allocation16 + $0x4] sm:$0xf]
        %v2989 = vld [vmem:[#allocation16 + $0x8] sm:$0xf]
        %v2990 = vld [vmem:[#allocation16 + $0xc] sm:$0xf]
        %v2991 = vld [vmem:[%s13] sm:$0x1]
        %v2992 = vpack.c.bf16 %v2986, %v2515
        %v2994 = vlaneseq
        %v2995 = vshrl.u32 %v2994, 7
        %v2996 = vsub.s32 0, %v2995
        %v2997 = vrot.slane %v2991, %v2996
        %v3003 = vunpack.c.l.b16 %v2987
        %v3004 = vunpack.c.l.b16 %v2988
        %v3005 = vunpack.c.l.b16 %v2989
        %v3006 = vunpack.c.l.b16 %v2990
        %v3007 = vpack.c.b16 %v3004, %v3003
        %v3008 = vpack.c.b16 %v3006, %v3005
        %v3012 = vsel %vm768, %v2992, 0
        %3014 = vmatprep.subr.bf16.mxu0 0
        %3015 = vmatpush1.bf16.msra.mxu0 0
        %3016 = vmatprep.subr.bf16.mxu0 0
        %3017 = vmatpush1.bf16.msra.mxu0 0
        %3018 = vmatprep.subr.bf16.mxu0 0
        %3019 = vmatpush1.bf16.msra.mxu0 0
        %3020 = vmatprep.subr.bf16.mxu0 0
        %3021 = vmatpush1.bf16.msra.mxu0 0
        %3022 = vmatprep.subr.bf16.mxu0 0
        %3023 = vmatpush1.bf16.msra.mxu0 0
        %3024 = vmatprep.subr.bf16.mxu0 0
        %3025 = vmatpush1.bf16.msra.mxu0 0
        %3026 = vmatprep.subr.bf16.mxu0 0
        %3027 = vmatpush1.bf16.msra.mxu0 %v3008
        %3028 = vmatprep.subr.bf16.mxu0 0
        %3029 = vmatpush1.bf16.msra.mxu0 %v3007
        %3030 = vmatprep.subr.bf16.mxu0 0
        %3031 = vmatpush2.bf16.msra.mxu0 0
        %3032 = vmatprep.subr.bf16.mxu0 0
        %3033 = vmatpush2.bf16.msra.mxu0 0
        %3034 = vmatprep.subr.bf16.mxu0 0
        %3035 = vmatpush2.bf16.msra.mxu0 0
        %3036 = vmatprep.subr.bf16.mxu0 0
        %3037 = vmatpush2.bf16.msra.mxu0 0
        %3038 = vmatprep.subr.bf16.mxu0 0
        %3039 = vmatpush2.bf16.msra.mxu0 0
        %3040 = vmatprep.subr.bf16.mxu0 0
        %3041 = vmatpush2.bf16.msra.mxu0 0
        %3042 = vmatprep.subr.bf16.mxu0 0
        %3043 = vmatpush2.bf16.msra.mxu0 0
        %3044 = vmatprep.subr.bf16.mxu0 0
        %3045 = vmatpush2.bf16.msra.mxu0 0
        %3046 = vmatprep.mubr.bf16.mxu0 0
        %3047 = vmatmul.mubr.bf16.gmra.mxu0 %v3012
        %v3048 = vpop.f32.mrf.mxu0
        %v3049 = vadd.f32 %v2997, %v3048
        %v3050 = vpop.f32.mrf.mxu0
        %v3051 = vpop.f32.mrf.mxu0
        %v3052 = vadd.f32 %v2997, %v3051
        %v3053 = vpop.f32.mrf.mxu0
        %3054 = vdwg.mxu0
        %v3055 = vadd.f32 %v1881, %v3049
        %v3056 = vadd.f32 %v1882, %v3052
        %v3057 = vsel %vm768, %v3055, 0.0
        %3058 = vadd.xlane.f32.xlu0 %v3057
        %v3059 = vpop.xlane.xlu0 %3058
        %v3060 = vsel %vm768, %v3056, 0.0
        %3061 = vadd.xlane.f32.xlu0 %v3060
        %v3062 = vpop.xlane.xlu0 %3061
        %v3063 = vmul.f32 %v3059, %v775
        %v3064 = vmul.f32 %v3062, %v775
        %v3065 = vsub.f32 %v3055, %v3063
        %v3066 = vsub.f32 %v3056, %v3064
        %v3067 = vmul.f32 %v3065, %v3065
        %v3068 = vmul.f32 %v3066, %v3066
        %v3069 = vsel %vm768, %v3067, 0.0
        %3070 = vadd.xlane.f32.xlu0 %v3069
        %v3071 = vpop.xlane.xlu0 %3070
        %v3072 = vsel %vm768, %v3068, 0.0
        %3073 = vadd.xlane.f32.xlu0 %v3072
        %v3074 = vpop.xlane.xlu0 %3073
        %v3075 = vmul.f32 %v3071, %v775
        %v3076 = vmul.f32 %v3074, %v775
        %v3077 = vadd.f32 %v3075, 1e-05
        %v3078 = vadd.f32 %v3076, 1e-05
        %v3079 = vrsqrt.pop %v3077
        %v3080 = vrsqrt.pop %v3078
        %v3081 = vmul.f32 %v3065, %v3079
        %v3082 = vmul.f32 %v3066, %v3080
        %v3083 = vld [vmem:[#allocation17] sm:$0xf]
        %v3084 = vld [vmem:[#allocation17 + $0x4] sm:$0xf]
        %v3085 = vld [vmem:[#allocation17 + $0x8] sm:$0xf]
        %v3086 = vld [vmem:[#allocation17 + $0xc] sm:$0xf]
        %v3087 = vld [vmem:[%s15] sm:$0x1]
        %v3088 = vpack.c.bf16 %v3082, %v3081
        %v3090 = vlaneseq
        %v3091 = vshrl.u32 %v3090, 7
        %v3092 = vsub.s32 0, %v3091
        %v3093 = vrot.slane %v3087, %v3092
        %v3099 = vunpack.c.l.b16 %v3083
        %v3100 = vunpack.c.l.b16 %v3084
        %v3101 = vunpack.c.l.b16 %v3085
        %v3102 = vunpack.c.l.b16 %v3086
        %v3103 = vpack.c.b16 %v3100, %v3099
        %v3104 = vpack.c.b16 %v3102, %v3101
        %v3108 = vsel %vm768, %v3088, 0
        %3110 = vmatprep.subr.bf16.mxu0 0
        %3111 = vmatpush1.bf16.msra.mxu0 0
        %3112 = vmatprep.subr.bf16.mxu0 0
        %3113 = vmatpush1.bf16.msra.mxu0 0
        %3114 = vmatprep.subr.bf16.mxu0 0
        %3115 = vmatpush1.bf16.msra.mxu0 0
        %3116 = vmatprep.subr.bf16.mxu0 0
        %3117 = vmatpush1.bf16.msra.mxu0 0
        %3118 = vmatprep.subr.bf16.mxu0 0
        %3119 = vmatpush1.bf16.msra.mxu0 0
        %3120 = vmatprep.subr.bf16.mxu0 0
        %3121 = vmatpush1.bf16.msra.mxu0 0
        %3122 = vmatprep.subr.bf16.mxu0 0
        %3123 = vmatpush1.bf16.msra.mxu0 %v3104
        %3124 = vmatprep.subr.bf16.mxu0 0
        %3125 = vmatpush1.bf16.msra.mxu0 %v3103
        %3126 = vmatprep.subr.bf16.mxu0 0
        %3127 = vmatpush2.bf16.msra.mxu0 0
        %3128 = vmatprep.subr.bf16.mxu0 0
        %3129 = vmatpush2.bf16.msra.mxu0 0
        %3130 = vmatprep.subr.bf16.mxu0 0
        %3131 = vmatpush2.bf16.msra.mxu0 0
        %3132 = vmatprep.subr.bf16.mxu0 0
        %3133 = vmatpush2.bf16.msra.mxu0 0
        %3134 = vmatprep.subr.bf16.mxu0 0
        %3135 = vmatpush2.bf16.msra.mxu0 0
        %3136 = vmatprep.subr.bf16.mxu0 0
        %3137 = vmatpush2.bf16.msra.mxu0 0
        %3138 = vmatprep.subr.bf16.mxu0 0
        %3139 = vmatpush2.bf16.msra.mxu0 0
        %3140 = vmatprep.subr.bf16.mxu0 0
        %3141 = vmatpush2.bf16.msra.mxu0 0
        %3142 = vmatprep.mubr.bf16.mxu0 0
        %3143 = vmatmul.mubr.bf16.gmra.mxu0 %v3108
        %v3144 = vpop.f32.mrf.mxu0
        %v3145 = vadd.f32 %v3093, %v3144
        %v3146 = vpop.f32.mrf.mxu0
        %v3147 = vpop.f32.mrf.mxu0
        %v3148 = vadd.f32 %v3093, %v3147
        %v3149 = vpop.f32.mrf.mxu0
        %3150 = vdwg.mxu0
        %v3151 = vmax.f32 %v3145, 0.0
        %v3152 = vmax.f32 %v3148, 0.0
        %v3153 = vld [vmem:[#allocation19] sm:$0xf]
        %v3154 = vld [vmem:[#allocation19 + $0x4] sm:$0xf]
        %v3155 = vld [vmem:[#allocation19 + $0x8] sm:$0xf]
        %v3156 = vld [vmem:[#allocation19 + $0xc] sm:$0xf]
        %v3157 = vld [vmem:[%s17] sm:$0x1]
        %v3158 = vpack.c.bf16 %v3152, %v3151
        %v3160 = vlaneseq
        %v3161 = vshrl.u32 %v3160, 7
        %v3162 = vsub.s32 0, %v3161
        %v3163 = vrot.slane %v3157, %v3162
        %v3169 = vunpack.c.l.b16 %v3153
        %v3170 = vunpack.c.l.b16 %v3154
        %v3171 = vunpack.c.l.b16 %v3155
        %v3172 = vunpack.c.l.b16 %v3156
        %v3173 = vpack.c.b16 %v3170, %v3169
        %v3174 = vpack.c.b16 %v3172, %v3171
        %v3178 = vsel %vm768, %v3158, 0
        %3180 = vmatprep.subr.bf16.mxu0 0
        %3181 = vmatpush1.bf16.msra.mxu0 0
        %3182 = vmatprep.subr.bf16.mxu0 0
        %3183 = vmatpush1.bf16.msra.mxu0 0
        %3184 = vmatprep.subr.bf16.mxu0 0
        %3185 = vmatpush1.bf16.msra.mxu0 0
        %3186 = vmatprep.subr.bf16.mxu0 0
        %3187 = vmatpush1.bf16.msra.mxu0 0
        %3188 = vmatprep.subr.bf16.mxu0 0
        %3189 = vmatpush1.bf16.msra.mxu0 0
        %3190 = vmatprep.subr.bf16.mxu0 0
        %3191 = vmatpush1.bf16.msra.mxu0 0
        %3192 = vmatprep.subr.bf16.mxu0 0
        %3193 = vmatpush1.bf16.msra.mxu0 %v3174
        %3194 = vmatprep.subr.bf16.mxu0 0
        %3195 = vmatpush1.bf16.msra.mxu0 %v3173
        %3196 = vmatprep.subr.bf16.mxu0 0
        %3197 = vmatpush2.bf16.msra.mxu0 0
        %3198 = vmatprep.subr.bf16.mxu0 0
        %3199 = vmatpush2.bf16.msra.mxu0 0
        %3200 = vmatprep.subr.bf16.mxu0 0
        %3201 = vmatpush2.bf16.msra.mxu0 0
        %3202 = vmatprep.subr.bf16.mxu0 0
        %3203 = vmatpush2.bf16.msra.mxu0 0
        %3204 = vmatprep.subr.bf16.mxu0 0
        %3205 = vmatpush2.bf16.msra.mxu0 0
        %3206 = vmatprep.subr.bf16.mxu0 0
        %3207 = vmatpush2.bf16.msra.mxu0 0
        %3208 = vmatprep.subr.bf16.mxu0 0
        %3209 = vmatpush2.bf16.msra.mxu0 0
        %3210 = vmatprep.subr.bf16.mxu0 0
        %3211 = vmatpush2.bf16.msra.mxu0 0
        %3212 = vmatprep.mubr.bf16.mxu0 0
        %3213 = vmatmul.mubr.bf16.gmra.mxu0 %v3178
        %v3214 = vpop.f32.mrf.mxu0
        %v3215 = vadd.f32 %v3163, %v3214
        %v3216 = vpop.f32.mrf.mxu0
        %v3217 = vpop.f32.mrf.mxu0
        %v3218 = vadd.f32 %v3163, %v3217
        %v3219 = vpop.f32.mrf.mxu0
        %3220 = vdwg.mxu0
        %v3221 = vadd.f32 %v3055, %v3215
        %v3222 = vadd.f32 %v3056, %v3218
        %v3223 = vsel %vm768, %v3221, 0.0
        %3224 = vadd.xlane.f32.xlu0 %v3223
        %v3225 = vpop.xlane.xlu0 %3224
        %v3226 = vsel %vm768, %v3222, 0.0
        %3227 = vadd.xlane.f32.xlu0 %v3226
        %v3228 = vpop.xlane.xlu0 %3227
        %v3229 = vmul.f32 %v3225, %v775
        %v3230 = vmul.f32 %v3228, %v775
        %v3231 = vsub.f32 %v3221, %v3229
        %v3232 = vsub.f32 %v3222, %v3230
        %v3233 = vmul.f32 %v3231, %v3231
        %v3234 = vmul.f32 %v3232, %v3232
        %v3235 = vsel %vm768, %v3233, 0.0
        %3236 = vadd.xlane.f32.xlu0 %v3235
        %v3237 = vpop.xlane.xlu0 %3236
        %v3238 = vsel %vm768, %v3234, 0.0
        %3239 = vadd.xlane.f32.xlu0 %v3238
        %v3240 = vpop.xlane.xlu0 %3239
        %v3241 = vmul.f32 %v3237, %v775
        %v3242 = vmul.f32 %v3240, %v775
        %v3243 = vadd.f32 %v3241, 1e-05
        %v3244 = vadd.f32 %v3242, 1e-05
        %v3245 = vrsqrt.pop %v3243
        %v3246 = vrsqrt.pop %v3244
        %v3247 = vmul.f32 %v3231, %v3245
        %v3248 = vmul.f32 %v3232, %v3246
        %v3249 = vld [vmem:[%s2] sm:$0x1]
        %v3251 = vlaneseq
        %v3252 = vshrl.u32 %v3251, 7
        %v3253 = vsub.s32 0, %v3252
        %v3254 = vrot.slane %v3249, %v3253
        %v3256 = vmul.f32 %v3247, %v3254
        %v3257 = vmul.f32 %v3248, %v3254
        %v3258 = vld [vmem:[%s3] sm:$0x1]
        %v3260 = vlaneseq
        %v3261 = vshrl.u32 %v3260, 7
        %v3262 = vsub.s32 0, %v3261
        %v3263 = vrot.slane %v3258, %v3262
        %v3265 = vadd.f32 %v3256, %v3263
        %v3266 = vadd.f32 %v3257, %v3263
        %3267 = vst.msk [vmem:[%s757] sm:$0xff] %vm768, %v3265
        %s3268 = scalar_lea.vmem %s757, 8 [#allocation20]
        %3269 = vst.msk [vmem:[%s3268] sm:$0xff] %vm768, %v3266
        %s3270 = sand.u32 %s438, 1
        %s3271 = scalar_lea.sflag [#allocation4], %s3270
        %s3272 = sand.u32 %s438, 1
        %s3273 = smul.addr %s3272, 16
        %s3274 = scalar_lea.vmem [#allocation20], %s3273
        // Predicated region
        $region137: #{tpu_custom_call.1} parent=91 // pred_check
          %p3275 = pneg %p448
        $region138: #{tpu_custom_call.1} parent=91 // pred_check_branch
          %3277 = sbr.rel (%p3275) target = $region140
        $region139: #{tpu_custom_call.1} parent=91 // pred_region
          %s3278 = smul.u32 2, %s42
          %s3280 = ssub.s32 256, 256
          %3281 = vsyncadd %s3271, %s3280
          %s3282 = smul.addr %s3278, 128
          %s3283 = scalar_lea.hbm %s18, %s3282
          %s3284 = sshll.u32 %s3274, 4
          %s3285 = int_to_ptr.vmem [resolvable:$true] %s3284
          %3290 = dma.vmem_to_hbm [thread:$0]  %s3285, 256, %s3283, %s3271, 128, 128, 8
        $region140: #{tpu_custom_call.1} parent=91 // pred_fallthru
          _
      $region92: #{tpu_custom_call.1} parent=5 // pred_fallthru
        _
      %p3291 = scmp.le.s32.totalorder 2, %s37
      // Predicated region
      $region141: #{tpu_custom_call.1} parent=5 // pred_check
        %p3292 = pneg %p3291
      $region142: #{tpu_custom_call.1} parent=5 // pred_check_branch
        %3294 = sbr.rel (%p3292) target = $region144
      $region143: #{tpu_custom_call.1} parent=5 // pred_region
        %s3295 = ssub.s32 %s37, 2
        // Predicated region
        $region145: #{tpu_custom_call.1} parent=143 // pred_check
          %p3296 = pneg %p454
        $region146: #{tpu_custom_call.1} parent=143 // pred_check_branch
          %3298 = sbr.rel (%p3296) target = $region148
        $region147: #{tpu_custom_call.1} parent=143 // pred_region
          %s3299 = sand.u32 %s439, 1
          %s3300 = scalar_lea.sflag [#allocation4], %s3299
          %s3301 = sand.u32 %s439, 1
          %s3302 = smul.addr %s3301, 16
          %s3303 = scalar_lea.vmem [#allocation20], %s3302
          %3304 = dma.done %s3300, 256
        $region148: #{tpu_custom_call.1} parent=143 // pred_fallthru
          _
      $region144: #{tpu_custom_call.1} parent=5 // pred_fallthru
        _
    $region6: #{tpu_custom_call.1} parent=1 // loop_footer
      %s41 = sadd.s32 1, %s37
    $region7: #{tpu_custom_call.1} parent=1 // loop_footer_branch
      %36 = sbr.rel target = $region3
    $region8: #{tpu_custom_call.1} parent=1 // loop_exit
      _
    %3305 = vsyncpa [#allocation3], 1
    %s3306 = scalar_lea.sflag [#allocation3], 1
    %3307 = vsyncpa %s3306, 1
    %3308 = vsyncpa [#allocation6], 1
    %s3309 = scalar_lea.sflag [#allocation6], 1
    %3310 = vsyncpa %s3309, 1
    %3311 = vsyncpa [#allocation9], 1
    %3312 = vsyncpa [#allocation12], 1
    %3313 = vsyncpa [#allocation15], 1
    %3314 = vsyncpa [#allocation18], 1
    %3315 = vsyncpa [#allocation4], 1
    %s3316 = scalar_lea.sflag [#allocation4], 1
    %3317 = vsyncpa %s3316, 1

</llo_original>
